<compile_context>
chip_gen: v5e
topology: v5e:2x2
jax: 0.10.0
libtpu: 0.0.40
codegen_flags: <defaults>
</compile_context>

<pallas_src>
import functools

import jax
import jax.numpy as jnp
from jax.experimental import pallas as pl
from jax.experimental.pallas import tpu as pltpu

_EPS = 1e-5  # BatchNorm2d default eps


def _silu(x):
    return x * jax.nn.sigmoid(x)


# ---------------------------------------------------------------------------
# Fused kernel: per-image block.
#   xpad_ref : (H*W + 2*p, c1) f32   flat (h-major) image, p zero rows each end
#   w1_ref   : (k, c1, c_)  bf16     cv1 taps (1xk conv, tap order = kx)
#   w2_ref   : (k, c_, c2)  bf16     cv2 taps (kx1 conv, tap order = ky)
#   s1,b1    : (1, c_) f32           folded BN1 scale / bias
#   s2,b2    : (1, c2) f32           folded BN2 scale / bias
#   o_ref    : (H*W, c2) f32
#   y1_ref   : VMEM scratch ((H + 2*p)*W, c_) bf16  (cv1 output + zero H-halo)
# ---------------------------------------------------------------------------
def _crossconv_kernel(xpad_ref, w1_ref, w2_ref, s1_ref, b1_ref, s2_ref, b2_ref,
                      o_ref, y1_ref, *, H, W, k, add):
    HW = H * W
    p = k // 2
    c_ = w1_ref.shape[-1]
    c2 = w2_ref.shape[-1]

    # column index of each flat row (for masking the W-border wrap taps)
    w_idx = jax.lax.broadcasted_iota(jnp.int32, (HW, 1), 0) % W

    # ---- cv1: 1xk conv along W as k shifted flat matmuls (MXU, bf16) ----
    acc1 = jnp.zeros((HW, c_), jnp.float32)
    for dw in range(k):
        off = dw - p                                   # tap offset along W
        slab = xpad_ref[pl.ds(dw, HW), :]              # f32 (HW, c1)
        if off < 0:   # left taps: zero where w < -off (would wrap to prev row)
            slab = slab * (w_idx >= -off).astype(slab.dtype)
        elif off > 0:  # right taps: zero where w >= W - off (wrap to next row)
            slab = slab * (w_idx < W - off).astype(slab.dtype)
        acc1 = acc1 + jnp.dot(slab.astype(jnp.bfloat16), w1_ref[dw],
                              preferred_element_type=jnp.float32)
    y1 = _silu(acc1 * s1_ref[...] + b1_ref[...])       # BN1 (folded) + SiLU, f32

    # ---- stage cv1 output (bf16) into zero-haloed VMEM scratch ----
    zpad = jnp.zeros((p * W, c_), jnp.bfloat16)
    y1_ref[pl.ds(0, p * W), :] = zpad                  # top halo
    y1_ref[pl.ds(p * W + HW, p * W), :] = zpad         # bottom halo
    y1_ref[pl.ds(p * W, HW), :] = y1.astype(jnp.bfloat16)

    # ---- cv2: kx1 conv along H as k shifted matmuls over the haloed scratch ----
    acc2 = jnp.zeros((HW, c2), jnp.float32)
    for dh in range(k):
        acc2 = acc2 + jnp.dot(y1_ref[pl.ds(dh * W, HW), :], w2_ref[dh],
                              preferred_element_type=jnp.float32)
    out = _silu(acc2 * s2_ref[...] + b2_ref[...])      # BN2 (folded) + SiLU, f32

    if add:  # residual in f32 (c1 == c2 guaranteed by the wrapper)
        out = out + xpad_ref[pl.ds(p, HW), :]
    o_ref[...] = out


# ---------------------------------------------------------------------------
# Parameters (deterministic synthetic values; shapes match the PyTorch module)
# ---------------------------------------------------------------------------
def init_params(key, c1, c2, k=3, e=1.0):
    c_ = int(c2 * e)
    ks = list(jax.random.split(key, 10))

    def rnd(kk, shape, scale=0.25):
        return scale * jax.random.normal(kk, shape, dtype=jnp.float32)

    return {
        # cv1 = Conv(c1, c_, (1,k)): conv weight (bias=False) + BatchNorm2d(c_)
        "cv1_w": rnd(ks[0], (c_, c1, 1, k)),
        "cv1_bn_g": 1.0 + rnd(ks[1], (c_,), 0.1),
        "cv1_bn_b": rnd(ks[2], (c_,), 0.1),
        "cv1_bn_m": rnd(ks[3], (c_,), 0.1),
        "cv1_bn_v": 1.0 + 0.1 * jnp.abs(jax.random.normal(ks[4], (c_,), jnp.float32)),
        # cv2 = Conv(c_, c2, (k,1)): conv weight (bias=False) + BatchNorm2d(c2)
        "cv2_w": rnd(ks[5], (c2, c_, k, 1)),
        "cv2_bn_g": 1.0 + rnd(ks[6], (c2,), 0.1),
        "cv2_bn_b": rnd(ks[7], (c2,), 0.1),
        "cv2_bn_m": rnd(ks[8], (c2,), 0.1),
        "cv2_bn_v": 1.0 + 0.1 * jnp.abs(jax.random.normal(ks[9], (c2,), jnp.float32)),
    }


# ---------------------------------------------------------------------------
# Wrapper: layout plumbing + BN folding + the single fused pallas_call.
# ---------------------------------------------------------------------------
def crossconv_forward(params, x_nchw, k=3, s=1, g=1, shortcut=False):
    assert s == 1 and g == 1, "TODO(synk): stride>1 / groups>1 not implemented"
    assert k % 2 == 1, "only odd kernel sizes supported"
    N, c1, H, W = x_nchw.shape
    c_ = params["cv1_w"].shape[0]
    c2 = params["cv2_w"].shape[0]
    add = bool(shortcut) and (c1 == c2)
    HW = H * W
    p = k // 2

    # NCHW -> flat NHWC rows (channels on lanes), zero flat-pad of p rows for
    # the 1xk taps (this also provides the residual slab in f32).
    x_rows = jnp.transpose(x_nchw.astype(jnp.float32), (0, 2, 3, 1)).reshape(N, HW, c1)
    xpad = jnp.pad(x_rows, ((0, 0), (p, p), (0, 0)))

    # conv weights reordered to (tap, cin, cout), cast to bf16 for the MXU
    w1 = jnp.transpose(params["cv1_w"][:, :, 0, :], (2, 1, 0)).astype(jnp.bfloat16)
    w2 = jnp.transpose(params["cv2_w"][:, :, :, 0], (2, 1, 0)).astype(jnp.bfloat16)

    # BatchNorm folded into scale / bias (inference running stats)
    s1 = params["cv1_bn_g"] * jax.lax.rsqrt(params["cv1_bn_v"] + _EPS)
    b1 = params["cv1_bn_b"] - params["cv1_bn_m"] * s1
    s2 = params["cv2_bn_g"] * jax.lax.rsqrt(params["cv2_bn_v"] + _EPS)
    b2 = params["cv2_bn_b"] - params["cv2_bn_m"] * s2

    kern = functools.partial(_crossconv_kernel, H=H, W=W, k=k, add=add)
    out = pl.pallas_call(
        kern,
        grid=(N,),
        in_specs=[
            pl.BlockSpec((None, HW + 2 * p, c1), lambda n: (n, 0, 0)),
            pl.BlockSpec((k, c1, c_), lambda n: (0, 0, 0)),
            pl.BlockSpec((k, c_, c2), lambda n: (0, 0, 0)),
            pl.BlockSpec((1, c_), lambda n: (0, 0)),
            pl.BlockSpec((1, c_), lambda n: (0, 0)),
            pl.BlockSpec((1, c2), lambda n: (0, 0)),
            pl.BlockSpec((1, c2), lambda n: (0, 0)),
        ],
        out_specs=pl.BlockSpec((None, HW, c2), lambda n: (n, 0, 0)),
        out_shape=jax.ShapeDtypeStruct((N, HW, c2), jnp.float32),
        scratch_shapes=[pltpu.VMEM(((H + 2 * p) * W, c_), jnp.bfloat16)],
        compiler_params=pltpu.CompilerParams(
            dimension_semantics=("parallel",)),
    )(xpad, w1, w2, s1[None, :], b1[None, :], s2[None, :], b2[None, :])

    out = out.reshape(N, H, W, c2)
    return jnp.transpose(out, (0, 3, 1, 2))  # back to NCHW


# ---------------------------------------------------------------------------
# Pure-JAX reference (lax.conv, f32) for correctness checking.
# ---------------------------------------------------------------------------
def reference_forward(params, x_nchw, k=3, shortcut=False):
    hp = jax.lax.Precision.HIGHEST

    def conv(x, w, pad):
        return jax.lax.conv_general_dilated(
            x, w, window_strides=(1, 1),
            padding=[(pad[0], pad[0]), (pad[1], pad[1])],
            dimension_numbers=("NCHW", "OIHW", "NCHW"), precision=hp)

    def bn(v, gm, bt, mn, vr):
        sh = (1, -1, 1, 1)
        return (v - mn.reshape(sh)) * jax.lax.rsqrt(vr.reshape(sh) + _EPS) \
            * gm.reshape(sh) + bt.reshape(sh)

    x = x_nchw.astype(jnp.float32)
    c1 = x.shape[1]
    c2 = params["cv2_w"].shape[0]
    add = bool(shortcut) and (c1 == c2)

    y = _silu(bn(conv(x, params["cv1_w"], (0, k // 2)),
                 params["cv1_bn_g"], params["cv1_bn_b"],
                 params["cv1_bn_m"], params["cv1_bn_v"]))
    out = _silu(bn(conv(y, params["cv2_w"], (k // 2, 0)),
                   params["cv2_bn_g"], params["cv2_bn_b"],
                   params["cv2_bn_m"], params["cv2_bn_v"]))
    return x + out if add else out


if __name__ == "__main__":
    key = jax.random.PRNGKey(0)
    c1 = c2 = 4
    N, H, W, k = 2, 16, 16, 3
    pkey, xkey = jax.random.split(key)
    params = init_params(pkey, c1, c2, k=k, e=1.0)
    x = jax.random.normal(xkey, (N, c1, H, W), dtype=jnp.float32)

    for shortcut in (False, True):   # default path + residual path
        fwd = jax.jit(functools.partial(crossconv_forward, k=k, s=1, g=1,
                                        shortcut=shortcut))
        out = jax.block_until_ready(fwd(params, x))
        ref = reference_forward(params, x, k=k, shortcut=shortcut)
        assert out.shape == ref.shape == (N, c2, H, W)
        max_err = float(jnp.max(jnp.abs(out - ref)))
        # bf16 MXU inputs vs f32 reference -> tolerance a bit looser than f32
        assert max_err < 5e-2, f"mismatch vs reference (shortcut={shortcut}): {max_err}"

    print("KERNEL_OK")
</pallas_src>

<mosaic_0001>
module attributes {stable_mosaic.version = 11 : i64} {
  func.func @_crossconv_kernel(%arg0: i32, %arg1: memref<1x258x4xf32, #tpu.memory_space<vmem>>, %arg2: memref<3x4x4xbf16, #tpu.memory_space<vmem>>, %arg3: memref<3x4x4xbf16, #tpu.memory_space<vmem>>, %arg4: memref<1x4xf32, #tpu.memory_space<vmem>>, %arg5: memref<1x4xf32, #tpu.memory_space<vmem>>, %arg6: memref<1x4xf32, #tpu.memory_space<vmem>>, %arg7: memref<1x4xf32, #tpu.memory_space<vmem>>, %arg8: memref<1x256x4xf32, #tpu.memory_space<vmem>>, %arg9: memref<288x4xbf16, #tpu.memory_space<vmem>>) attributes {dimension_semantics = [#tpu.dimension_semantics<parallel>], iteration_bounds = array<i64: 2>, scalar_prefetch = 0 : i64, scratch_operands = 1 : i64, tpu.core_type = #tpu.core_type<tc>, window_params = [{transform_indices = @transform_0, window_bounds = array<i64: 1, 258, 4>}, {pipeline_mode = #tpu.pipeline_mode<synchronous>, transform_indices = @transform_1, window_bounds = array<i64: 3, 4, 4>}, {pipeline_mode = #tpu.pipeline_mode<synchronous>, transform_indices = @transform_2, window_bounds = array<i64: 3, 4, 4>}, {pipeline_mode = #tpu.pipeline_mode<synchronous>, transform_indices = @transform_3, window_bounds = array<i64: 1, 4>}, {pipeline_mode = #tpu.pipeline_mode<synchronous>, transform_indices = @transform_4, window_bounds = array<i64: 1, 4>}, {pipeline_mode = #tpu.pipeline_mode<synchronous>, transform_indices = @transform_5, window_bounds = array<i64: 1, 4>}, {pipeline_mode = #tpu.pipeline_mode<synchronous>, transform_indices = @transform_6, window_bounds = array<i64: 1, 4>}, {transform_indices = @transform_7, window_bounds = array<i64: 1, 256, 4>}]} {
    %0 = tpu.iota {dimensions = array<i32: 0>} : vector<256x1xi32>
    %c16_i32 = arith.constant 16 : i32
    %c0_i32 = arith.constant 0 : i32
    %1 = arith.cmpi eq, %c16_i32, %c0_i32 : i32
    %c1_i32 = arith.constant 1 : i32
    %2 = arith.select %1, %c1_i32, %c16_i32 : i32
    %3 = vector.broadcast %2 : i32 to vector<256x1xi32>
    %4 = arith.remsi %0, %3 : vector<256x1xi32>
    %c0_i32_0 = arith.constant 0 : i32
    %5 = vector.broadcast %c0_i32_0 : i32 to vector<256x1xi32>
    %6 = arith.cmpi ne, %4, %5 : vector<256x1xi32>
    %c0_i32_1 = arith.constant 0 : i32
    %7 = vector.broadcast %c0_i32_1 : i32 to vector<256x1xi32>
    %8 = arith.cmpi slt, %4, %7 : vector<256x1xi32>
    %c0_i32_2 = arith.constant 0 : i32
    %9 = arith.cmpi slt, %2, %c0_i32_2 : i32
    %10 = vector.broadcast %9 : i1 to vector<256x1xi1>
    %11 = vector.broadcast %10 : vector<256x1xi1> to vector<256x1xi1>
    %12 = arith.xori %8, %11 : vector<256x1xi1>
    %13 = arith.andi %12, %6 : vector<256x1xi1>
    %14 = vector.broadcast %2 : i32 to vector<256x1xi32>
    %15 = arith.addi %4, %14 : vector<256x1xi32>
    %16 = arith.select %13, %15, %4 : vector<256x1xi1>, vector<256x1xi32>
    %cst = arith.constant 0.000000e+00 : f32
    %17 = vector.broadcast %cst : f32 to vector<256x4xf32>
    %c0 = arith.constant 0 : index
    %c0_3 = arith.constant 0 : index
    %c0_4 = arith.constant 0 : index
    %18 = vector.load %arg1[%c0, %c0_3, %c0_4] : memref<1x258x4xf32, #tpu.memory_space<vmem>>, vector<1x256x4xf32>
    %19 = vector.shape_cast %18 : vector<1x256x4xf32> to vector<256x4xf32>
    %c1_i32_5 = arith.constant 1 : i32
    %20 = vector.broadcast %c1_i32_5 : i32 to vector<256x1xi32>
    %21 = arith.cmpi sge, %16, %20 : vector<256x1xi32>
    %22 = arith.extui %21 : vector<256x1xi1> to vector<256x1xi32>
    %23 = arith.sitofp %22 : vector<256x1xi32> to vector<256x1xf32>
    %24 = vector.broadcast %23 : vector<256x1xf32> to vector<256x4xf32>
    %25 = arith.mulf %19, %24 : vector<256x4xf32>
    %26 = arith.truncf %25 : vector<256x4xf32> to vector<256x4xbf16>
    %c0_6 = arith.constant 0 : index
    %c0_7 = arith.constant 0 : index
    %c0_8 = arith.constant 0 : index
    %27 = vector.load %arg2[%c0_6, %c0_7, %c0_8] : memref<3x4x4xbf16, #tpu.memory_space<vmem>>, vector<1x4x4xbf16>
    %28 = vector.shape_cast %27 : vector<1x4x4xbf16> to vector<4x4xbf16>
    %cst_9 = arith.constant dense<0.000000e+00> : vector<256x4xf32>
    %29 = tpu.matmul %26, %28, %cst_9 {dimension_numbers = #tpu.dot_dimension_numbers<[1], [0], [0], [1], [0, 0, 1, 1], [], []>} : vector<256x4xbf16>, vector<4x4xbf16>, vector<256x4xf32> -> vector<256x4xf32>
    %30 = arith.addf %17, %29 : vector<256x4xf32>
    %c0_10 = arith.constant 0 : index
    %c1 = arith.constant 1 : index
    %c0_11 = arith.constant 0 : index
    %31 = vector.load %arg1[%c0_10, %c1, %c0_11] : memref<1x258x4xf32, #tpu.memory_space<vmem>>, vector<1x256x4xf32>
    %32 = vector.shape_cast %31 : vector<1x256x4xf32> to vector<256x4xf32>
    %33 = arith.truncf %32 : vector<256x4xf32> to vector<256x4xbf16>
    %c1_12 = arith.constant 1 : index
    %c0_13 = arith.constant 0 : index
    %c0_14 = arith.constant 0 : index
    %34 = vector.load %arg2[%c1_12, %c0_13, %c0_14] : memref<3x4x4xbf16, #tpu.memory_space<vmem>>, vector<1x4x4xbf16>
    %35 = vector.shape_cast %34 : vector<1x4x4xbf16> to vector<4x4xbf16>
    %cst_15 = arith.constant dense<0.000000e+00> : vector<256x4xf32>
    %36 = tpu.matmul %33, %35, %cst_15 {dimension_numbers = #tpu.dot_dimension_numbers<[1], [0], [0], [1], [0, 0, 1, 1], [], []>} : vector<256x4xbf16>, vector<4x4xbf16>, vector<256x4xf32> -> vector<256x4xf32>
    %37 = arith.addf %30, %36 : vector<256x4xf32>
    %c0_16 = arith.constant 0 : index
    %c2 = arith.constant 2 : index
    %c0_17 = arith.constant 0 : index
    %38 = vector.load %arg1[%c0_16, %c2, %c0_17] : memref<1x258x4xf32, #tpu.memory_space<vmem>>, vector<1x256x4xf32>
    %39 = vector.shape_cast %38 : vector<1x256x4xf32> to vector<256x4xf32>
    %c15_i32 = arith.constant 15 : i32
    %40 = vector.broadcast %c15_i32 : i32 to vector<256x1xi32>
    %41 = arith.cmpi slt, %16, %40 : vector<256x1xi32>
    %42 = arith.extui %41 : vector<256x1xi1> to vector<256x1xi32>
    %43 = arith.sitofp %42 : vector<256x1xi32> to vector<256x1xf32>
    %44 = vector.broadcast %43 : vector<256x1xf32> to vector<256x4xf32>
    %45 = arith.mulf %39, %44 : vector<256x4xf32>
    %46 = arith.truncf %45 : vector<256x4xf32> to vector<256x4xbf16>
    %c2_18 = arith.constant 2 : index
    %c0_19 = arith.constant 0 : index
    %c0_20 = arith.constant 0 : index
    %47 = vector.load %arg2[%c2_18, %c0_19, %c0_20] : memref<3x4x4xbf16, #tpu.memory_space<vmem>>, vector<1x4x4xbf16>
    %48 = vector.shape_cast %47 : vector<1x4x4xbf16> to vector<4x4xbf16>
    %cst_21 = arith.constant dense<0.000000e+00> : vector<256x4xf32>
    %49 = tpu.matmul %46, %48, %cst_21 {dimension_numbers = #tpu.dot_dimension_numbers<[1], [0], [0], [1], [0, 0, 1, 1], [], []>} : vector<256x4xbf16>, vector<4x4xbf16>, vector<256x4xf32> -> vector<256x4xf32>
    %50 = arith.addf %37, %49 : vector<256x4xf32>
    %c0_22 = arith.constant 0 : index
    %c0_23 = arith.constant 0 : index
    %51 = vector.load %arg4[%c0_22, %c0_23] : memref<1x4xf32, #tpu.memory_space<vmem>>, vector<1x4xf32>
    %52 = vector.broadcast %51 : vector<1x4xf32> to vector<256x4xf32>
    %53 = arith.mulf %50, %52 : vector<256x4xf32>
    %c0_24 = arith.constant 0 : index
    %c0_25 = arith.constant 0 : index
    %54 = vector.load %arg5[%c0_24, %c0_25] : memref<1x4xf32, #tpu.memory_space<vmem>>, vector<1x4xf32>
    %55 = vector.broadcast %54 : vector<1x4xf32> to vector<256x4xf32>
    %56 = arith.addf %53, %55 : vector<256x4xf32>
    %57 = arith.negf %56 : vector<256x4xf32>
    %58 = math.exp %57 : vector<256x4xf32>
    %cst_26 = arith.constant 1.000000e+00 : f32
    %59 = vector.broadcast %cst_26 : f32 to vector<256x4xf32>
    %60 = arith.addf %59, %58 : vector<256x4xf32>
    %61 = arith.divf %59, %60 : vector<256x4xf32>
    %62 = arith.mulf %56, %61 : vector<256x4xf32>
    %cst_27 = arith.constant 0.000000e+00 : bf16
    %63 = vector.broadcast %cst_27 : bf16 to vector<16x4xbf16>
    %c0_28 = arith.constant 0 : index
    %c0_29 = arith.constant 0 : index
    %64 = vector.load %arg9[%c0_28, %c0_29] : memref<288x4xbf16, #tpu.memory_space<vmem>>, vector<16x4xbf16>
    tpu.vector_store %arg9[%c0_28, %c0_29], %63 {strides = array<i32>} : memref<288x4xbf16, #tpu.memory_space<vmem>>, vector<16x4xbf16>,
    %c272 = arith.constant 272 : index
    %c0_30 = arith.constant 0 : index
    %65 = vector.load %arg9[%c272, %c0_30] : memref<288x4xbf16, #tpu.memory_space<vmem>>, vector<16x4xbf16>
    tpu.vector_store %arg9[%c272, %c0_30], %63 {strides = array<i32>} : memref<288x4xbf16, #tpu.memory_space<vmem>>, vector<16x4xbf16>,
    %66 = arith.truncf %62 : vector<256x4xf32> to vector<256x4xbf16>
    %c16 = arith.constant 16 : index
    %c0_31 = arith.constant 0 : index
    %67 = vector.load %arg9[%c16, %c0_31] : memref<288x4xbf16, #tpu.memory_space<vmem>>, vector<256x4xbf16>
    tpu.vector_store %arg9[%c16, %c0_31], %66 {strides = array<i32>} : memref<288x4xbf16, #tpu.memory_space<vmem>>, vector<256x4xbf16>,
    %cst_32 = arith.constant 0.000000e+00 : f32
    %68 = vector.broadcast %cst_32 : f32 to vector<256x4xf32>
    %c0_33 = arith.constant 0 : index
    %c0_34 = arith.constant 0 : index
    %69 = vector.load %arg9[%c0_33, %c0_34] : memref<288x4xbf16, #tpu.memory_space<vmem>>, vector<256x4xbf16>
    %c0_35 = arith.constant 0 : index
    %c0_36 = arith.constant 0 : index
    %c0_37 = arith.constant 0 : index
    %70 = vector.load %arg3[%c0_35, %c0_36, %c0_37] : memref<3x4x4xbf16, #tpu.memory_space<vmem>>, vector<1x4x4xbf16>
    %71 = vector.shape_cast %70 : vector<1x4x4xbf16> to vector<4x4xbf16>
    %cst_38 = arith.constant dense<0.000000e+00> : vector<256x4xf32>
    %72 = tpu.matmul %69, %71, %cst_38 {dimension_numbers = #tpu.dot_dimension_numbers<[1], [0], [0], [1], [0, 0, 1, 1], [], []>} : vector<256x4xbf16>, vector<4x4xbf16>, vector<256x4xf32> -> vector<256x4xf32>
    %73 = arith.addf %68, %72 : vector<256x4xf32>
    %c16_39 = arith.constant 16 : index
    %c0_40 = arith.constant 0 : index
    %74 = vector.load %arg9[%c16_39, %c0_40] : memref<288x4xbf16, #tpu.memory_space<vmem>>, vector<256x4xbf16>
    %c1_41 = arith.constant 1 : index
    %c0_42 = arith.constant 0 : index
    %c0_43 = arith.constant 0 : index
    %75 = vector.load %arg3[%c1_41, %c0_42, %c0_43] : memref<3x4x4xbf16, #tpu.memory_space<vmem>>, vector<1x4x4xbf16>
    %76 = vector.shape_cast %75 : vector<1x4x4xbf16> to vector<4x4xbf16>
    %cst_44 = arith.constant dense<0.000000e+00> : vector<256x4xf32>
    %77 = tpu.matmul %74, %76, %cst_44 {dimension_numbers = #tpu.dot_dimension_numbers<[1], [0], [0], [1], [0, 0, 1, 1], [], []>} : vector<256x4xbf16>, vector<4x4xbf16>, vector<256x4xf32> -> vector<256x4xf32>
    %78 = arith.addf %73, %77 : vector<256x4xf32>
    %c32 = arith.constant 32 : index
    %c0_45 = arith.constant 0 : index
    %79 = vector.load %arg9[%c32, %c0_45] : memref<288x4xbf16, #tpu.memory_space<vmem>>, vector<256x4xbf16>
    %c2_46 = arith.constant 2 : index
    %c0_47 = arith.constant 0 : index
    %c0_48 = arith.constant 0 : index
    %80 = vector.load %arg3[%c2_46, %c0_47, %c0_48] : memref<3x4x4xbf16, #tpu.memory_space<vmem>>, vector<1x4x4xbf16>
    %81 = vector.shape_cast %80 : vector<1x4x4xbf16> to vector<4x4xbf16>
    %cst_49 = arith.constant dense<0.000000e+00> : vector<256x4xf32>
    %82 = tpu.matmul %79, %81, %cst_49 {dimension_numbers = #tpu.dot_dimension_numbers<[1], [0], [0], [1], [0, 0, 1, 1], [], []>} : vector<256x4xbf16>, vector<4x4xbf16>, vector<256x4xf32> -> vector<256x4xf32>
    %83 = arith.addf %78, %82 : vector<256x4xf32>
    %c0_50 = arith.constant 0 : index
    %c0_51 = arith.constant 0 : index
    %84 = vector.load %arg6[%c0_50, %c0_51] : memref<1x4xf32, #tpu.memory_space<vmem>>, vector<1x4xf32>
    %85 = vector.broadcast %84 : vector<1x4xf32> to vector<256x4xf32>
    %86 = arith.mulf %83, %85 : vector<256x4xf32>
    %c0_52 = arith.constant 0 : index
    %c0_53 = arith.constant 0 : index
    %87 = vector.load %arg7[%c0_52, %c0_53] : memref<1x4xf32, #tpu.memory_space<vmem>>, vector<1x4xf32>
    %88 = vector.broadcast %87 : vector<1x4xf32> to vector<256x4xf32>
    %89 = arith.addf %86, %88 : vector<256x4xf32>
    %90 = arith.negf %89 : vector<256x4xf32>
    %91 = math.exp %90 : vector<256x4xf32>
    %cst_54 = arith.constant 1.000000e+00 : f32
    %92 = vector.broadcast %cst_54 : f32 to vector<256x4xf32>
    %93 = arith.addf %92, %91 : vector<256x4xf32>
    %94 = arith.divf %92, %93 : vector<256x4xf32>
    %95 = arith.mulf %89, %94 : vector<256x4xf32>
    %c0_55 = arith.constant 0 : index
    %c0_56 = arith.constant 0 : index
    %c0_57 = arith.constant 0 : index
    %96 = vector.load %arg8[%c0_55, %c0_56, %c0_57] : memref<1x256x4xf32, #tpu.memory_space<vmem>>, vector<1x256x4xf32>
    %97 = vector.shape_cast %96 : vector<1x256x4xf32> to vector<256x4xf32>
    %98 = vector.shape_cast %95 : vector<256x4xf32> to vector<1x256x4xf32>
    tpu.vector_store %arg8[%c0_55, %c0_56, %c0_57], %98 {strides = array<i32>} : memref<1x256x4xf32, #tpu.memory_space<vmem>>, vector<1x256x4xf32>,
    return
  }
  func.func @transform_0(%arg0: i32) -> (i32, i32, i32) {
    %c0_i32 = arith.constant 0 : i32
    %c0_i32_0 = arith.constant 0 : i32
    %c0_i32_1 = arith.constant 0 : i32
    return %arg0, %c0_i32, %c0_i32_0 : i32, i32, i32
  }
  func.func @transform_1(%arg0: i32) -> (i32, i32, i32) {
    %c0_i32 = arith.constant 0 : i32
    %c0_i32_0 = arith.constant 0 : i32
    %c0_i32_1 = arith.constant 0 : i32
    %c0_i32_2 = arith.constant 0 : i32
    return %c0_i32, %c0_i32_0, %c0_i32_1 : i32, i32, i32
  }
  func.func @transform_2(%arg0: i32) -> (i32, i32, i32) {
    %c0_i32 = arith.constant 0 : i32
    %c0_i32_0 = arith.constant 0 : i32
    %c0_i32_1 = arith.constant 0 : i32
    %c0_i32_2 = arith.constant 0 : i32
    return %c0_i32, %c0_i32_0, %c0_i32_1 : i32, i32, i32
  }
  func.func @transform_3(%arg0: i32) -> (i32, i32) {
    %c0_i32 = arith.constant 0 : i32
    %c0_i32_0 = arith.constant 0 : i32
    %c0_i32_1 = arith.constant 0 : i32
    return %c0_i32, %c0_i32_0 : i32, i32
  }
  func.func @transform_4(%arg0: i32) -> (i32, i32) {
    %c0_i32 = arith.constant 0 : i32
    %c0_i32_0 = arith.constant 0 : i32
    %c0_i32_1 = arith.constant 0 : i32
    return %c0_i32, %c0_i32_0 : i32, i32
  }
  func.func @transform_5(%arg0: i32) -> (i32, i32) {
    %c0_i32 = arith.constant 0 : i32
    %c0_i32_0 = arith.constant 0 : i32
    %c0_i32_1 = arith.constant 0 : i32
    return %c0_i32, %c0_i32_0 : i32, i32
  }
  func.func @transform_6(%arg0: i32) -> (i32, i32) {
    %c0_i32 = arith.constant 0 : i32
    %c0_i32_0 = arith.constant 0 : i32
    %c0_i32_1 = arith.constant 0 : i32
    return %c0_i32, %c0_i32_0 : i32, i32
  }
  func.func @transform_7(%arg0: i32) -> (i32, i32, i32) {
    %c0_i32 = arith.constant 0 : i32
    %c0_i32_0 = arith.constant 0 : i32
    %c0_i32_1 = arith.constant 0 : i32
    return %arg0, %c0_i32, %c0_i32_0 : i32, i32, i32
  }
}

</mosaic_0001>

<llo_original>
// kernel: crossconv_forward.1
$region0: #{crossconv_forward.1}
  #allocation0 [shape = 'u32[]', space=smem, size = 0x4, offset = 0x4, fixed_abs, tag = 'smem constant byte address 0x4 - core index']
  #allocation1 [shape = 'u32[72,128]{1,0:T(1,128)}', space=vmem, size = 0x9000, scoped, tag = 'internal scratch']
  #allocation2 [shape = 'bf16[288,4]{1,0:T(8,128)(2,1)}', space=vmem, size = 0x12000, scoped, tag = 'scratch operand']
  %s0 = inlined_call_operand.vmem [shape: f32[2,258,4], index: 0, kind: input, shape index: {}]
  %s1 = inlined_call_operand.vmem [shape: bf16[3,4,4], index: 1, kind: input, shape index: {}]
  %s2 = inlined_call_operand.vmem [shape: bf16[3,4,4], index: 2, kind: input, shape index: {}]
  %s3 = inlined_call_operand.vmem [shape: f32[1,4], index: 3, kind: input, shape index: {}]
  %s4 = inlined_call_operand.vmem [shape: f32[1,4], index: 4, kind: input, shape index: {}]
  %s5 = inlined_call_operand.vmem [shape: f32[1,4], index: 5, kind: input, shape index: {}]
  %s6 = inlined_call_operand.vmem [shape: f32[1,4], index: 6, kind: input, shape index: {}]
  %s7 = inlined_call_operand.vmem [shape: f32[2,256,4], index: 7, kind: output, shape index: {}]
  %s8 = sld [smem:[#allocation0]]
  $region61: #{crossconv_forward.1} parent=0
    _
  %s10 = ssub.s32 1, %s8
  %s11 = scalar_select 0, %s10, %s8
  loop: start=0, step=1, limit=4
  $region2: #{crossconv_forward.1} parent=0 // loop_pre_header
    _
  $region3: #{crossconv_forward.1} parent=0 // loop_header
    %s13 = sphi 0, %s17
    %p14 = scmp.ge.s32.totalorder %s13, 4
    %s23 = sphi 0, %s25
    %s26 = sphi 0, %s23
    %s27 = sphi 0, %s26
    %s43 = sphi 0, %s27
    %s47 = sphi 0, %s47
    %s49 = sphi 0, %s47
    %s50 = sphi 0, %s49
    %s64 = sphi 0, %s50
    %s68 = sphi 0, %s68
    %s70 = sphi 0, %s68
    %s71 = sphi 0, %s70
    %s85 = sphi 0, %s71
    %s89 = sphi 0, %s89
    %s91 = sphi 0, %s89
    %s92 = sphi 0, %s91
    %s106 = sphi 0, %s92
    %s110 = sphi 0, %s110
    %s112 = sphi 0, %s110
    %s113 = sphi 0, %s112
    %s127 = sphi 0, %s113
    %s131 = sphi 0, %s131
    %s133 = sphi 0, %s131
    %s134 = sphi 0, %s133
    %s148 = sphi 0, %s134
    %s152 = sphi 0, %s152
    %s154 = sphi 0, %s152
    %s155 = sphi 0, %s154
    %s169 = sphi 0, %s155
    %s175 = sphi 0, %s177
    %s178 = sphi 0, %s175
    %s179 = sphi 0, %s178
    %s195 = sphi 0, %s179
  $region4: #{crossconv_forward.1} parent=0 // loop_header_branch
    %16 = sbr.rel (%p14) target = $region8
  $region5: #{crossconv_forward.1} parent=0 // loop_body
    %s18 = ssub.s32 %s13, 1
    %s19 = ssub.s32 %s13, 2
    %s20 = sadd.s32 %s13, 1
    %s21 = ssub.s32 %s13, %s20
    %p22 = scmp.eq.s32.totalorder %s21, 0
    %s24 = sadd.s32 %s23, 1
    %s25 = scalar_select %p22, %s23, %s24
    %p28 = pneg %p22
    %p29 = scmp.eq.s32.totalorder %s13, 1
    %p30 = por %p28, %p29
    %p31 = scmp.ne.s32.totalorder %s23, %s26
    %p32 = scmp.eq.s32.totalorder %s13, 0
    %p33 = por %p31, %p32
    %p34 = scmp.ne.s32.totalorder %s23, %s26
    %p35 = scmp.eq.s32.totalorder %s18, 1
    %p36 = por %p34, %p35
    %p37 = scmp.ne.s32.totalorder %s26, %s27
    %p38 = scmp.eq.s32.totalorder %s18, 0
    %p39 = por %p37, %p38
    %p40 = scmp.ne.s32.totalorder %s26, %s27
    %p41 = scmp.eq.s32.totalorder %s19, 1
    %p42 = por %p40, %p41
    %p44 = scmp.ne.s32.totalorder %s27, %s43
    %p45 = scmp.eq.s32.totalorder %s19, 0
    %p46 = por %p44, %p45
    %s48 = sadd.s32 %s47, 1
    %p51 = scmp.eq.s32.totalorder %s13, 1
    %p52 = scmp.ne.s32.totalorder %s47, %s49
    %p53 = scmp.eq.s32.totalorder %s13, 0
    %p54 = por %p52, %p53
    %p55 = scmp.ne.s32.totalorder %s47, %s49
    %p56 = scmp.eq.s32.totalorder %s18, 1
    %p57 = por %p55, %p56
    %p58 = scmp.ne.s32.totalorder %s49, %s50
    %p59 = scmp.eq.s32.totalorder %s18, 0
    %p60 = por %p58, %p59
    %p61 = scmp.ne.s32.totalorder %s49, %s50
    %p62 = scmp.eq.s32.totalorder %s19, 1
    %p63 = por %p61, %p62
    %p65 = scmp.ne.s32.totalorder %s50, %s64
    %p66 = scmp.eq.s32.totalorder %s19, 0
    %p67 = por %p65, %p66
    %s69 = sadd.s32 %s68, 1
    %p72 = scmp.eq.s32.totalorder %s13, 1
    %p73 = scmp.ne.s32.totalorder %s68, %s70
    %p74 = scmp.eq.s32.totalorder %s13, 0
    %p75 = por %p73, %p74
    %p76 = scmp.ne.s32.totalorder %s68, %s70
    %p77 = scmp.eq.s32.totalorder %s18, 1
    %p78 = por %p76, %p77
    %p79 = scmp.ne.s32.totalorder %s70, %s71
    %p80 = scmp.eq.s32.totalorder %s18, 0
    %p81 = por %p79, %p80
    %p82 = scmp.ne.s32.totalorder %s70, %s71
    %p83 = scmp.eq.s32.totalorder %s19, 1
    %p84 = por %p82, %p83
    %p86 = scmp.ne.s32.totalorder %s71, %s85
    %p87 = scmp.eq.s32.totalorder %s19, 0
    %p88 = por %p86, %p87
    %s90 = sadd.s32 %s89, 1
    %p93 = scmp.eq.s32.totalorder %s13, 1
    %p94 = scmp.ne.s32.totalorder %s89, %s91
    %p95 = scmp.eq.s32.totalorder %s13, 0
    %p96 = por %p94, %p95
    %p97 = scmp.ne.s32.totalorder %s89, %s91
    %p98 = scmp.eq.s32.totalorder %s18, 1
    %p99 = por %p97, %p98
    %p100 = scmp.ne.s32.totalorder %s91, %s92
    %p101 = scmp.eq.s32.totalorder %s18, 0
    %p102 = por %p100, %p101
    %p103 = scmp.ne.s32.totalorder %s91, %s92
    %p104 = scmp.eq.s32.totalorder %s19, 1
    %p105 = por %p103, %p104
    %p107 = scmp.ne.s32.totalorder %s92, %s106
    %p108 = scmp.eq.s32.totalorder %s19, 0
    %p109 = por %p107, %p108
    %s111 = sadd.s32 %s110, 1
    %p114 = scmp.eq.s32.totalorder %s13, 1
    %p115 = scmp.ne.s32.totalorder %s110, %s112
    %p116 = scmp.eq.s32.totalorder %s13, 0
    %p117 = por %p115, %p116
    %p118 = scmp.ne.s32.totalorder %s110, %s112
    %p119 = scmp.eq.s32.totalorder %s18, 1
    %p120 = por %p118, %p119
    %p121 = scmp.ne.s32.totalorder %s112, %s113
    %p122 = scmp.eq.s32.totalorder %s18, 0
    %p123 = por %p121, %p122
    %p124 = scmp.ne.s32.totalorder %s112, %s113
    %p125 = scmp.eq.s32.totalorder %s19, 1
    %p126 = por %p124, %p125
    %p128 = scmp.ne.s32.totalorder %s113, %s127
    %p129 = scmp.eq.s32.totalorder %s19, 0
    %p130 = por %p128, %p129
    %s132 = sadd.s32 %s131, 1
    %p135 = scmp.eq.s32.totalorder %s13, 1
    %p136 = scmp.ne.s32.totalorder %s131, %s133
    %p137 = scmp.eq.s32.totalorder %s13, 0
    %p138 = por %p136, %p137
    %p139 = scmp.ne.s32.totalorder %s131, %s133
    %p140 = scmp.eq.s32.totalorder %s18, 1
    %p141 = por %p139, %p140
    %p142 = scmp.ne.s32.totalorder %s133, %s134
    %p143 = scmp.eq.s32.totalorder %s18, 0
    %p144 = por %p142, %p143
    %p145 = scmp.ne.s32.totalorder %s133, %s134
    %p146 = scmp.eq.s32.totalorder %s19, 1
    %p147 = por %p145, %p146
    %p149 = scmp.ne.s32.totalorder %s134, %s148
    %p150 = scmp.eq.s32.totalorder %s19, 0
    %p151 = por %p149, %p150
    %s153 = sadd.s32 %s152, 1
    %p156 = scmp.eq.s32.totalorder %s13, 1
    %p157 = scmp.ne.s32.totalorder %s152, %s154
    %p158 = scmp.eq.s32.totalorder %s13, 0
    %p159 = por %p157, %p158
    %p160 = scmp.ne.s32.totalorder %s152, %s154
    %p161 = scmp.eq.s32.totalorder %s18, 1
    %p162 = por %p160, %p161
    %p163 = scmp.ne.s32.totalorder %s154, %s155
    %p164 = scmp.eq.s32.totalorder %s18, 0
    %p165 = por %p163, %p164
    %p166 = scmp.ne.s32.totalorder %s154, %s155
    %p167 = scmp.eq.s32.totalorder %s19, 1
    %p168 = por %p166, %p167
    %p170 = scmp.ne.s32.totalorder %s155, %s169
    %p171 = scmp.eq.s32.totalorder %s19, 0
    %p172 = por %p170, %p171
    %s173 = ssub.s32 %s13, %s20
    %p174 = scmp.eq.s32.totalorder %s173, 0
    %s176 = sadd.s32 %s175, 1
    %s177 = scalar_select %p174, %s175, %s176
    %p180 = pneg %p174
    %p181 = scmp.eq.s32.totalorder %s13, 1
    %p182 = por %p180, %p181
    %p183 = scmp.ne.s32.totalorder %s175, %s178
    %p184 = scmp.eq.s32.totalorder %s13, 0
    %p185 = por %p183, %p184
    %p186 = scmp.ne.s32.totalorder %s175, %s178
    %p187 = scmp.eq.s32.totalorder %s18, 1
    %p188 = por %p186, %p187
    %p189 = scmp.ne.s32.totalorder %s178, %s179
    %p190 = scmp.eq.s32.totalorder %s18, 0
    %p191 = por %p189, %p190
    %p192 = scmp.ne.s32.totalorder %s178, %s179
    %p193 = scmp.eq.s32.totalorder %s19, 1
    %p194 = por %p192, %p193
    %p196 = scmp.ne.s32.totalorder %s179, %s195
    %p197 = scmp.eq.s32.totalorder %s19, 0
    %p198 = por %p196, %p197
    %p199 = scmp.le.s32.totalorder 1, %s13
    %p200 = scmp.lt.s32.totalorder %s13, 3
    %p201 = pnand %p199, %p200
    %p202 = pneg %p201
    // Predicated region
    $region9: #{crossconv_forward.1} parent=5 // pred_check
      _
    $region10: #{crossconv_forward.1} parent=5 // pred_check_branch
      %204 = sbr.rel (%p201) target = $region12
    $region11: #{crossconv_forward.1} parent=5 // pred_region
      %s205 = ssub.s32 %s13, 1
      // Predicated region
      $region13: #{crossconv_forward.1} parent=11 // pred_check
        %p206 = pneg %p60
      $region14: #{crossconv_forward.1} parent=11 // pred_check_branch
        %208 = sbr.rel (%p206) target = $region16
      $region15: #{crossconv_forward.1} parent=11 // pred_region
        _
      $region16: #{crossconv_forward.1} parent=11 // pred_fallthru
        _
      // Predicated region
      $region17: #{crossconv_forward.1} parent=11 // pred_check
        %p209 = pneg %p81
      $region18: #{crossconv_forward.1} parent=11 // pred_check_branch
        %211 = sbr.rel (%p209) target = $region20
      $region19: #{crossconv_forward.1} parent=11 // pred_region
        _
      $region20: #{crossconv_forward.1} parent=11 // pred_fallthru
        _
      // Predicated region
      $region21: #{crossconv_forward.1} parent=11 // pred_check
        %p212 = pneg %p102
      $region22: #{crossconv_forward.1} parent=11 // pred_check_branch
        %214 = sbr.rel (%p212) target = $region24
      $region23: #{crossconv_forward.1} parent=11 // pred_region
        _
      $region24: #{crossconv_forward.1} parent=11 // pred_fallthru
        _
      // Predicated region
      $region25: #{crossconv_forward.1} parent=11 // pred_check
        %p215 = pneg %p123
      $region26: #{crossconv_forward.1} parent=11 // pred_check_branch
        %217 = sbr.rel (%p215) target = $region28
      $region27: #{crossconv_forward.1} parent=11 // pred_region
        _
      $region28: #{crossconv_forward.1} parent=11 // pred_fallthru
        _
      // Predicated region
      $region29: #{crossconv_forward.1} parent=11 // pred_check
        %p218 = pneg %p144
      $region30: #{crossconv_forward.1} parent=11 // pred_check_branch
        %220 = sbr.rel (%p218) target = $region32
      $region31: #{crossconv_forward.1} parent=11 // pred_region
        _
      $region32: #{crossconv_forward.1} parent=11 // pred_fallthru
        _
      // Predicated region
      $region33: #{crossconv_forward.1} parent=11 // pred_check
        %p221 = pneg %p165
      $region34: #{crossconv_forward.1} parent=11 // pred_check_branch
        %223 = sbr.rel (%p221) target = $region36
      $region35: #{crossconv_forward.1} parent=11 // pred_region
        _
      $region36: #{crossconv_forward.1} parent=11 // pred_fallthru
        _
    $region12: #{crossconv_forward.1} parent=5 // pred_fallthru
      _
    %p224 = scmp.lt.s32.totalorder %s13, 2
    // Predicated region
    $region37: #{crossconv_forward.1} parent=5 // pred_check
      %p225 = pneg %p224
    $region38: #{crossconv_forward.1} parent=5 // pred_check_branch
      %227 = sbr.rel (%p225) target = $region40
    $region39: #{crossconv_forward.1} parent=5 // pred_region
      // Predicated region
      $region41: #{crossconv_forward.1} parent=39 // pred_check
        %p228 = pneg %p33
      $region42: #{crossconv_forward.1} parent=39 // pred_check_branch
        %230 = sbr.rel (%p228) target = $region44
      $region43: #{crossconv_forward.1} parent=39 // pred_region
        %p231 = scmp.lt.s32.totalorder %s13, 1
        %s232 = scalar_select %p231, %s13, 1
        %s233 = smul.addr %s232, 33
        %s234 = smul.addr %s233, 8
        %s235 = scalar_lea.vmem %s0, %s234
      $region44: #{crossconv_forward.1} parent=39 // pred_fallthru
        _
    $region40: #{crossconv_forward.1} parent=5 // pred_fallthru
      _
    %p236 = scmp.le.s32.totalorder 1, %s13
    %p237 = scmp.lt.s32.totalorder %s13, 3
    %p238 = pnand %p236, %p237
    %p239 = pneg %p238
    // Predicated region
    $region45: #{crossconv_forward.1} parent=5 // pred_check
      _
    $region46: #{crossconv_forward.1} parent=5 // pred_check_branch
      %241 = sbr.rel (%p238) target = $region48
    $region47: #{crossconv_forward.1} parent=5 // pred_region
      %s242 = ssub.s32 %s13, 1
      %p243 = scmp.lt.s32.totalorder %s18, 1
      %s244 = scalar_select %p243, %s18, 1
      %s245 = smul.addr %s244, 33
      %s246 = smul.addr %s245, 8
      %s247 = scalar_lea.vmem %s0, %s246
      %p248 = pneg %p39
      %p249 = pneg %p36
      %p250 = pneg %p60
      %p251 = pneg %p57
      %p252 = pneg %p81
      %p253 = pneg %p78
      %p254 = pneg %p102
      %p255 = pneg %p99
      %p256 = pneg %p123
      %p257 = pneg %p120
      %p258 = pneg %p144
      %p259 = pneg %p141
      %p260 = pneg %p165
      %p261 = pneg %p162
      %p262 = pneg %p191
      %p263 = pneg %p188
      %p264 = scmp.lt.s32.totalorder %s18, 1
      %s265 = scalar_select %p264, %s18, 1
      %s266 = smul.addr %s265, 32
      %s267 = smul.addr %s266, 8
      %s268 = scalar_lea.vmem %s7, %s267
      %p269 = scmp.lt.s32.totalorder %s18, 1
      %s270 = scalar_select %p269, %s18, 1
      %s271 = smul.addr %s270, 33
      %s272 = smul.addr %s271, 8
      %s273 = scalar_lea.vmem %s0, %s272
      %p274 = scmp.lt.s32.totalorder %s18, 1
      %s275 = scalar_select %p274, %s18, 1
      %s276 = smul.addr %s275, 32
      %s277 = smul.addr %s276, 8
      %s278 = scalar_lea.vmem %s7, %s277
      %v280 = vlaneseq
      %v281 = vshrl.u32 %v280, 7
      %v282 = vadd.s32 %v281, 8
      %v283 = vadd.s32 %v281, 16
      %v284 = vadd.s32 %v281, 24
      %v285 = vadd.s32 %v281, 32
      %v286 = vadd.s32 %v281, 40
      %v287 = vadd.s32 %v281, 48
      %v288 = vadd.s32 %v281, 56
      %v289 = vadd.s32 %v281, 64
      %v290 = vadd.s32 %v281, 72
      %v291 = vadd.s32 %v281, 80
      %v292 = vadd.s32 %v281, 88
      %v293 = vadd.s32 %v281, 96
      %v294 = vadd.s32 %v281, 104
      %v295 = vadd.s32 %v281, 112
      %v296 = vadd.s32 %v281, 120
      %v297 = vadd.s32 %v281, 128
      %v298 = vadd.s32 %v281, 136
      %v299 = vadd.s32 %v281, 144
      %v300 = vadd.s32 %v281, 152
      %v301 = vadd.s32 %v281, 160
      %v302 = vadd.s32 %v281, 168
      %v303 = vadd.s32 %v281, 176
      %v304 = vadd.s32 %v281, 184
      %v305 = vadd.s32 %v281, 192
      %v306 = vadd.s32 %v281, 200
      %v307 = vadd.s32 %v281, 208
      %v308 = vadd.s32 %v281, 216
      %v309 = vadd.s32 %v281, 224
      %v310 = vadd.s32 %v281, 232
      %v311 = vadd.s32 %v281, 240
      %v312 = vadd.s32 %v281, 248
      %vm313 = vcmp.lt.s32.totalorder %v281, 0
      %v314 = vsub.s32 0, %v281
      %v315 = vsel %vm313, %v314, %v281
      %v316 = vshrl.u32 %v315, 4
      %v317 = vand.u32 %v315, 15
      %v318 = vsub.s32 0, %v317
      %v319 = vsel %vm313, %v318, %v317
      %vm320 = vcmp.lt.s32.totalorder %v282, 0
      %v321 = vsub.s32 0, %v282
      %v322 = vsel %vm320, %v321, %v282
      %v323 = vshrl.u32 %v322, 4
      %v324 = vand.u32 %v322, 15
      %v325 = vsub.s32 0, %v324
      %v326 = vsel %vm320, %v325, %v324
      %vm327 = vcmp.lt.s32.totalorder %v283, 0
      %v328 = vsub.s32 0, %v283
      %v329 = vsel %vm327, %v328, %v283
      %v330 = vshrl.u32 %v329, 4
      %v331 = vand.u32 %v329, 15
      %v332 = vsub.s32 0, %v331
      %v333 = vsel %vm327, %v332, %v331
      %vm334 = vcmp.lt.s32.totalorder %v284, 0
      %v335 = vsub.s32 0, %v284
      %v336 = vsel %vm334, %v335, %v284
      %v337 = vshrl.u32 %v336, 4
      %v338 = vand.u32 %v336, 15
      %v339 = vsub.s32 0, %v338
      %v340 = vsel %vm334, %v339, %v338
      %vm341 = vcmp.lt.s32.totalorder %v285, 0
      %v342 = vsub.s32 0, %v285
      %v343 = vsel %vm341, %v342, %v285
      %v344 = vshrl.u32 %v343, 4
      %v345 = vand.u32 %v343, 15
      %v346 = vsub.s32 0, %v345
      %v347 = vsel %vm341, %v346, %v345
      %vm348 = vcmp.lt.s32.totalorder %v286, 0
      %v349 = vsub.s32 0, %v286
      %v350 = vsel %vm348, %v349, %v286
      %v351 = vshrl.u32 %v350, 4
      %v352 = vand.u32 %v350, 15
      %v353 = vsub.s32 0, %v352
      %v354 = vsel %vm348, %v353, %v352
      %vm355 = vcmp.lt.s32.totalorder %v287, 0
      %v356 = vsub.s32 0, %v287
      %v357 = vsel %vm355, %v356, %v287
      %v358 = vshrl.u32 %v357, 4
      %v359 = vand.u32 %v357, 15
      %v360 = vsub.s32 0, %v359
      %v361 = vsel %vm355, %v360, %v359
      %vm362 = vcmp.lt.s32.totalorder %v288, 0
      %v363 = vsub.s32 0, %v288
      %v364 = vsel %vm362, %v363, %v288
      %v365 = vshrl.u32 %v364, 4
      %v366 = vand.u32 %v364, 15
      %v367 = vsub.s32 0, %v366
      %v368 = vsel %vm362, %v367, %v366
      %vm369 = vcmp.lt.s32.totalorder %v289, 0
      %v370 = vsub.s32 0, %v289
      %v371 = vsel %vm369, %v370, %v289
      %v372 = vshrl.u32 %v371, 4
      %v373 = vand.u32 %v371, 15
      %v374 = vsub.s32 0, %v373
      %v375 = vsel %vm369, %v374, %v373
      %vm376 = vcmp.lt.s32.totalorder %v290, 0
      %v377 = vsub.s32 0, %v290
      %v378 = vsel %vm376, %v377, %v290
      %v379 = vshrl.u32 %v378, 4
      %v380 = vand.u32 %v378, 15
      %v381 = vsub.s32 0, %v380
      %v382 = vsel %vm376, %v381, %v380
      %vm383 = vcmp.lt.s32.totalorder %v291, 0
      %v384 = vsub.s32 0, %v291
      %v385 = vsel %vm383, %v384, %v291
      %v386 = vshrl.u32 %v385, 4
      %v387 = vand.u32 %v385, 15
      %v388 = vsub.s32 0, %v387
      %v389 = vsel %vm383, %v388, %v387
      %vm390 = vcmp.lt.s32.totalorder %v292, 0
      %v391 = vsub.s32 0, %v292
      %v392 = vsel %vm390, %v391, %v292
      %v393 = vshrl.u32 %v392, 4
      %v394 = vand.u32 %v392, 15
      %v395 = vsub.s32 0, %v394
      %v396 = vsel %vm390, %v395, %v394
      %vm397 = vcmp.lt.s32.totalorder %v293, 0
      %v398 = vsub.s32 0, %v293
      %v399 = vsel %vm397, %v398, %v293
      %v400 = vshrl.u32 %v399, 4
      %v401 = vand.u32 %v399, 15
      %v402 = vsub.s32 0, %v401
      %v403 = vsel %vm397, %v402, %v401
      %vm404 = vcmp.lt.s32.totalorder %v294, 0
      %v405 = vsub.s32 0, %v294
      %v406 = vsel %vm404, %v405, %v294
      %v407 = vshrl.u32 %v406, 4
      %v408 = vand.u32 %v406, 15
      %v409 = vsub.s32 0, %v408
      %v410 = vsel %vm404, %v409, %v408
      %vm411 = vcmp.lt.s32.totalorder %v295, 0
      %v412 = vsub.s32 0, %v295
      %v413 = vsel %vm411, %v412, %v295
      %v414 = vshrl.u32 %v413, 4
      %v415 = vand.u32 %v413, 15
      %v416 = vsub.s32 0, %v415
      %v417 = vsel %vm411, %v416, %v415
      %vm418 = vcmp.lt.s32.totalorder %v296, 0
      %v419 = vsub.s32 0, %v296
      %v420 = vsel %vm418, %v419, %v296
      %v421 = vshrl.u32 %v420, 4
      %v422 = vand.u32 %v420, 15
      %v423 = vsub.s32 0, %v422
      %v424 = vsel %vm418, %v423, %v422
      %vm425 = vcmp.lt.s32.totalorder %v297, 0
      %v426 = vsub.s32 0, %v297
      %v427 = vsel %vm425, %v426, %v297
      %v428 = vshrl.u32 %v427, 4
      %v429 = vand.u32 %v427, 15
      %v430 = vsub.s32 0, %v429
      %v431 = vsel %vm425, %v430, %v429
      %vm432 = vcmp.lt.s32.totalorder %v298, 0
      %v433 = vsub.s32 0, %v298
      %v434 = vsel %vm432, %v433, %v298
      %v435 = vshrl.u32 %v434, 4
      %v436 = vand.u32 %v434, 15
      %v437 = vsub.s32 0, %v436
      %v438 = vsel %vm432, %v437, %v436
      %vm439 = vcmp.lt.s32.totalorder %v299, 0
      %v440 = vsub.s32 0, %v299
      %v441 = vsel %vm439, %v440, %v299
      %v442 = vshrl.u32 %v441, 4
      %v443 = vand.u32 %v441, 15
      %v444 = vsub.s32 0, %v443
      %v445 = vsel %vm439, %v444, %v443
      %vm446 = vcmp.lt.s32.totalorder %v300, 0
      %v447 = vsub.s32 0, %v300
      %v448 = vsel %vm446, %v447, %v300
      %v449 = vshrl.u32 %v448, 4
      %v450 = vand.u32 %v448, 15
      %v451 = vsub.s32 0, %v450
      %v452 = vsel %vm446, %v451, %v450
      %vm453 = vcmp.lt.s32.totalorder %v301, 0
      %v454 = vsub.s32 0, %v301
      %v455 = vsel %vm453, %v454, %v301
      %v456 = vshrl.u32 %v455, 4
      %v457 = vand.u32 %v455, 15
      %v458 = vsub.s32 0, %v457
      %v459 = vsel %vm453, %v458, %v457
      %vm460 = vcmp.lt.s32.totalorder %v302, 0
      %v461 = vsub.s32 0, %v302
      %v462 = vsel %vm460, %v461, %v302
      %v463 = vshrl.u32 %v462, 4
      %v464 = vand.u32 %v462, 15
      %v465 = vsub.s32 0, %v464
      %v466 = vsel %vm460, %v465, %v464
      %vm467 = vcmp.lt.s32.totalorder %v303, 0
      %v468 = vsub.s32 0, %v303
      %v469 = vsel %vm467, %v468, %v303
      %v470 = vshrl.u32 %v469, 4
      %v471 = vand.u32 %v469, 15
      %v472 = vsub.s32 0, %v471
      %v473 = vsel %vm467, %v472, %v471
      %vm474 = vcmp.lt.s32.totalorder %v304, 0
      %v475 = vsub.s32 0, %v304
      %v476 = vsel %vm474, %v475, %v304
      %v477 = vshrl.u32 %v476, 4
      %v478 = vand.u32 %v476, 15
      %v479 = vsub.s32 0, %v478
      %v480 = vsel %vm474, %v479, %v478
      %vm481 = vcmp.lt.s32.totalorder %v305, 0
      %v482 = vsub.s32 0, %v305
      %v483 = vsel %vm481, %v482, %v305
      %v484 = vshrl.u32 %v483, 4
      %v485 = vand.u32 %v483, 15
      %v486 = vsub.s32 0, %v485
      %v487 = vsel %vm481, %v486, %v485
      %vm488 = vcmp.lt.s32.totalorder %v306, 0
      %v489 = vsub.s32 0, %v306
      %v490 = vsel %vm488, %v489, %v306
      %v491 = vshrl.u32 %v490, 4
      %v492 = vand.u32 %v490, 15
      %v493 = vsub.s32 0, %v492
      %v494 = vsel %vm488, %v493, %v492
      %vm495 = vcmp.lt.s32.totalorder %v307, 0
      %v496 = vsub.s32 0, %v307
      %v497 = vsel %vm495, %v496, %v307
      %v498 = vshrl.u32 %v497, 4
      %v499 = vand.u32 %v497, 15
      %v500 = vsub.s32 0, %v499
      %v501 = vsel %vm495, %v500, %v499
      %vm502 = vcmp.lt.s32.totalorder %v308, 0
      %v503 = vsub.s32 0, %v308
      %v504 = vsel %vm502, %v503, %v308
      %v505 = vshrl.u32 %v504, 4
      %v506 = vand.u32 %v504, 15
      %v507 = vsub.s32 0, %v506
      %v508 = vsel %vm502, %v507, %v506
      %vm509 = vcmp.lt.s32.totalorder %v309, 0
      %v510 = vsub.s32 0, %v309
      %v511 = vsel %vm509, %v510, %v309
      %v512 = vshrl.u32 %v511, 4
      %v513 = vand.u32 %v511, 15
      %v514 = vsub.s32 0, %v513
      %v515 = vsel %vm509, %v514, %v513
      %vm516 = vcmp.lt.s32.totalorder %v310, 0
      %v517 = vsub.s32 0, %v310
      %v518 = vsel %vm516, %v517, %v310
      %v519 = vshrl.u32 %v518, 4
      %v520 = vand.u32 %v518, 15
      %v521 = vsub.s32 0, %v520
      %v522 = vsel %vm516, %v521, %v520
      %vm523 = vcmp.lt.s32.totalorder %v311, 0
      %v524 = vsub.s32 0, %v311
      %v525 = vsel %vm523, %v524, %v311
      %v526 = vshrl.u32 %v525, 4
      %v527 = vand.u32 %v525, 15
      %v528 = vsub.s32 0, %v527
      %v529 = vsel %vm523, %v528, %v527
      %vm530 = vcmp.lt.s32.totalorder %v312, 0
      %v531 = vsub.s32 0, %v312
      %v532 = vsel %vm530, %v531, %v312
      %v533 = vshrl.u32 %v532, 4
      %v534 = vand.u32 %v532, 15
      %v535 = vsub.s32 0, %v534
      %v536 = vsel %vm530, %v535, %v534
      %vm537 = vcmp.ne.s32.totalorder %v319, 0
      %vm538 = vcmp.ne.s32.totalorder %v326, 0
      %vm539 = vcmp.ne.s32.totalorder %v333, 0
      %vm540 = vcmp.ne.s32.totalorder %v340, 0
      %vm541 = vcmp.ne.s32.totalorder %v347, 0
      %vm542 = vcmp.ne.s32.totalorder %v354, 0
      %vm543 = vcmp.ne.s32.totalorder %v361, 0
      %vm544 = vcmp.ne.s32.totalorder %v368, 0
      %vm545 = vcmp.ne.s32.totalorder %v375, 0
      %vm546 = vcmp.ne.s32.totalorder %v382, 0
      %vm547 = vcmp.ne.s32.totalorder %v389, 0
      %vm548 = vcmp.ne.s32.totalorder %v396, 0
      %vm549 = vcmp.ne.s32.totalorder %v403, 0
      %vm550 = vcmp.ne.s32.totalorder %v410, 0
      %vm551 = vcmp.ne.s32.totalorder %v417, 0
      %vm552 = vcmp.ne.s32.totalorder %v424, 0
      %vm553 = vcmp.ne.s32.totalorder %v431, 0
      %vm554 = vcmp.ne.s32.totalorder %v438, 0
      %vm555 = vcmp.ne.s32.totalorder %v445, 0
      %vm556 = vcmp.ne.s32.totalorder %v452, 0
      %vm557 = vcmp.ne.s32.totalorder %v459, 0
      %vm558 = vcmp.ne.s32.totalorder %v466, 0
      %vm559 = vcmp.ne.s32.totalorder %v473, 0
      %vm560 = vcmp.ne.s32.totalorder %v480, 0
      %vm561 = vcmp.ne.s32.totalorder %v487, 0
      %vm562 = vcmp.ne.s32.totalorder %v494, 0
      %vm563 = vcmp.ne.s32.totalorder %v501, 0
      %vm564 = vcmp.ne.s32.totalorder %v508, 0
      %vm565 = vcmp.ne.s32.totalorder %v515, 0
      %vm566 = vcmp.ne.s32.totalorder %v522, 0
      %vm567 = vcmp.ne.s32.totalorder %v529, 0
      %vm568 = vcmp.ne.s32.totalorder %v536, 0
      %vm569 = vcmp.lt.s32.totalorder %v319, 0
      %vm570 = vcmp.lt.s32.totalorder %v326, 0
      %vm571 = vcmp.lt.s32.totalorder %v333, 0
      %vm572 = vcmp.lt.s32.totalorder %v340, 0
      %vm573 = vcmp.lt.s32.totalorder %v347, 0
      %vm574 = vcmp.lt.s32.totalorder %v354, 0
      %vm575 = vcmp.lt.s32.totalorder %v361, 0
      %vm576 = vcmp.lt.s32.totalorder %v368, 0
      %vm577 = vcmp.lt.s32.totalorder %v375, 0
      %vm578 = vcmp.lt.s32.totalorder %v382, 0
      %vm579 = vcmp.lt.s32.totalorder %v389, 0
      %vm580 = vcmp.lt.s32.totalorder %v396, 0
      %vm581 = vcmp.lt.s32.totalorder %v403, 0
      %vm582 = vcmp.lt.s32.totalorder %v410, 0
      %vm583 = vcmp.lt.s32.totalorder %v417, 0
      %vm584 = vcmp.lt.s32.totalorder %v424, 0
      %vm585 = vcmp.lt.s32.totalorder %v431, 0
      %vm586 = vcmp.lt.s32.totalorder %v438, 0
      %vm587 = vcmp.lt.s32.totalorder %v445, 0
      %vm588 = vcmp.lt.s32.totalorder %v452, 0
      %vm589 = vcmp.lt.s32.totalorder %v459, 0
      %vm590 = vcmp.lt.s32.totalorder %v466, 0
      %vm591 = vcmp.lt.s32.totalorder %v473, 0
      %vm592 = vcmp.lt.s32.totalorder %v480, 0
      %vm593 = vcmp.lt.s32.totalorder %v487, 0
      %vm594 = vcmp.lt.s32.totalorder %v494, 0
      %vm595 = vcmp.lt.s32.totalorder %v501, 0
      %vm596 = vcmp.lt.s32.totalorder %v508, 0
      %vm597 = vcmp.lt.s32.totalorder %v515, 0
      %vm598 = vcmp.lt.s32.totalorder %v522, 0
      %vm599 = vcmp.lt.s32.totalorder %v529, 0
      %vm600 = vcmp.lt.s32.totalorder %v536, 0
      %vm601 = vmand %vm569, %vm537
      %vm602 = vmand %vm570, %vm538
      %vm603 = vmand %vm571, %vm539
      %vm604 = vmand %vm572, %vm540
      %vm605 = vmand %vm573, %vm541
      %vm606 = vmand %vm574, %vm542
      %vm607 = vmand %vm575, %vm543
      %vm608 = vmand %vm576, %vm544
      %vm609 = vmand %vm577, %vm545
      %vm610 = vmand %vm578, %vm546
      %vm611 = vmand %vm579, %vm547
      %vm612 = vmand %vm580, %vm548
      %vm613 = vmand %vm581, %vm549
      %vm614 = vmand %vm582, %vm550
      %vm615 = vmand %vm583, %vm551
      %vm616 = vmand %vm584, %vm552
      %vm617 = vmand %vm585, %vm553
      %vm618 = vmand %vm586, %vm554
      %vm619 = vmand %vm587, %vm555
      %vm620 = vmand %vm588, %vm556
      %vm621 = vmand %vm589, %vm557
      %vm622 = vmand %vm590, %vm558
      %vm623 = vmand %vm591, %vm559
      %vm624 = vmand %vm592, %vm560
      %vm625 = vmand %vm593, %vm561
      %vm626 = vmand %vm594, %vm562
      %vm627 = vmand %vm595, %vm563
      %vm628 = vmand %vm596, %vm564
      %vm629 = vmand %vm597, %vm565
      %vm630 = vmand %vm598, %vm566
      %vm631 = vmand %vm599, %vm567
      %vm632 = vmand %vm600, %vm568
      %v633 = vadd.s32 %v319, 16
      %v634 = vadd.s32 %v326, 16
      %v635 = vadd.s32 %v333, 16
      %v636 = vadd.s32 %v340, 16
      %v637 = vadd.s32 %v347, 16
      %v638 = vadd.s32 %v354, 16
      %v639 = vadd.s32 %v361, 16
      %v640 = vadd.s32 %v368, 16
      %v641 = vadd.s32 %v375, 16
      %v642 = vadd.s32 %v382, 16
      %v643 = vadd.s32 %v389, 16
      %v644 = vadd.s32 %v396, 16
      %v645 = vadd.s32 %v403, 16
      %v646 = vadd.s32 %v410, 16
      %v647 = vadd.s32 %v417, 16
      %v648 = vadd.s32 %v424, 16
      %v649 = vadd.s32 %v431, 16
      %v650 = vadd.s32 %v438, 16
      %v651 = vadd.s32 %v445, 16
      %v652 = vadd.s32 %v452, 16
      %v653 = vadd.s32 %v459, 16
      %v654 = vadd.s32 %v466, 16
      %v655 = vadd.s32 %v473, 16
      %v656 = vadd.s32 %v480, 16
      %v657 = vadd.s32 %v487, 16
      %v658 = vadd.s32 %v494, 16
      %v659 = vadd.s32 %v501, 16
      %v660 = vadd.s32 %v508, 16
      %v661 = vadd.s32 %v515, 16
      %v662 = vadd.s32 %v522, 16
      %v663 = vadd.s32 %v529, 16
      %v664 = vadd.s32 %v536, 16
      %v665 = vsel %vm601, %v633, %v319
      %v666 = vsel %vm602, %v634, %v326
      %v667 = vsel %vm603, %v635, %v333
      %v668 = vsel %vm604, %v636, %v340
      %v669 = vsel %vm605, %v637, %v347
      %v670 = vsel %vm606, %v638, %v354
      %v671 = vsel %vm607, %v639, %v361
      %v672 = vsel %vm608, %v640, %v368
      %v673 = vsel %vm609, %v641, %v375
      %v674 = vsel %vm610, %v642, %v382
      %v675 = vsel %vm611, %v643, %v389
      %v676 = vsel %vm612, %v644, %v396
      %v677 = vsel %vm613, %v645, %v403
      %v678 = vsel %vm614, %v646, %v410
      %v679 = vsel %vm615, %v647, %v417
      %v680 = vsel %vm616, %v648, %v424
      %v681 = vsel %vm617, %v649, %v431
      %v682 = vsel %vm618, %v650, %v438
      %v683 = vsel %vm619, %v651, %v445
      %v684 = vsel %vm620, %v652, %v452
      %v685 = vsel %vm621, %v653, %v459
      %v686 = vsel %vm622, %v654, %v466
      %v687 = vsel %vm623, %v655, %v473
      %v688 = vsel %vm624, %v656, %v480
      %v689 = vsel %vm625, %v657, %v487
      %v690 = vsel %vm626, %v658, %v494
      %v691 = vsel %vm627, %v659, %v501
      %v692 = vsel %vm628, %v660, %v508
      %v693 = vsel %vm629, %v661, %v515
      %v694 = vsel %vm630, %v662, %v522
      %v695 = vsel %vm631, %v663, %v529
      %v696 = vsel %vm632, %v664, %v536
      %v697 = vld [vmem:[%s273] sm:$0xff]
      %v698 = vld [vmem:[%s273 + $0x8] sm:$0xff]
      %v699 = vld [vmem:[%s273 + $0x10] sm:$0xff]
      %v700 = vld [vmem:[%s273 + $0x18] sm:$0xff]
      %v701 = vld [vmem:[%s273 + $0x20] sm:$0xff]
      %v702 = vld [vmem:[%s273 + $0x28] sm:$0xff]
      %v703 = vld [vmem:[%s273 + $0x30] sm:$0xff]
      %v704 = vld [vmem:[%s273 + $0x38] sm:$0xff]
      %v705 = vld [vmem:[%s273 + $0x40] sm:$0xff]
      %v706 = vld [vmem:[%s273 + $0x48] sm:$0xff]
      %v707 = vld [vmem:[%s273 + $0x50] sm:$0xff]
      %v708 = vld [vmem:[%s273 + $0x58] sm:$0xff]
      %v709 = vld [vmem:[%s273 + $0x60] sm:$0xff]
      %v710 = vld [vmem:[%s273 + $0x68] sm:$0xff]
      %v711 = vld [vmem:[%s273 + $0x70] sm:$0xff]
      %v712 = vld [vmem:[%s273 + $0x78] sm:$0xff]
      %v713 = vld [vmem:[%s273 + $0x80] sm:$0xff]
      %v714 = vld [vmem:[%s273 + $0x88] sm:$0xff]
      %v715 = vld [vmem:[%s273 + $0x90] sm:$0xff]
      %v716 = vld [vmem:[%s273 + $0x98] sm:$0xff]
      %v717 = vld [vmem:[%s273 + $0xa0] sm:$0xff]
      %v718 = vld [vmem:[%s273 + $0xa8] sm:$0xff]
      %v719 = vld [vmem:[%s273 + $0xb0] sm:$0xff]
      %v720 = vld [vmem:[%s273 + $0xb8] sm:$0xff]
      %v721 = vld [vmem:[%s273 + $0xc0] sm:$0xff]
      %v722 = vld [vmem:[%s273 + $0xc8] sm:$0xff]
      %v723 = vld [vmem:[%s273 + $0xd0] sm:$0xff]
      %v724 = vld [vmem:[%s273 + $0xd8] sm:$0xff]
      %v725 = vld [vmem:[%s273 + $0xe0] sm:$0xff]
      %v726 = vld [vmem:[%s273 + $0xe8] sm:$0xff]
      %v727 = vld [vmem:[%s273 + $0xf0] sm:$0xff]
      %v728 = vld [vmem:[%s273 + $0xf8] sm:$0xff]
      %vm729 = vcmp.ge.s32.totalorder %v665, 1
      %vm730 = vcmp.ge.s32.totalorder %v666, 1
      %vm731 = vcmp.ge.s32.totalorder %v667, 1
      %vm732 = vcmp.ge.s32.totalorder %v668, 1
      %vm733 = vcmp.ge.s32.totalorder %v669, 1
      %vm734 = vcmp.ge.s32.totalorder %v670, 1
      %vm735 = vcmp.ge.s32.totalorder %v671, 1
      %vm736 = vcmp.ge.s32.totalorder %v672, 1
      %vm737 = vcmp.ge.s32.totalorder %v673, 1
      %vm738 = vcmp.ge.s32.totalorder %v674, 1
      %vm739 = vcmp.ge.s32.totalorder %v675, 1
      %vm740 = vcmp.ge.s32.totalorder %v676, 1
      %vm741 = vcmp.ge.s32.totalorder %v677, 1
      %vm742 = vcmp.ge.s32.totalorder %v678, 1
      %vm743 = vcmp.ge.s32.totalorder %v679, 1
      %vm744 = vcmp.ge.s32.totalorder %v680, 1
      %vm745 = vcmp.ge.s32.totalorder %v681, 1
      %vm746 = vcmp.ge.s32.totalorder %v682, 1
      %vm747 = vcmp.ge.s32.totalorder %v683, 1
      %vm748 = vcmp.ge.s32.totalorder %v684, 1
      %vm749 = vcmp.ge.s32.totalorder %v685, 1
      %vm750 = vcmp.ge.s32.totalorder %v686, 1
      %vm751 = vcmp.ge.s32.totalorder %v687, 1
      %vm752 = vcmp.ge.s32.totalorder %v688, 1
      %vm753 = vcmp.ge.s32.totalorder %v689, 1
      %vm754 = vcmp.ge.s32.totalorder %v690, 1
      %vm755 = vcmp.ge.s32.totalorder %v691, 1
      %vm756 = vcmp.ge.s32.totalorder %v692, 1
      %vm757 = vcmp.ge.s32.totalorder %v693, 1
      %vm758 = vcmp.ge.s32.totalorder %v694, 1
      %vm759 = vcmp.ge.s32.totalorder %v695, 1
      %vm760 = vcmp.ge.s32.totalorder %v696, 1
      %v761 = vsel %vm729, 1, 0
      %v762 = vsel %vm730, 1, 0
      %v763 = vsel %vm731, 1, 0
      %v764 = vsel %vm732, 1, 0
      %v765 = vsel %vm733, 1, 0
      %v766 = vsel %vm734, 1, 0
      %v767 = vsel %vm735, 1, 0
      %v768 = vsel %vm736, 1, 0
      %v769 = vsel %vm737, 1, 0
      %v770 = vsel %vm738, 1, 0
      %v771 = vsel %vm739, 1, 0
      %v772 = vsel %vm740, 1, 0
      %v773 = vsel %vm741, 1, 0
      %v774 = vsel %vm742, 1, 0
      %v775 = vsel %vm743, 1, 0
      %v776 = vsel %vm744, 1, 0
      %v777 = vsel %vm745, 1, 0
      %v778 = vsel %vm746, 1, 0
      %v779 = vsel %vm747, 1, 0
      %v780 = vsel %vm748, 1, 0
      %v781 = vsel %vm749, 1, 0
      %v782 = vsel %vm750, 1, 0
      %v783 = vsel %vm751, 1, 0
      %v784 = vsel %vm752, 1, 0
      %v785 = vsel %vm753, 1, 0
      %v786 = vsel %vm754, 1, 0
      %v787 = vsel %vm755, 1, 0
      %v788 = vsel %vm756, 1, 0
      %v789 = vsel %vm757, 1, 0
      %v790 = vsel %vm758, 1, 0
      %v791 = vsel %vm759, 1, 0
      %v792 = vsel %vm760, 1, 0
      %v793 = vcvt.s32.f32 %v761
      %v794 = vcvt.s32.f32 %v762
      %v795 = vcvt.s32.f32 %v763
      %v796 = vcvt.s32.f32 %v764
      %v797 = vcvt.s32.f32 %v765
      %v798 = vcvt.s32.f32 %v766
      %v799 = vcvt.s32.f32 %v767
      %v800 = vcvt.s32.f32 %v768
      %v801 = vcvt.s32.f32 %v769
      %v802 = vcvt.s32.f32 %v770
      %v803 = vcvt.s32.f32 %v771
      %v804 = vcvt.s32.f32 %v772
      %v805 = vcvt.s32.f32 %v773
      %v806 = vcvt.s32.f32 %v774
      %v807 = vcvt.s32.f32 %v775
      %v808 = vcvt.s32.f32 %v776
      %v809 = vcvt.s32.f32 %v777
      %v810 = vcvt.s32.f32 %v778
      %v811 = vcvt.s32.f32 %v779
      %v812 = vcvt.s32.f32 %v780
      %v813 = vcvt.s32.f32 %v781
      %v814 = vcvt.s32.f32 %v782
      %v815 = vcvt.s32.f32 %v783
      %v816 = vcvt.s32.f32 %v784
      %v817 = vcvt.s32.f32 %v785
      %v818 = vcvt.s32.f32 %v786
      %v819 = vcvt.s32.f32 %v787
      %v820 = vcvt.s32.f32 %v788
      %v821 = vcvt.s32.f32 %v789
      %v822 = vcvt.s32.f32 %v790
      %v823 = vcvt.s32.f32 %v791
      %v824 = vcvt.s32.f32 %v792
      %v825 = vmul.f32 %v697, %v793
      %v826 = vmul.f32 %v698, %v794
      %v827 = vmul.f32 %v699, %v795
      %v828 = vmul.f32 %v700, %v796
      %v829 = vmul.f32 %v701, %v797
      %v830 = vmul.f32 %v702, %v798
      %v831 = vmul.f32 %v703, %v799
      %v832 = vmul.f32 %v704, %v800
      %v833 = vmul.f32 %v705, %v801
      %v834 = vmul.f32 %v706, %v802
      %v835 = vmul.f32 %v707, %v803
      %v836 = vmul.f32 %v708, %v804
      %v837 = vmul.f32 %v709, %v805
      %v838 = vmul.f32 %v710, %v806
      %v839 = vmul.f32 %v711, %v807
      %v840 = vmul.f32 %v712, %v808
      %v841 = vmul.f32 %v713, %v809
      %v842 = vmul.f32 %v714, %v810
      %v843 = vmul.f32 %v715, %v811
      %v844 = vmul.f32 %v716, %v812
      %v845 = vmul.f32 %v717, %v813
      %v846 = vmul.f32 %v718, %v814
      %v847 = vmul.f32 %v719, %v815
      %v848 = vmul.f32 %v720, %v816
      %v849 = vmul.f32 %v721, %v817
      %v850 = vmul.f32 %v722, %v818
      %v851 = vmul.f32 %v723, %v819
      %v852 = vmul.f32 %v724, %v820
      %v853 = vmul.f32 %v725, %v821
      %v854 = vmul.f32 %v726, %v822
      %v855 = vmul.f32 %v727, %v823
      %v856 = vmul.f32 %v728, %v824
      %v857 = vpack.c.bf16 %v826, %v825
      %v858 = vpack.c.bf16 %v828, %v827
      %v859 = vpack.c.bf16 %v830, %v829
      %v860 = vpack.c.bf16 %v832, %v831
      %v861 = vpack.c.bf16 %v834, %v833
      %v862 = vpack.c.bf16 %v836, %v835
      %v863 = vpack.c.bf16 %v838, %v837
      %v864 = vpack.c.bf16 %v840, %v839
      %v865 = vpack.c.bf16 %v842, %v841
      %v866 = vpack.c.bf16 %v844, %v843
      %v867 = vpack.c.bf16 %v846, %v845
      %v868 = vpack.c.bf16 %v848, %v847
      %v869 = vpack.c.bf16 %v850, %v849
      %v870 = vpack.c.bf16 %v852, %v851
      %v871 = vpack.c.bf16 %v854, %v853
      %v872 = vpack.c.bf16 %v856, %v855
      %v873 = vld [vmem:[%s1] sm:$0x3]
      %v874 = vld [vmem:[%s273 + $0x1] sm:$0xff]
      %v875 = vld [vmem:[%s273 + $0x9] sm:$0xff]
      %v876 = vld [vmem:[%s273 + $0x11] sm:$0xff]
      %v877 = vld [vmem:[%s273 + $0x19] sm:$0xff]
      %v878 = vld [vmem:[%s273 + $0x21] sm:$0xff]
      %v879 = vld [vmem:[%s273 + $0x29] sm:$0xff]
      %v880 = vld [vmem:[%s273 + $0x31] sm:$0xff]
      %v881 = vld [vmem:[%s273 + $0x39] sm:$0xff]
      %v882 = vld [vmem:[%s273 + $0x41] sm:$0xff]
      %v883 = vld [vmem:[%s273 + $0x49] sm:$0xff]
      %v884 = vld [vmem:[%s273 + $0x51] sm:$0xff]
      %v885 = vld [vmem:[%s273 + $0x59] sm:$0xff]
      %v886 = vld [vmem:[%s273 + $0x61] sm:$0xff]
      %v887 = vld [vmem:[%s273 + $0x69] sm:$0xff]
      %v888 = vld [vmem:[%s273 + $0x71] sm:$0xff]
      %v889 = vld [vmem:[%s273 + $0x79] sm:$0xff]
      %v890 = vld [vmem:[%s273 + $0x81] sm:$0xff]
      %v891 = vld [vmem:[%s273 + $0x89] sm:$0xff]
      %v892 = vld [vmem:[%s273 + $0x91] sm:$0xff]
      %v893 = vld [vmem:[%s273 + $0x99] sm:$0xff]
      %v894 = vld [vmem:[%s273 + $0xa1] sm:$0xff]
      %v895 = vld [vmem:[%s273 + $0xa9] sm:$0xff]
      %v896 = vld [vmem:[%s273 + $0xb1] sm:$0xff]
      %v897 = vld [vmem:[%s273 + $0xb9] sm:$0xff]
      %v898 = vld [vmem:[%s273 + $0xc1] sm:$0xff]
      %v899 = vld [vmem:[%s273 + $0xc9] sm:$0xff]
      %v900 = vld [vmem:[%s273 + $0xd1] sm:$0xff]
      %v901 = vld [vmem:[%s273 + $0xd9] sm:$0xff]
      %v902 = vld [vmem:[%s273 + $0xe1] sm:$0xff]
      %v903 = vld [vmem:[%s273 + $0xe9] sm:$0xff]
      %v904 = vld [vmem:[%s273 + $0xf1] sm:$0xff]
      %v905 = vld [vmem:[%s273 + $0xf9] sm:$0xff]
      %v906 = vpack.c.bf16 %v875, %v874
      %v907 = vpack.c.bf16 %v877, %v876
      %v908 = vpack.c.bf16 %v879, %v878
      %v909 = vpack.c.bf16 %v881, %v880
      %v910 = vpack.c.bf16 %v883, %v882
      %v911 = vpack.c.bf16 %v885, %v884
      %v912 = vpack.c.bf16 %v887, %v886
      %v913 = vpack.c.bf16 %v889, %v888
      %v914 = vpack.c.bf16 %v891, %v890
      %v915 = vpack.c.bf16 %v893, %v892
      %v916 = vpack.c.bf16 %v895, %v894
      %v917 = vpack.c.bf16 %v897, %v896
      %v918 = vpack.c.bf16 %v899, %v898
      %v919 = vpack.c.bf16 %v901, %v900
      %v920 = vpack.c.bf16 %v903, %v902
      %v921 = vpack.c.bf16 %v905, %v904
      %s922 = scalar_lea.vmem %s1, 2
      %v923 = vld [vmem:[%s922] sm:$0x3]
      %vm924 = vcmask 31744
      %v926 = vsel %vm924, %v906, 0
      %v929 = vsel %vm924, %v907, 0
      %v932 = vsel %vm924, %v908, 0
      %v935 = vsel %vm924, %v909, 0
      %v938 = vsel %vm924, %v910, 0
      %v941 = vsel %vm924, %v911, 0
      %v944 = vsel %vm924, %v912, 0
      %v947 = vsel %vm924, %v913, 0
      %v950 = vsel %vm924, %v914, 0
      %v953 = vsel %vm924, %v915, 0
      %v956 = vsel %vm924, %v916, 0
      %v959 = vsel %vm924, %v917, 0
      %v962 = vsel %vm924, %v918, 0
      %v965 = vsel %vm924, %v919, 0
      %v968 = vsel %vm924, %v920, 0
      %v971 = vsel %vm924, %v921, 0
      %vm973 = vcmask 1041408
      %v975 = vsel %vm973, %v923, 0
      %977 = vmatpush.bf16.msra.mxu0 0
      %978 = vmatpush.bf16.msra.mxu0 0
      %979 = vmatpush.bf16.msra.mxu0 0
      %980 = vmatpush.bf16.msra.mxu0 0
      %981 = vmatpush.bf16.msra.mxu0 0
      %982 = vmatpush.bf16.msra.mxu0 0
      %983 = vmatpush.bf16.msra.mxu0 0
      %984 = vmatpush.bf16.msra.mxu0 %v975
      %985 = vmatmul.bf16.gmra.mxu0 %v926
      %v986 = vpop.f32.mrf.mxu0
      %v987 = vadd.f32 0.0, %v986
      %v988 = vpop.f32.mrf.mxu0
      %v989 = vadd.f32 0.0, %v988
      %990 = vmatmul.bf16.gmra.mxu0 %v929
      %v991 = vpop.f32.mrf.mxu0
      %v992 = vadd.f32 0.0, %v991
      %v993 = vpop.f32.mrf.mxu0
      %v994 = vadd.f32 0.0, %v993
      %995 = vmatmul.bf16.gmra.mxu0 %v932
      %v996 = vpop.f32.mrf.mxu0
      %v997 = vadd.f32 0.0, %v996
      %v998 = vpop.f32.mrf.mxu0
      %v999 = vadd.f32 0.0, %v998
      %1000 = vmatmul.bf16.gmra.mxu0 %v935
      %v1001 = vpop.f32.mrf.mxu0
      %v1002 = vadd.f32 0.0, %v1001
      %v1003 = vpop.f32.mrf.mxu0
      %v1004 = vadd.f32 0.0, %v1003
      %1005 = vmatmul.bf16.gmra.mxu0 %v938
      %v1006 = vpop.f32.mrf.mxu0
      %v1007 = vadd.f32 0.0, %v1006
      %v1008 = vpop.f32.mrf.mxu0
      %v1009 = vadd.f32 0.0, %v1008
      %1010 = vmatmul.bf16.gmra.mxu0 %v941
      %v1011 = vpop.f32.mrf.mxu0
      %v1012 = vadd.f32 0.0, %v1011
      %v1013 = vpop.f32.mrf.mxu0
      %v1014 = vadd.f32 0.0, %v1013
      %1015 = vmatmul.bf16.gmra.mxu0 %v944
      %v1016 = vpop.f32.mrf.mxu0
      %v1017 = vadd.f32 0.0, %v1016
      %v1018 = vpop.f32.mrf.mxu0
      %v1019 = vadd.f32 0.0, %v1018
      %1020 = vmatmul.bf16.gmra.mxu0 %v947
      %v1021 = vpop.f32.mrf.mxu0
      %v1022 = vadd.f32 0.0, %v1021
      %v1023 = vpop.f32.mrf.mxu0
      %v1024 = vadd.f32 0.0, %v1023
      %1025 = vmatmul.bf16.gmra.mxu0 %v950
      %v1026 = vpop.f32.mrf.mxu0
      %v1027 = vadd.f32 0.0, %v1026
      %v1028 = vpop.f32.mrf.mxu0
      %v1029 = vadd.f32 0.0, %v1028
      %1030 = vmatmul.bf16.gmra.mxu0 %v953
      %v1031 = vpop.f32.mrf.mxu0
      %v1032 = vadd.f32 0.0, %v1031
      %v1033 = vpop.f32.mrf.mxu0
      %v1034 = vadd.f32 0.0, %v1033
      %1035 = vmatmul.bf16.gmra.mxu0 %v956
      %v1036 = vpop.f32.mrf.mxu0
      %v1037 = vadd.f32 0.0, %v1036
      %v1038 = vpop.f32.mrf.mxu0
      %v1039 = vadd.f32 0.0, %v1038
      %1040 = vmatmul.bf16.gmra.mxu0 %v959
      %v1041 = vpop.f32.mrf.mxu0
      %v1042 = vadd.f32 0.0, %v1041
      %v1043 = vpop.f32.mrf.mxu0
      %v1044 = vadd.f32 0.0, %v1043
      %1045 = vmatmul.bf16.gmra.mxu0 %v962
      %v1046 = vpop.f32.mrf.mxu0
      %v1047 = vadd.f32 0.0, %v1046
      %v1048 = vpop.f32.mrf.mxu0
      %v1049 = vadd.f32 0.0, %v1048
      %1050 = vmatmul.bf16.gmra.mxu0 %v965
      %v1051 = vpop.f32.mrf.mxu0
      %v1052 = vadd.f32 0.0, %v1051
      %v1053 = vpop.f32.mrf.mxu0
      %v1054 = vadd.f32 0.0, %v1053
      %1055 = vmatmul.bf16.gmra.mxu0 %v968
      %v1056 = vpop.f32.mrf.mxu0
      %v1057 = vadd.f32 0.0, %v1056
      %v1058 = vpop.f32.mrf.mxu0
      %v1059 = vadd.f32 0.0, %v1058
      %1060 = vmatmul.bf16.gmra.mxu0 %v971
      %v1061 = vpop.f32.mrf.mxu0
      %v1062 = vadd.f32 0.0, %v1061
      %v1063 = vpop.f32.mrf.mxu0
      %v1064 = vadd.f32 0.0, %v1063
      %1065 = vdwg.mxu0
      %v1067 = vsel %vm924, %v857, 0
      %v1070 = vsel %vm924, %v858, 0
      %v1073 = vsel %vm924, %v859, 0
      %v1076 = vsel %vm924, %v860, 0
      %v1079 = vsel %vm924, %v861, 0
      %v1082 = vsel %vm924, %v862, 0
      %v1085 = vsel %vm924, %v863, 0
      %v1088 = vsel %vm924, %v864, 0
      %v1091 = vsel %vm924, %v865, 0
      %v1094 = vsel %vm924, %v866, 0
      %v1097 = vsel %vm924, %v867, 0
      %v1100 = vsel %vm924, %v868, 0
      %v1103 = vsel %vm924, %v869, 0
      %v1106 = vsel %vm924, %v870, 0
      %v1109 = vsel %vm924, %v871, 0
      %v1112 = vsel %vm924, %v872, 0
      %v1115 = vsel %vm973, %v873, 0
      %1117 = vmatpush.bf16.msra.mxu0 0
      %1118 = vmatpush.bf16.msra.mxu0 0
      %1119 = vmatpush.bf16.msra.mxu0 0
      %1120 = vmatpush.bf16.msra.mxu0 0
      %1121 = vmatpush.bf16.msra.mxu0 0
      %1122 = vmatpush.bf16.msra.mxu0 0
      %1123 = vmatpush.bf16.msra.mxu0 0
      %1124 = vmatpush.bf16.msra.mxu0 %v1115
      %1125 = vmatmul.bf16.gmra.mxu0 %v1067
      %v1126 = vpop.f32.mrf.mxu0
      %v1127 = vadd.f32 %v987, %v1126
      %v1128 = vpop.f32.mrf.mxu0
      %v1129 = vadd.f32 %v989, %v1128
      %1130 = vmatmul.bf16.gmra.mxu0 %v1070
      %v1131 = vpop.f32.mrf.mxu0
      %v1132 = vadd.f32 %v992, %v1131
      %v1133 = vpop.f32.mrf.mxu0
      %v1134 = vadd.f32 %v994, %v1133
      %1135 = vmatmul.bf16.gmra.mxu0 %v1073
      %v1136 = vpop.f32.mrf.mxu0
      %v1137 = vadd.f32 %v997, %v1136
      %v1138 = vpop.f32.mrf.mxu0
      %v1139 = vadd.f32 %v999, %v1138
      %1140 = vmatmul.bf16.gmra.mxu0 %v1076
      %v1141 = vpop.f32.mrf.mxu0
      %v1142 = vadd.f32 %v1002, %v1141
      %v1143 = vpop.f32.mrf.mxu0
      %v1144 = vadd.f32 %v1004, %v1143
      %1145 = vmatmul.bf16.gmra.mxu0 %v1079
      %v1146 = vpop.f32.mrf.mxu0
      %v1147 = vadd.f32 %v1007, %v1146
      %v1148 = vpop.f32.mrf.mxu0
      %v1149 = vadd.f32 %v1009, %v1148
      %1150 = vmatmul.bf16.gmra.mxu0 %v1082
      %v1151 = vpop.f32.mrf.mxu0
      %v1152 = vadd.f32 %v1012, %v1151
      %v1153 = vpop.f32.mrf.mxu0
      %v1154 = vadd.f32 %v1014, %v1153
      %1155 = vmatmul.bf16.gmra.mxu0 %v1085
      %v1156 = vpop.f32.mrf.mxu0
      %v1157 = vadd.f32 %v1017, %v1156
      %v1158 = vpop.f32.mrf.mxu0
      %v1159 = vadd.f32 %v1019, %v1158
      %1160 = vmatmul.bf16.gmra.mxu0 %v1088
      %v1161 = vpop.f32.mrf.mxu0
      %v1162 = vadd.f32 %v1022, %v1161
      %v1163 = vpop.f32.mrf.mxu0
      %v1164 = vadd.f32 %v1024, %v1163
      %1165 = vmatmul.bf16.gmra.mxu0 %v1091
      %v1166 = vpop.f32.mrf.mxu0
      %v1167 = vadd.f32 %v1027, %v1166
      %v1168 = vpop.f32.mrf.mxu0
      %v1169 = vadd.f32 %v1029, %v1168
      %1170 = vmatmul.bf16.gmra.mxu0 %v1094
      %v1171 = vpop.f32.mrf.mxu0
      %v1172 = vadd.f32 %v1032, %v1171
      %v1173 = vpop.f32.mrf.mxu0
      %v1174 = vadd.f32 %v1034, %v1173
      %1175 = vmatmul.bf16.gmra.mxu0 %v1097
      %v1176 = vpop.f32.mrf.mxu0
      %v1177 = vadd.f32 %v1037, %v1176
      %v1178 = vpop.f32.mrf.mxu0
      %v1179 = vadd.f32 %v1039, %v1178
      %1180 = vmatmul.bf16.gmra.mxu0 %v1100
      %v1181 = vpop.f32.mrf.mxu0
      %v1182 = vadd.f32 %v1042, %v1181
      %v1183 = vpop.f32.mrf.mxu0
      %v1184 = vadd.f32 %v1044, %v1183
      %1185 = vmatmul.bf16.gmra.mxu0 %v1103
      %v1186 = vpop.f32.mrf.mxu0
      %v1187 = vadd.f32 %v1047, %v1186
      %v1188 = vpop.f32.mrf.mxu0
      %v1189 = vadd.f32 %v1049, %v1188
      %1190 = vmatmul.bf16.gmra.mxu0 %v1106
      %v1191 = vpop.f32.mrf.mxu0
      %v1192 = vadd.f32 %v1052, %v1191
      %v1193 = vpop.f32.mrf.mxu0
      %v1194 = vadd.f32 %v1054, %v1193
      %1195 = vmatmul.bf16.gmra.mxu0 %v1109
      %v1196 = vpop.f32.mrf.mxu0
      %v1197 = vadd.f32 %v1057, %v1196
      %v1198 = vpop.f32.mrf.mxu0
      %v1199 = vadd.f32 %v1059, %v1198
      %1200 = vmatmul.bf16.gmra.mxu0 %v1112
      %v1201 = vpop.f32.mrf.mxu0
      %v1202 = vadd.f32 %v1062, %v1201
      %v1203 = vpop.f32.mrf.mxu0
      %v1204 = vadd.f32 %v1064, %v1203
      %1205 = vdwg.mxu0
      %v1206 = vld [vmem:[%s273 + $0x2] sm:$0xff]
      %v1207 = vld [vmem:[%s273 + $0xa] sm:$0xff]
      %v1208 = vld [vmem:[%s273 + $0x12] sm:$0xff]
      %v1209 = vld [vmem:[%s273 + $0x1a] sm:$0xff]
      %v1210 = vld [vmem:[%s273 + $0x22] sm:$0xff]
      %v1211 = vld [vmem:[%s273 + $0x2a] sm:$0xff]
      %v1212 = vld [vmem:[%s273 + $0x32] sm:$0xff]
      %v1213 = vld [vmem:[%s273 + $0x3a] sm:$0xff]
      %v1214 = vld [vmem:[%s273 + $0x42] sm:$0xff]
      %v1215 = vld [vmem:[%s273 + $0x4a] sm:$0xff]
      %v1216 = vld [vmem:[%s273 + $0x52] sm:$0xff]
      %v1217 = vld [vmem:[%s273 + $0x5a] sm:$0xff]
      %v1218 = vld [vmem:[%s273 + $0x62] sm:$0xff]
      %v1219 = vld [vmem:[%s273 + $0x6a] sm:$0xff]
      %v1220 = vld [vmem:[%s273 + $0x72] sm:$0xff]
      %v1221 = vld [vmem:[%s273 + $0x7a] sm:$0xff]
      %v1222 = vld [vmem:[%s273 + $0x82] sm:$0xff]
      %v1223 = vld [vmem:[%s273 + $0x8a] sm:$0xff]
      %v1224 = vld [vmem:[%s273 + $0x92] sm:$0xff]
      %v1225 = vld [vmem:[%s273 + $0x9a] sm:$0xff]
      %v1226 = vld [vmem:[%s273 + $0xa2] sm:$0xff]
      %v1227 = vld [vmem:[%s273 + $0xaa] sm:$0xff]
      %v1228 = vld [vmem:[%s273 + $0xb2] sm:$0xff]
      %v1229 = vld [vmem:[%s273 + $0xba] sm:$0xff]
      %v1230 = vld [vmem:[%s273 + $0xc2] sm:$0xff]
      %v1231 = vld [vmem:[%s273 + $0xca] sm:$0xff]
      %v1232 = vld [vmem:[%s273 + $0xd2] sm:$0xff]
      %v1233 = vld [vmem:[%s273 + $0xda] sm:$0xff]
      %v1234 = vld [vmem:[%s273 + $0xe2] sm:$0xff]
      %v1235 = vld [vmem:[%s273 + $0xea] sm:$0xff]
      %v1236 = vld [vmem:[%s273 + $0xf2] sm:$0xff]
      %v1237 = vld [vmem:[%s273 + $0xfa] sm:$0xff]
      %vm1238 = vcmp.lt.s32.totalorder %v665, 15
      %vm1239 = vcmp.lt.s32.totalorder %v666, 15
      %vm1240 = vcmp.lt.s32.totalorder %v667, 15
      %vm1241 = vcmp.lt.s32.totalorder %v668, 15
      %vm1242 = vcmp.lt.s32.totalorder %v669, 15
      %vm1243 = vcmp.lt.s32.totalorder %v670, 15
      %vm1244 = vcmp.lt.s32.totalorder %v671, 15
      %vm1245 = vcmp.lt.s32.totalorder %v672, 15
      %vm1246 = vcmp.lt.s32.totalorder %v673, 15
      %vm1247 = vcmp.lt.s32.totalorder %v674, 15
      %vm1248 = vcmp.lt.s32.totalorder %v675, 15
      %vm1249 = vcmp.lt.s32.totalorder %v676, 15
      %vm1250 = vcmp.lt.s32.totalorder %v677, 15
      %vm1251 = vcmp.lt.s32.totalorder %v678, 15
      %vm1252 = vcmp.lt.s32.totalorder %v679, 15
      %vm1253 = vcmp.lt.s32.totalorder %v680, 15
      %vm1254 = vcmp.lt.s32.totalorder %v681, 15
      %vm1255 = vcmp.lt.s32.totalorder %v682, 15
      %vm1256 = vcmp.lt.s32.totalorder %v683, 15
      %vm1257 = vcmp.lt.s32.totalorder %v684, 15
      %vm1258 = vcmp.lt.s32.totalorder %v685, 15
      %vm1259 = vcmp.lt.s32.totalorder %v686, 15
      %vm1260 = vcmp.lt.s32.totalorder %v687, 15
      %vm1261 = vcmp.lt.s32.totalorder %v688, 15
      %vm1262 = vcmp.lt.s32.totalorder %v689, 15
      %vm1263 = vcmp.lt.s32.totalorder %v690, 15
      %vm1264 = vcmp.lt.s32.totalorder %v691, 15
      %vm1265 = vcmp.lt.s32.totalorder %v692, 15
      %vm1266 = vcmp.lt.s32.totalorder %v693, 15
      %vm1267 = vcmp.lt.s32.totalorder %v694, 15
      %vm1268 = vcmp.lt.s32.totalorder %v695, 15
      %vm1269 = vcmp.lt.s32.totalorder %v696, 15
      %v1270 = vsel %vm1238, 1, 0
      %v1271 = vsel %vm1239, 1, 0
      %v1272 = vsel %vm1240, 1, 0
      %v1273 = vsel %vm1241, 1, 0
      %v1274 = vsel %vm1242, 1, 0
      %v1275 = vsel %vm1243, 1, 0
      %v1276 = vsel %vm1244, 1, 0
      %v1277 = vsel %vm1245, 1, 0
      %v1278 = vsel %vm1246, 1, 0
      %v1279 = vsel %vm1247, 1, 0
      %v1280 = vsel %vm1248, 1, 0
      %v1281 = vsel %vm1249, 1, 0
      %v1282 = vsel %vm1250, 1, 0
      %v1283 = vsel %vm1251, 1, 0
      %v1284 = vsel %vm1252, 1, 0
      %v1285 = vsel %vm1253, 1, 0
      %v1286 = vsel %vm1254, 1, 0
      %v1287 = vsel %vm1255, 1, 0
      %v1288 = vsel %vm1256, 1, 0
      %v1289 = vsel %vm1257, 1, 0
      %v1290 = vsel %vm1258, 1, 0
      %v1291 = vsel %vm1259, 1, 0
      %v1292 = vsel %vm1260, 1, 0
      %v1293 = vsel %vm1261, 1, 0
      %v1294 = vsel %vm1262, 1, 0
      %v1295 = vsel %vm1263, 1, 0
      %v1296 = vsel %vm1264, 1, 0
      %v1297 = vsel %vm1265, 1, 0
      %v1298 = vsel %vm1266, 1, 0
      %v1299 = vsel %vm1267, 1, 0
      %v1300 = vsel %vm1268, 1, 0
      %v1301 = vsel %vm1269, 1, 0
      %v1302 = vcvt.s32.f32 %v1270
      %v1303 = vcvt.s32.f32 %v1271
      %v1304 = vcvt.s32.f32 %v1272
      %v1305 = vcvt.s32.f32 %v1273
      %v1306 = vcvt.s32.f32 %v1274
      %v1307 = vcvt.s32.f32 %v1275
      %v1308 = vcvt.s32.f32 %v1276
      %v1309 = vcvt.s32.f32 %v1277
      %v1310 = vcvt.s32.f32 %v1278
      %v1311 = vcvt.s32.f32 %v1279
      %v1312 = vcvt.s32.f32 %v1280
      %v1313 = vcvt.s32.f32 %v1281
      %v1314 = vcvt.s32.f32 %v1282
      %v1315 = vcvt.s32.f32 %v1283
      %v1316 = vcvt.s32.f32 %v1284
      %v1317 = vcvt.s32.f32 %v1285
      %v1318 = vcvt.s32.f32 %v1286
      %v1319 = vcvt.s32.f32 %v1287
      %v1320 = vcvt.s32.f32 %v1288
      %v1321 = vcvt.s32.f32 %v1289
      %v1322 = vcvt.s32.f32 %v1290
      %v1323 = vcvt.s32.f32 %v1291
      %v1324 = vcvt.s32.f32 %v1292
      %v1325 = vcvt.s32.f32 %v1293
      %v1326 = vcvt.s32.f32 %v1294
      %v1327 = vcvt.s32.f32 %v1295
      %v1328 = vcvt.s32.f32 %v1296
      %v1329 = vcvt.s32.f32 %v1297
      %v1330 = vcvt.s32.f32 %v1298
      %v1331 = vcvt.s32.f32 %v1299
      %v1332 = vcvt.s32.f32 %v1300
      %v1333 = vcvt.s32.f32 %v1301
      %v1334 = vmul.f32 %v1206, %v1302
      %v1335 = vmul.f32 %v1207, %v1303
      %v1336 = vmul.f32 %v1208, %v1304
      %v1337 = vmul.f32 %v1209, %v1305
      %v1338 = vmul.f32 %v1210, %v1306
      %v1339 = vmul.f32 %v1211, %v1307
      %v1340 = vmul.f32 %v1212, %v1308
      %v1341 = vmul.f32 %v1213, %v1309
      %v1342 = vmul.f32 %v1214, %v1310
      %v1343 = vmul.f32 %v1215, %v1311
      %v1344 = vmul.f32 %v1216, %v1312
      %v1345 = vmul.f32 %v1217, %v1313
      %v1346 = vmul.f32 %v1218, %v1314
      %v1347 = vmul.f32 %v1219, %v1315
      %v1348 = vmul.f32 %v1220, %v1316
      %v1349 = vmul.f32 %v1221, %v1317
      %v1350 = vmul.f32 %v1222, %v1318
      %v1351 = vmul.f32 %v1223, %v1319
      %v1352 = vmul.f32 %v1224, %v1320
      %v1353 = vmul.f32 %v1225, %v1321
      %v1354 = vmul.f32 %v1226, %v1322
      %v1355 = vmul.f32 %v1227, %v1323
      %v1356 = vmul.f32 %v1228, %v1324
      %v1357 = vmul.f32 %v1229, %v1325
      %v1358 = vmul.f32 %v1230, %v1326
      %v1359 = vmul.f32 %v1231, %v1327
      %v1360 = vmul.f32 %v1232, %v1328
      %v1361 = vmul.f32 %v1233, %v1329
      %v1362 = vmul.f32 %v1234, %v1330
      %v1363 = vmul.f32 %v1235, %v1331
      %v1364 = vmul.f32 %v1236, %v1332
      %v1365 = vmul.f32 %v1237, %v1333
      %v1366 = vpack.c.bf16 %v1335, %v1334
      %v1367 = vpack.c.bf16 %v1337, %v1336
      %v1368 = vpack.c.bf16 %v1339, %v1338
      %v1369 = vpack.c.bf16 %v1341, %v1340
      %v1370 = vpack.c.bf16 %v1343, %v1342
      %v1371 = vpack.c.bf16 %v1345, %v1344
      %v1372 = vpack.c.bf16 %v1347, %v1346
      %v1373 = vpack.c.bf16 %v1349, %v1348
      %v1374 = vpack.c.bf16 %v1351, %v1350
      %v1375 = vpack.c.bf16 %v1353, %v1352
      %v1376 = vpack.c.bf16 %v1355, %v1354
      %v1377 = vpack.c.bf16 %v1357, %v1356
      %v1378 = vpack.c.bf16 %v1359, %v1358
      %v1379 = vpack.c.bf16 %v1361, %v1360
      %v1380 = vpack.c.bf16 %v1363, %v1362
      %v1381 = vpack.c.bf16 %v1365, %v1364
      %s1382 = scalar_lea.vmem %s1, 4
      %v1383 = vld [vmem:[%s1382] sm:$0x3]
      %v1385 = vsel %vm924, %v1366, 0
      %v1388 = vsel %vm924, %v1367, 0
      %v1391 = vsel %vm924, %v1368, 0
      %v1394 = vsel %vm924, %v1369, 0
      %v1397 = vsel %vm924, %v1370, 0
      %v1400 = vsel %vm924, %v1371, 0
      %v1403 = vsel %vm924, %v1372, 0
      %v1406 = vsel %vm924, %v1373, 0
      %v1409 = vsel %vm924, %v1374, 0
      %v1412 = vsel %vm924, %v1375, 0
      %v1415 = vsel %vm924, %v1376, 0
      %v1418 = vsel %vm924, %v1377, 0
      %v1421 = vsel %vm924, %v1378, 0
      %v1424 = vsel %vm924, %v1379, 0
      %v1427 = vsel %vm924, %v1380, 0
      %v1430 = vsel %vm924, %v1381, 0
      %v1433 = vsel %vm973, %v1383, 0
      %1435 = vmatpush.bf16.msra.mxu0 0
      %1436 = vmatpush.bf16.msra.mxu0 0
      %1437 = vmatpush.bf16.msra.mxu0 0
      %1438 = vmatpush.bf16.msra.mxu0 0
      %1439 = vmatpush.bf16.msra.mxu0 0
      %1440 = vmatpush.bf16.msra.mxu0 0
      %1441 = vmatpush.bf16.msra.mxu0 0
      %1442 = vmatpush.bf16.msra.mxu0 %v1433
      %1443 = vmatmul.bf16.gmra.mxu0 %v1385
      %v1444 = vpop.f32.mrf.mxu0
      %v1445 = vadd.f32 0.0, %v1444
      %v1446 = vpop.f32.mrf.mxu0
      %v1447 = vadd.f32 0.0, %v1446
      %1448 = vmatmul.bf16.gmra.mxu0 %v1388
      %v1449 = vpop.f32.mrf.mxu0
      %v1450 = vadd.f32 0.0, %v1449
      %v1451 = vpop.f32.mrf.mxu0
      %v1452 = vadd.f32 0.0, %v1451
      %1453 = vmatmul.bf16.gmra.mxu0 %v1391
      %v1454 = vpop.f32.mrf.mxu0
      %v1455 = vadd.f32 0.0, %v1454
      %v1456 = vpop.f32.mrf.mxu0
      %v1457 = vadd.f32 0.0, %v1456
      %1458 = vmatmul.bf16.gmra.mxu0 %v1394
      %v1459 = vpop.f32.mrf.mxu0
      %v1460 = vadd.f32 0.0, %v1459
      %v1461 = vpop.f32.mrf.mxu0
      %v1462 = vadd.f32 0.0, %v1461
      %1463 = vmatmul.bf16.gmra.mxu0 %v1397
      %v1464 = vpop.f32.mrf.mxu0
      %v1465 = vadd.f32 0.0, %v1464
      %v1466 = vpop.f32.mrf.mxu0
      %v1467 = vadd.f32 0.0, %v1466
      %1468 = vmatmul.bf16.gmra.mxu0 %v1400
      %v1469 = vpop.f32.mrf.mxu0
      %v1470 = vadd.f32 0.0, %v1469
      %v1471 = vpop.f32.mrf.mxu0
      %v1472 = vadd.f32 0.0, %v1471
      %1473 = vmatmul.bf16.gmra.mxu0 %v1403
      %v1474 = vpop.f32.mrf.mxu0
      %v1475 = vadd.f32 0.0, %v1474
      %v1476 = vpop.f32.mrf.mxu0
      %v1477 = vadd.f32 0.0, %v1476
      %1478 = vmatmul.bf16.gmra.mxu0 %v1406
      %v1479 = vpop.f32.mrf.mxu0
      %v1480 = vadd.f32 0.0, %v1479
      %v1481 = vpop.f32.mrf.mxu0
      %v1482 = vadd.f32 0.0, %v1481
      %1483 = vmatmul.bf16.gmra.mxu0 %v1409
      %v1484 = vpop.f32.mrf.mxu0
      %v1485 = vadd.f32 0.0, %v1484
      %v1486 = vpop.f32.mrf.mxu0
      %v1487 = vadd.f32 0.0, %v1486
      %1488 = vmatmul.bf16.gmra.mxu0 %v1412
      %v1489 = vpop.f32.mrf.mxu0
      %v1490 = vadd.f32 0.0, %v1489
      %v1491 = vpop.f32.mrf.mxu0
      %v1492 = vadd.f32 0.0, %v1491
      %1493 = vmatmul.bf16.gmra.mxu0 %v1415
      %v1494 = vpop.f32.mrf.mxu0
      %v1495 = vadd.f32 0.0, %v1494
      %v1496 = vpop.f32.mrf.mxu0
      %v1497 = vadd.f32 0.0, %v1496
      %1498 = vmatmul.bf16.gmra.mxu0 %v1418
      %v1499 = vpop.f32.mrf.mxu0
      %v1500 = vadd.f32 0.0, %v1499
      %v1501 = vpop.f32.mrf.mxu0
      %v1502 = vadd.f32 0.0, %v1501
      %1503 = vmatmul.bf16.gmra.mxu0 %v1421
      %v1504 = vpop.f32.mrf.mxu0
      %v1505 = vadd.f32 0.0, %v1504
      %v1506 = vpop.f32.mrf.mxu0
      %v1507 = vadd.f32 0.0, %v1506
      %1508 = vmatmul.bf16.gmra.mxu0 %v1424
      %v1509 = vpop.f32.mrf.mxu0
      %v1510 = vadd.f32 0.0, %v1509
      %v1511 = vpop.f32.mrf.mxu0
      %v1512 = vadd.f32 0.0, %v1511
      %1513 = vmatmul.bf16.gmra.mxu0 %v1427
      %v1514 = vpop.f32.mrf.mxu0
      %v1515 = vadd.f32 0.0, %v1514
      %v1516 = vpop.f32.mrf.mxu0
      %v1517 = vadd.f32 0.0, %v1516
      %1518 = vmatmul.bf16.gmra.mxu0 %v1430
      %v1519 = vpop.f32.mrf.mxu0
      %v1520 = vadd.f32 0.0, %v1519
      %v1521 = vpop.f32.mrf.mxu0
      %v1522 = vadd.f32 0.0, %v1521
      %1523 = vdwg.mxu0
      %v1524 = vadd.f32 %v1127, %v1445
      %v1525 = vadd.f32 %v1129, %v1447
      %v1526 = vadd.f32 %v1132, %v1450
      %v1527 = vadd.f32 %v1134, %v1452
      %v1528 = vadd.f32 %v1137, %v1455
      %v1529 = vadd.f32 %v1139, %v1457
      %v1530 = vadd.f32 %v1142, %v1460
      %v1531 = vadd.f32 %v1144, %v1462
      %v1532 = vadd.f32 %v1147, %v1465
      %v1533 = vadd.f32 %v1149, %v1467
      %v1534 = vadd.f32 %v1152, %v1470
      %v1535 = vadd.f32 %v1154, %v1472
      %v1536 = vadd.f32 %v1157, %v1475
      %v1537 = vadd.f32 %v1159, %v1477
      %v1538 = vadd.f32 %v1162, %v1480
      %v1539 = vadd.f32 %v1164, %v1482
      %v1540 = vadd.f32 %v1167, %v1485
      %v1541 = vadd.f32 %v1169, %v1487
      %v1542 = vadd.f32 %v1172, %v1490
      %v1543 = vadd.f32 %v1174, %v1492
      %v1544 = vadd.f32 %v1177, %v1495
      %v1545 = vadd.f32 %v1179, %v1497
      %v1546 = vadd.f32 %v1182, %v1500
      %v1547 = vadd.f32 %v1184, %v1502
      %v1548 = vadd.f32 %v1187, %v1505
      %v1549 = vadd.f32 %v1189, %v1507
      %v1550 = vadd.f32 %v1192, %v1510
      %v1551 = vadd.f32 %v1194, %v1512
      %v1552 = vadd.f32 %v1197, %v1515
      %v1553 = vadd.f32 %v1199, %v1517
      %v1554 = vadd.f32 %v1202, %v1520
      %v1555 = vadd.f32 %v1204, %v1522
      %v1556 = vld [vmem:[%s3] sm:$0x1]
      %v1558 = vperm.slane %v1556, 0
      %v1560 = vmul.f32 %v1524, %v1558
      %v1561 = vmul.f32 %v1525, %v1558
      %v1562 = vmul.f32 %v1526, %v1558
      %v1563 = vmul.f32 %v1527, %v1558
      %v1564 = vmul.f32 %v1528, %v1558
      %v1565 = vmul.f32 %v1529, %v1558
      %v1566 = vmul.f32 %v1530, %v1558
      %v1567 = vmul.f32 %v1531, %v1558
      %v1568 = vmul.f32 %v1532, %v1558
      %v1569 = vmul.f32 %v1533, %v1558
      %v1570 = vmul.f32 %v1534, %v1558
      %v1571 = vmul.f32 %v1535, %v1558
      %v1572 = vmul.f32 %v1536, %v1558
      %v1573 = vmul.f32 %v1537, %v1558
      %v1574 = vmul.f32 %v1538, %v1558
      %v1575 = vmul.f32 %v1539, %v1558
      %v1576 = vmul.f32 %v1540, %v1558
      %v1577 = vmul.f32 %v1541, %v1558
      %v1578 = vmul.f32 %v1542, %v1558
      %v1579 = vmul.f32 %v1543, %v1558
      %v1580 = vmul.f32 %v1544, %v1558
      %v1581 = vmul.f32 %v1545, %v1558
      %v1582 = vmul.f32 %v1546, %v1558
      %v1583 = vmul.f32 %v1547, %v1558
      %v1584 = vmul.f32 %v1548, %v1558
      %v1585 = vmul.f32 %v1549, %v1558
      %v1586 = vmul.f32 %v1550, %v1558
      %v1587 = vmul.f32 %v1551, %v1558
      %v1588 = vmul.f32 %v1552, %v1558
      %v1589 = vmul.f32 %v1553, %v1558
      %v1590 = vmul.f32 %v1554, %v1558
      %v1591 = vmul.f32 %v1555, %v1558
      %v1592 = vld [vmem:[%s4] sm:$0x1]
      %v1594 = vperm.slane %v1592, 0
      %v1596 = vadd.f32 %v1560, %v1594
      %v1597 = vadd.f32 %v1561, %v1594
      %v1598 = vadd.f32 %v1562, %v1594
      %v1599 = vadd.f32 %v1563, %v1594
      %v1600 = vadd.f32 %v1564, %v1594
      %v1601 = vadd.f32 %v1565, %v1594
      %v1602 = vadd.f32 %v1566, %v1594
      %v1603 = vadd.f32 %v1567, %v1594
      %v1604 = vadd.f32 %v1568, %v1594
      %v1605 = vadd.f32 %v1569, %v1594
      %v1606 = vadd.f32 %v1570, %v1594
      %v1607 = vadd.f32 %v1571, %v1594
      %v1608 = vadd.f32 %v1572, %v1594
      %v1609 = vadd.f32 %v1573, %v1594
      %v1610 = vadd.f32 %v1574, %v1594
      %v1611 = vadd.f32 %v1575, %v1594
      %v1612 = vadd.f32 %v1576, %v1594
      %v1613 = vadd.f32 %v1577, %v1594
      %v1614 = vadd.f32 %v1578, %v1594
      %v1615 = vadd.f32 %v1579, %v1594
      %v1616 = vadd.f32 %v1580, %v1594
      %v1617 = vadd.f32 %v1581, %v1594
      %v1618 = vadd.f32 %v1582, %v1594
      %v1619 = vadd.f32 %v1583, %v1594
      %v1620 = vadd.f32 %v1584, %v1594
      %v1621 = vadd.f32 %v1585, %v1594
      %v1622 = vadd.f32 %v1586, %v1594
      %v1623 = vadd.f32 %v1587, %v1594
      %v1624 = vadd.f32 %v1588, %v1594
      %v1625 = vadd.f32 %v1589, %v1594
      %v1626 = vadd.f32 %v1590, %v1594
      %v1627 = vadd.f32 %v1591, %v1594
      %v1628 = vxor.u32 %v1596, 2147483648
      %v1629 = vxor.u32 %v1597, 2147483648
      %v1630 = vxor.u32 %v1598, 2147483648
      %v1631 = vxor.u32 %v1599, 2147483648
      %v1632 = vxor.u32 %v1600, 2147483648
      %v1633 = vxor.u32 %v1601, 2147483648
      %v1634 = vxor.u32 %v1602, 2147483648
      %v1635 = vxor.u32 %v1603, 2147483648
      %v1636 = vxor.u32 %v1604, 2147483648
      %v1637 = vxor.u32 %v1605, 2147483648
      %v1638 = vxor.u32 %v1606, 2147483648
      %v1639 = vxor.u32 %v1607, 2147483648
      %v1640 = vxor.u32 %v1608, 2147483648
      %v1641 = vxor.u32 %v1609, 2147483648
      %v1642 = vxor.u32 %v1610, 2147483648
      %v1643 = vxor.u32 %v1611, 2147483648
      %v1644 = vxor.u32 %v1612, 2147483648
      %v1645 = vxor.u32 %v1613, 2147483648
      %v1646 = vxor.u32 %v1614, 2147483648
      %v1647 = vxor.u32 %v1615, 2147483648
      %v1648 = vxor.u32 %v1616, 2147483648
      %v1649 = vxor.u32 %v1617, 2147483648
      %v1650 = vxor.u32 %v1618, 2147483648
      %v1651 = vxor.u32 %v1619, 2147483648
      %v1652 = vxor.u32 %v1620, 2147483648
      %v1653 = vxor.u32 %v1621, 2147483648
      %v1654 = vxor.u32 %v1622, 2147483648
      %v1655 = vxor.u32 %v1623, 2147483648
      %v1656 = vxor.u32 %v1624, 2147483648
      %v1657 = vxor.u32 %v1625, 2147483648
      %v1658 = vxor.u32 %v1626, 2147483648
      %v1659 = vxor.u32 %v1627, 2147483648
      %v1660 = vmul.f32 %v1628, 1.442695
      %v1661 = vpow.pop %v1660
      %v1662 = vmul.f32 %v1629, 1.442695
      %v1663 = vpow.pop %v1662
      %v1664 = vmul.f32 %v1630, 1.442695
      %v1665 = vpow.pop %v1664
      %v1666 = vmul.f32 %v1631, 1.442695
      %v1667 = vpow.pop %v1666
      %v1668 = vmul.f32 %v1632, 1.442695
      %v1669 = vpow.pop %v1668
      %v1670 = vmul.f32 %v1633, 1.442695
      %v1671 = vpow.pop %v1670
      %v1672 = vmul.f32 %v1634, 1.442695
      %v1673 = vpow.pop %v1672
      %v1674 = vmul.f32 %v1635, 1.442695
      %v1675 = vpow.pop %v1674
      %v1676 = vmul.f32 %v1636, 1.442695
      %v1677 = vpow.pop %v1676
      %v1678 = vmul.f32 %v1637, 1.442695
      %v1679 = vpow.pop %v1678
      %v1680 = vmul.f32 %v1638, 1.442695
      %v1681 = vpow.pop %v1680
      %v1682 = vmul.f32 %v1639, 1.442695
      %v1683 = vpow.pop %v1682
      %v1684 = vmul.f32 %v1640, 1.442695
      %v1685 = vpow.pop %v1684
      %v1686 = vmul.f32 %v1641, 1.442695
      %v1687 = vpow.pop %v1686
      %v1688 = vmul.f32 %v1642, 1.442695
      %v1689 = vpow.pop %v1688
      %v1690 = vmul.f32 %v1643, 1.442695
      %v1691 = vpow.pop %v1690
      %v1692 = vmul.f32 %v1644, 1.442695
      %v1693 = vpow.pop %v1692
      %v1694 = vmul.f32 %v1645, 1.442695
      %v1695 = vpow.pop %v1694
      %v1696 = vmul.f32 %v1646, 1.442695
      %v1697 = vpow.pop %v1696
      %v1698 = vmul.f32 %v1647, 1.442695
      %v1699 = vpow.pop %v1698
      %v1700 = vmul.f32 %v1648, 1.442695
      %v1701 = vpow.pop %v1700
      %v1702 = vmul.f32 %v1649, 1.442695
      %v1703 = vpow.pop %v1702
      %v1704 = vmul.f32 %v1650, 1.442695
      %v1705 = vpow.pop %v1704
      %v1706 = vmul.f32 %v1651, 1.442695
      %v1707 = vpow.pop %v1706
      %v1708 = vmul.f32 %v1652, 1.442695
      %v1709 = vpow.pop %v1708
      %v1710 = vmul.f32 %v1653, 1.442695
      %v1711 = vpow.pop %v1710
      %v1712 = vmul.f32 %v1654, 1.442695
      %v1713 = vpow.pop %v1712
      %v1714 = vmul.f32 %v1655, 1.442695
      %v1715 = vpow.pop %v1714
      %v1716 = vmul.f32 %v1656, 1.442695
      %v1717 = vpow.pop %v1716
      %v1718 = vmul.f32 %v1657, 1.442695
      %v1719 = vpow.pop %v1718
      %v1720 = vmul.f32 %v1658, 1.442695
      %v1721 = vpow.pop %v1720
      %v1722 = vmul.f32 %v1659, 1.442695
      %v1723 = vpow.pop %v1722
      %v1724 = vadd.f32 %v1661, 1.0
      %v1725 = vadd.f32 %v1663, 1.0
      %v1726 = vadd.f32 %v1665, 1.0
      %v1727 = vadd.f32 %v1667, 1.0
      %v1728 = vadd.f32 %v1669, 1.0
      %v1729 = vadd.f32 %v1671, 1.0
      %v1730 = vadd.f32 %v1673, 1.0
      %v1731 = vadd.f32 %v1675, 1.0
      %v1732 = vadd.f32 %v1677, 1.0
      %v1733 = vadd.f32 %v1679, 1.0
      %v1734 = vadd.f32 %v1681, 1.0
      %v1735 = vadd.f32 %v1683, 1.0
      %v1736 = vadd.f32 %v1685, 1.0
      %v1737 = vadd.f32 %v1687, 1.0
      %v1738 = vadd.f32 %v1689, 1.0
      %v1739 = vadd.f32 %v1691, 1.0
      %v1740 = vadd.f32 %v1693, 1.0
      %v1741 = vadd.f32 %v1695, 1.0
      %v1742 = vadd.f32 %v1697, 1.0
      %v1743 = vadd.f32 %v1699, 1.0
      %v1744 = vadd.f32 %v1701, 1.0
      %v1745 = vadd.f32 %v1703, 1.0
      %v1746 = vadd.f32 %v1705, 1.0
      %v1747 = vadd.f32 %v1707, 1.0
      %v1748 = vadd.f32 %v1709, 1.0
      %v1749 = vadd.f32 %v1711, 1.0
      %v1750 = vadd.f32 %v1713, 1.0
      %v1751 = vadd.f32 %v1715, 1.0
      %v1752 = vadd.f32 %v1717, 1.0
      %v1753 = vadd.f32 %v1719, 1.0
      %v1754 = vadd.f32 %v1721, 1.0
      %v1755 = vadd.f32 %v1723, 1.0
      %v1756 = vrcp.pop %v1724
      %v1757 = vmul.f32 %v1724, %v1756
      %v1758 = vsub.f32 1.0, %v1757
      %v1759 = vmul.f32 %v1756, %v1758
      %v1760 = vadd.f32 %v1756, %v1759
      %vm1761 = vweird.f32 %v1724
      %vm1762 = vweird.f32 %v1756
      %vm1763 = vmor %vm1761, %vm1762
      %v1764 = vsel %vm1763, %v1756, %v1760
      %v1765 = vand.u32 2147483647, %v1724
      %vm1766 = vcmp.eq.f32.partialorder %v1765, 8.507059e+37
      %v1767 = vand.u32 %v1724, 2147483648
      %v1768 = vor.u32 1.1754944e-38, %v1767
      %v1769 = vsel %vm1766, %v1768, %v1764
      %v1770 = vmul.f32 1.0, %v1769
      %v1771 = vrcp.pop %v1725
      %v1772 = vmul.f32 %v1725, %v1771
      %v1773 = vsub.f32 1.0, %v1772
      %v1774 = vmul.f32 %v1771, %v1773
      %v1775 = vadd.f32 %v1771, %v1774
      %vm1776 = vweird.f32 %v1725
      %vm1777 = vweird.f32 %v1771
      %vm1778 = vmor %vm1776, %vm1777
      %v1779 = vsel %vm1778, %v1771, %v1775
      %v1780 = vand.u32 2147483647, %v1725
      %vm1781 = vcmp.eq.f32.partialorder %v1780, 8.507059e+37
      %v1782 = vand.u32 %v1725, 2147483648
      %v1783 = vor.u32 1.1754944e-38, %v1782
      %v1784 = vsel %vm1781, %v1783, %v1779
      %v1785 = vmul.f32 1.0, %v1784
      %v1786 = vrcp.pop %v1726
      %v1787 = vmul.f32 %v1726, %v1786
      %v1788 = vsub.f32 1.0, %v1787
      %v1789 = vmul.f32 %v1786, %v1788
      %v1790 = vadd.f32 %v1786, %v1789
      %vm1791 = vweird.f32 %v1726
      %vm1792 = vweird.f32 %v1786
      %vm1793 = vmor %vm1791, %vm1792
      %v1794 = vsel %vm1793, %v1786, %v1790
      %v1795 = vand.u32 2147483647, %v1726
      %vm1796 = vcmp.eq.f32.partialorder %v1795, 8.507059e+37
      %v1797 = vand.u32 %v1726, 2147483648
      %v1798 = vor.u32 1.1754944e-38, %v1797
      %v1799 = vsel %vm1796, %v1798, %v1794
      %v1800 = vmul.f32 1.0, %v1799
      %v1801 = vrcp.pop %v1727
      %v1802 = vmul.f32 %v1727, %v1801
      %v1803 = vsub.f32 1.0, %v1802
      %v1804 = vmul.f32 %v1801, %v1803
      %v1805 = vadd.f32 %v1801, %v1804
      %vm1806 = vweird.f32 %v1727
      %vm1807 = vweird.f32 %v1801
      %vm1808 = vmor %vm1806, %vm1807
      %v1809 = vsel %vm1808, %v1801, %v1805
      %v1810 = vand.u32 2147483647, %v1727
      %vm1811 = vcmp.eq.f32.partialorder %v1810, 8.507059e+37
      %v1812 = vand.u32 %v1727, 2147483648
      %v1813 = vor.u32 1.1754944e-38, %v1812
      %v1814 = vsel %vm1811, %v1813, %v1809
      %v1815 = vmul.f32 1.0, %v1814
      %v1816 = vrcp.pop %v1728
      %v1817 = vmul.f32 %v1728, %v1816
      %v1818 = vsub.f32 1.0, %v1817
      %v1819 = vmul.f32 %v1816, %v1818
      %v1820 = vadd.f32 %v1816, %v1819
      %vm1821 = vweird.f32 %v1728
      %vm1822 = vweird.f32 %v1816
      %vm1823 = vmor %vm1821, %vm1822
      %v1824 = vsel %vm1823, %v1816, %v1820
      %v1825 = vand.u32 2147483647, %v1728
      %vm1826 = vcmp.eq.f32.partialorder %v1825, 8.507059e+37
      %v1827 = vand.u32 %v1728, 2147483648
      %v1828 = vor.u32 1.1754944e-38, %v1827
      %v1829 = vsel %vm1826, %v1828, %v1824
      %v1830 = vmul.f32 1.0, %v1829
      %v1831 = vrcp.pop %v1729
      %v1832 = vmul.f32 %v1729, %v1831
      %v1833 = vsub.f32 1.0, %v1832
      %v1834 = vmul.f32 %v1831, %v1833
      %v1835 = vadd.f32 %v1831, %v1834
      %vm1836 = vweird.f32 %v1729
      %vm1837 = vweird.f32 %v1831
      %vm1838 = vmor %vm1836, %vm1837
      %v1839 = vsel %vm1838, %v1831, %v1835
      %v1840 = vand.u32 2147483647, %v1729
      %vm1841 = vcmp.eq.f32.partialorder %v1840, 8.507059e+37
      %v1842 = vand.u32 %v1729, 2147483648
      %v1843 = vor.u32 1.1754944e-38, %v1842
      %v1844 = vsel %vm1841, %v1843, %v1839
      %v1845 = vmul.f32 1.0, %v1844
      %v1846 = vrcp.pop %v1730
      %v1847 = vmul.f32 %v1730, %v1846
      %v1848 = vsub.f32 1.0, %v1847
      %v1849 = vmul.f32 %v1846, %v1848
      %v1850 = vadd.f32 %v1846, %v1849
      %vm1851 = vweird.f32 %v1730
      %vm1852 = vweird.f32 %v1846
      %vm1853 = vmor %vm1851, %vm1852
      %v1854 = vsel %vm1853, %v1846, %v1850
      %v1855 = vand.u32 2147483647, %v1730
      %vm1856 = vcmp.eq.f32.partialorder %v1855, 8.507059e+37
      %v1857 = vand.u32 %v1730, 2147483648
      %v1858 = vor.u32 1.1754944e-38, %v1857
      %v1859 = vsel %vm1856, %v1858, %v1854
      %v1860 = vmul.f32 1.0, %v1859
      %v1861 = vrcp.pop %v1731
      %v1862 = vmul.f32 %v1731, %v1861
      %v1863 = vsub.f32 1.0, %v1862
      %v1864 = vmul.f32 %v1861, %v1863
      %v1865 = vadd.f32 %v1861, %v1864
      %vm1866 = vweird.f32 %v1731
      %vm1867 = vweird.f32 %v1861
      %vm1868 = vmor %vm1866, %vm1867
      %v1869 = vsel %vm1868, %v1861, %v1865
      %v1870 = vand.u32 2147483647, %v1731
      %vm1871 = vcmp.eq.f32.partialorder %v1870, 8.507059e+37
      %v1872 = vand.u32 %v1731, 2147483648
      %v1873 = vor.u32 1.1754944e-38, %v1872
      %v1874 = vsel %vm1871, %v1873, %v1869
      %v1875 = vmul.f32 1.0, %v1874
      %v1876 = vrcp.pop %v1732
      %v1877 = vmul.f32 %v1732, %v1876
      %v1878 = vsub.f32 1.0, %v1877
      %v1879 = vmul.f32 %v1876, %v1878
      %v1880 = vadd.f32 %v1876, %v1879
      %vm1881 = vweird.f32 %v1732
      %vm1882 = vweird.f32 %v1876
      %vm1883 = vmor %vm1881, %vm1882
      %v1884 = vsel %vm1883, %v1876, %v1880
      %v1885 = vand.u32 2147483647, %v1732
      %vm1886 = vcmp.eq.f32.partialorder %v1885, 8.507059e+37
      %v1887 = vand.u32 %v1732, 2147483648
      %v1888 = vor.u32 1.1754944e-38, %v1887
      %v1889 = vsel %vm1886, %v1888, %v1884
      %v1890 = vmul.f32 1.0, %v1889
      %v1891 = vrcp.pop %v1733
      %v1892 = vmul.f32 %v1733, %v1891
      %v1893 = vsub.f32 1.0, %v1892
      %v1894 = vmul.f32 %v1891, %v1893
      %v1895 = vadd.f32 %v1891, %v1894
      %vm1896 = vweird.f32 %v1733
      %vm1897 = vweird.f32 %v1891
      %vm1898 = vmor %vm1896, %vm1897
      %v1899 = vsel %vm1898, %v1891, %v1895
      %v1900 = vand.u32 2147483647, %v1733
      %vm1901 = vcmp.eq.f32.partialorder %v1900, 8.507059e+37
      %v1902 = vand.u32 %v1733, 2147483648
      %v1903 = vor.u32 1.1754944e-38, %v1902
      %v1904 = vsel %vm1901, %v1903, %v1899
      %v1905 = vmul.f32 1.0, %v1904
      %v1906 = vrcp.pop %v1734
      %v1907 = vmul.f32 %v1734, %v1906
      %v1908 = vsub.f32 1.0, %v1907
      %v1909 = vmul.f32 %v1906, %v1908
      %v1910 = vadd.f32 %v1906, %v1909
      %vm1911 = vweird.f32 %v1734
      %vm1912 = vweird.f32 %v1906
      %vm1913 = vmor %vm1911, %vm1912
      %v1914 = vsel %vm1913, %v1906, %v1910
      %v1915 = vand.u32 2147483647, %v1734
      %vm1916 = vcmp.eq.f32.partialorder %v1915, 8.507059e+37
      %v1917 = vand.u32 %v1734, 2147483648
      %v1918 = vor.u32 1.1754944e-38, %v1917
      %v1919 = vsel %vm1916, %v1918, %v1914
      %v1920 = vmul.f32 1.0, %v1919
      %v1921 = vrcp.pop %v1735
      %v1922 = vmul.f32 %v1735, %v1921
      %v1923 = vsub.f32 1.0, %v1922
      %v1924 = vmul.f32 %v1921, %v1923
      %v1925 = vadd.f32 %v1921, %v1924
      %vm1926 = vweird.f32 %v1735
      %vm1927 = vweird.f32 %v1921
      %vm1928 = vmor %vm1926, %vm1927
      %v1929 = vsel %vm1928, %v1921, %v1925
      %v1930 = vand.u32 2147483647, %v1735
      %vm1931 = vcmp.eq.f32.partialorder %v1930, 8.507059e+37
      %v1932 = vand.u32 %v1735, 2147483648
      %v1933 = vor.u32 1.1754944e-38, %v1932
      %v1934 = vsel %vm1931, %v1933, %v1929
      %v1935 = vmul.f32 1.0, %v1934
      %v1936 = vrcp.pop %v1736
      %v1937 = vmul.f32 %v1736, %v1936
      %v1938 = vsub.f32 1.0, %v1937
      %v1939 = vmul.f32 %v1936, %v1938
      %v1940 = vadd.f32 %v1936, %v1939
      %vm1941 = vweird.f32 %v1736
      %vm1942 = vweird.f32 %v1936
      %vm1943 = vmor %vm1941, %vm1942
      %v1944 = vsel %vm1943, %v1936, %v1940
      %v1945 = vand.u32 2147483647, %v1736
      %vm1946 = vcmp.eq.f32.partialorder %v1945, 8.507059e+37
      %v1947 = vand.u32 %v1736, 2147483648
      %v1948 = vor.u32 1.1754944e-38, %v1947
      %v1949 = vsel %vm1946, %v1948, %v1944
      %v1950 = vmul.f32 1.0, %v1949
      %v1951 = vrcp.pop %v1737
      %v1952 = vmul.f32 %v1737, %v1951
      %v1953 = vsub.f32 1.0, %v1952
      %v1954 = vmul.f32 %v1951, %v1953
      %v1955 = vadd.f32 %v1951, %v1954
      %vm1956 = vweird.f32 %v1737
      %vm1957 = vweird.f32 %v1951
      %vm1958 = vmor %vm1956, %vm1957
      %v1959 = vsel %vm1958, %v1951, %v1955
      %v1960 = vand.u32 2147483647, %v1737
      %vm1961 = vcmp.eq.f32.partialorder %v1960, 8.507059e+37
      %v1962 = vand.u32 %v1737, 2147483648
      %v1963 = vor.u32 1.1754944e-38, %v1962
      %v1964 = vsel %vm1961, %v1963, %v1959
      %v1965 = vmul.f32 1.0, %v1964
      %v1966 = vrcp.pop %v1738
      %v1967 = vmul.f32 %v1738, %v1966
      %v1968 = vsub.f32 1.0, %v1967
      %v1969 = vmul.f32 %v1966, %v1968
      %v1970 = vadd.f32 %v1966, %v1969
      %vm1971 = vweird.f32 %v1738
      %vm1972 = vweird.f32 %v1966
      %vm1973 = vmor %vm1971, %vm1972
      %v1974 = vsel %vm1973, %v1966, %v1970
      %v1975 = vand.u32 2147483647, %v1738
      %vm1976 = vcmp.eq.f32.partialorder %v1975, 8.507059e+37
      %v1977 = vand.u32 %v1738, 2147483648
      %v1978 = vor.u32 1.1754944e-38, %v1977
      %v1979 = vsel %vm1976, %v1978, %v1974
      %v1980 = vmul.f32 1.0, %v1979
      %v1981 = vrcp.pop %v1739
      %v1982 = vmul.f32 %v1739, %v1981
      %v1983 = vsub.f32 1.0, %v1982
      %v1984 = vmul.f32 %v1981, %v1983
      %v1985 = vadd.f32 %v1981, %v1984
      %vm1986 = vweird.f32 %v1739
      %vm1987 = vweird.f32 %v1981
      %vm1988 = vmor %vm1986, %vm1987
      %v1989 = vsel %vm1988, %v1981, %v1985
      %v1990 = vand.u32 2147483647, %v1739
      %vm1991 = vcmp.eq.f32.partialorder %v1990, 8.507059e+37
      %v1992 = vand.u32 %v1739, 2147483648
      %v1993 = vor.u32 1.1754944e-38, %v1992
      %v1994 = vsel %vm1991, %v1993, %v1989
      %v1995 = vmul.f32 1.0, %v1994
      %v1996 = vrcp.pop %v1740
      %v1997 = vmul.f32 %v1740, %v1996
      %v1998 = vsub.f32 1.0, %v1997
      %v1999 = vmul.f32 %v1996, %v1998
      %v2000 = vadd.f32 %v1996, %v1999
      %vm2001 = vweird.f32 %v1740
      %vm2002 = vweird.f32 %v1996
      %vm2003 = vmor %vm2001, %vm2002
      %v2004 = vsel %vm2003, %v1996, %v2000
      %v2005 = vand.u32 2147483647, %v1740
      %vm2006 = vcmp.eq.f32.partialorder %v2005, 8.507059e+37
      %v2007 = vand.u32 %v1740, 2147483648
      %v2008 = vor.u32 1.1754944e-38, %v2007
      %v2009 = vsel %vm2006, %v2008, %v2004
      %v2010 = vmul.f32 1.0, %v2009
      %v2011 = vrcp.pop %v1741
      %v2012 = vmul.f32 %v1741, %v2011
      %v2013 = vsub.f32 1.0, %v2012
      %v2014 = vmul.f32 %v2011, %v2013
      %v2015 = vadd.f32 %v2011, %v2014
      %vm2016 = vweird.f32 %v1741
      %vm2017 = vweird.f32 %v2011
      %vm2018 = vmor %vm2016, %vm2017
      %v2019 = vsel %vm2018, %v2011, %v2015
      %v2020 = vand.u32 2147483647, %v1741
      %vm2021 = vcmp.eq.f32.partialorder %v2020, 8.507059e+37
      %v2022 = vand.u32 %v1741, 2147483648
      %v2023 = vor.u32 1.1754944e-38, %v2022
      %v2024 = vsel %vm2021, %v2023, %v2019
      %v2025 = vmul.f32 1.0, %v2024
      %v2026 = vrcp.pop %v1742
      %v2027 = vmul.f32 %v1742, %v2026
      %v2028 = vsub.f32 1.0, %v2027
      %v2029 = vmul.f32 %v2026, %v2028
      %v2030 = vadd.f32 %v2026, %v2029
      %vm2031 = vweird.f32 %v1742
      %vm2032 = vweird.f32 %v2026
      %vm2033 = vmor %vm2031, %vm2032
      %v2034 = vsel %vm2033, %v2026, %v2030
      %v2035 = vand.u32 2147483647, %v1742
      %vm2036 = vcmp.eq.f32.partialorder %v2035, 8.507059e+37
      %v2037 = vand.u32 %v1742, 2147483648
      %v2038 = vor.u32 1.1754944e-38, %v2037
      %v2039 = vsel %vm2036, %v2038, %v2034
      %v2040 = vmul.f32 1.0, %v2039
      %v2041 = vrcp.pop %v1743
      %v2042 = vmul.f32 %v1743, %v2041
      %v2043 = vsub.f32 1.0, %v2042
      %v2044 = vmul.f32 %v2041, %v2043
      %v2045 = vadd.f32 %v2041, %v2044
      %vm2046 = vweird.f32 %v1743
      %vm2047 = vweird.f32 %v2041
      %vm2048 = vmor %vm2046, %vm2047
      %v2049 = vsel %vm2048, %v2041, %v2045
      %v2050 = vand.u32 2147483647, %v1743
      %vm2051 = vcmp.eq.f32.partialorder %v2050, 8.507059e+37
      %v2052 = vand.u32 %v1743, 2147483648
      %v2053 = vor.u32 1.1754944e-38, %v2052
      %v2054 = vsel %vm2051, %v2053, %v2049
      %v2055 = vmul.f32 1.0, %v2054
      %v2056 = vrcp.pop %v1744
      %v2057 = vmul.f32 %v1744, %v2056
      %v2058 = vsub.f32 1.0, %v2057
      %v2059 = vmul.f32 %v2056, %v2058
      %v2060 = vadd.f32 %v2056, %v2059
      %vm2061 = vweird.f32 %v1744
      %vm2062 = vweird.f32 %v2056
      %vm2063 = vmor %vm2061, %vm2062
      %v2064 = vsel %vm2063, %v2056, %v2060
      %v2065 = vand.u32 2147483647, %v1744
      %vm2066 = vcmp.eq.f32.partialorder %v2065, 8.507059e+37
      %v2067 = vand.u32 %v1744, 2147483648
      %v2068 = vor.u32 1.1754944e-38, %v2067
      %v2069 = vsel %vm2066, %v2068, %v2064
      %v2070 = vmul.f32 1.0, %v2069
      %v2071 = vrcp.pop %v1745
      %v2072 = vmul.f32 %v1745, %v2071
      %v2073 = vsub.f32 1.0, %v2072
      %v2074 = vmul.f32 %v2071, %v2073
      %v2075 = vadd.f32 %v2071, %v2074
      %vm2076 = vweird.f32 %v1745
      %vm2077 = vweird.f32 %v2071
      %vm2078 = vmor %vm2076, %vm2077
      %v2079 = vsel %vm2078, %v2071, %v2075
      %v2080 = vand.u32 2147483647, %v1745
      %vm2081 = vcmp.eq.f32.partialorder %v2080, 8.507059e+37
      %v2082 = vand.u32 %v1745, 2147483648
      %v2083 = vor.u32 1.1754944e-38, %v2082
      %v2084 = vsel %vm2081, %v2083, %v2079
      %v2085 = vmul.f32 1.0, %v2084
      %v2086 = vrcp.pop %v1746
      %v2087 = vmul.f32 %v1746, %v2086
      %v2088 = vsub.f32 1.0, %v2087
      %v2089 = vmul.f32 %v2086, %v2088
      %v2090 = vadd.f32 %v2086, %v2089
      %vm2091 = vweird.f32 %v1746
      %vm2092 = vweird.f32 %v2086
      %vm2093 = vmor %vm2091, %vm2092
      %v2094 = vsel %vm2093, %v2086, %v2090
      %v2095 = vand.u32 2147483647, %v1746
      %vm2096 = vcmp.eq.f32.partialorder %v2095, 8.507059e+37
      %v2097 = vand.u32 %v1746, 2147483648
      %v2098 = vor.u32 1.1754944e-38, %v2097
      %v2099 = vsel %vm2096, %v2098, %v2094
      %v2100 = vmul.f32 1.0, %v2099
      %v2101 = vrcp.pop %v1747
      %v2102 = vmul.f32 %v1747, %v2101
      %v2103 = vsub.f32 1.0, %v2102
      %v2104 = vmul.f32 %v2101, %v2103
      %v2105 = vadd.f32 %v2101, %v2104
      %vm2106 = vweird.f32 %v1747
      %vm2107 = vweird.f32 %v2101
      %vm2108 = vmor %vm2106, %vm2107
      %v2109 = vsel %vm2108, %v2101, %v2105
      %v2110 = vand.u32 2147483647, %v1747
      %vm2111 = vcmp.eq.f32.partialorder %v2110, 8.507059e+37
      %v2112 = vand.u32 %v1747, 2147483648
      %v2113 = vor.u32 1.1754944e-38, %v2112
      %v2114 = vsel %vm2111, %v2113, %v2109
      %v2115 = vmul.f32 1.0, %v2114
      %v2116 = vrcp.pop %v1748
      %v2117 = vmul.f32 %v1748, %v2116
      %v2118 = vsub.f32 1.0, %v2117
      %v2119 = vmul.f32 %v2116, %v2118
      %v2120 = vadd.f32 %v2116, %v2119
      %vm2121 = vweird.f32 %v1748
      %vm2122 = vweird.f32 %v2116
      %vm2123 = vmor %vm2121, %vm2122
      %v2124 = vsel %vm2123, %v2116, %v2120
      %v2125 = vand.u32 2147483647, %v1748
      %vm2126 = vcmp.eq.f32.partialorder %v2125, 8.507059e+37
      %v2127 = vand.u32 %v1748, 2147483648
      %v2128 = vor.u32 1.1754944e-38, %v2127
      %v2129 = vsel %vm2126, %v2128, %v2124
      %v2130 = vmul.f32 1.0, %v2129
      %v2131 = vrcp.pop %v1749
      %v2132 = vmul.f32 %v1749, %v2131
      %v2133 = vsub.f32 1.0, %v2132
      %v2134 = vmul.f32 %v2131, %v2133
      %v2135 = vadd.f32 %v2131, %v2134
      %vm2136 = vweird.f32 %v1749
      %vm2137 = vweird.f32 %v2131
      %vm2138 = vmor %vm2136, %vm2137
      %v2139 = vsel %vm2138, %v2131, %v2135
      %v2140 = vand.u32 2147483647, %v1749
      %vm2141 = vcmp.eq.f32.partialorder %v2140, 8.507059e+37
      %v2142 = vand.u32 %v1749, 2147483648
      %v2143 = vor.u32 1.1754944e-38, %v2142
      %v2144 = vsel %vm2141, %v2143, %v2139
      %v2145 = vmul.f32 1.0, %v2144
      %v2146 = vrcp.pop %v1750
      %v2147 = vmul.f32 %v1750, %v2146
      %v2148 = vsub.f32 1.0, %v2147
      %v2149 = vmul.f32 %v2146, %v2148
      %v2150 = vadd.f32 %v2146, %v2149
      %vm2151 = vweird.f32 %v1750
      %vm2152 = vweird.f32 %v2146
      %vm2153 = vmor %vm2151, %vm2152
      %v2154 = vsel %vm2153, %v2146, %v2150
      %v2155 = vand.u32 2147483647, %v1750
      %vm2156 = vcmp.eq.f32.partialorder %v2155, 8.507059e+37
      %v2157 = vand.u32 %v1750, 2147483648
      %v2158 = vor.u32 1.1754944e-38, %v2157
      %v2159 = vsel %vm2156, %v2158, %v2154
      %v2160 = vmul.f32 1.0, %v2159
      %v2161 = vrcp.pop %v1751
      %v2162 = vmul.f32 %v1751, %v2161
      %v2163 = vsub.f32 1.0, %v2162
      %v2164 = vmul.f32 %v2161, %v2163
      %v2165 = vadd.f32 %v2161, %v2164
      %vm2166 = vweird.f32 %v1751
      %vm2167 = vweird.f32 %v2161
      %vm2168 = vmor %vm2166, %vm2167
      %v2169 = vsel %vm2168, %v2161, %v2165
      %v2170 = vand.u32 2147483647, %v1751
      %vm2171 = vcmp.eq.f32.partialorder %v2170, 8.507059e+37
      %v2172 = vand.u32 %v1751, 2147483648
      %v2173 = vor.u32 1.1754944e-38, %v2172
      %v2174 = vsel %vm2171, %v2173, %v2169
      %v2175 = vmul.f32 1.0, %v2174
      %v2176 = vrcp.pop %v1752
      %v2177 = vmul.f32 %v1752, %v2176
      %v2178 = vsub.f32 1.0, %v2177
      %v2179 = vmul.f32 %v2176, %v2178
      %v2180 = vadd.f32 %v2176, %v2179
      %vm2181 = vweird.f32 %v1752
      %vm2182 = vweird.f32 %v2176
      %vm2183 = vmor %vm2181, %vm2182
      %v2184 = vsel %vm2183, %v2176, %v2180
      %v2185 = vand.u32 2147483647, %v1752
      %vm2186 = vcmp.eq.f32.partialorder %v2185, 8.507059e+37
      %v2187 = vand.u32 %v1752, 2147483648
      %v2188 = vor.u32 1.1754944e-38, %v2187
      %v2189 = vsel %vm2186, %v2188, %v2184
      %v2190 = vmul.f32 1.0, %v2189
      %v2191 = vrcp.pop %v1753
      %v2192 = vmul.f32 %v1753, %v2191
      %v2193 = vsub.f32 1.0, %v2192
      %v2194 = vmul.f32 %v2191, %v2193
      %v2195 = vadd.f32 %v2191, %v2194
      %vm2196 = vweird.f32 %v1753
      %vm2197 = vweird.f32 %v2191
      %vm2198 = vmor %vm2196, %vm2197
      %v2199 = vsel %vm2198, %v2191, %v2195
      %v2200 = vand.u32 2147483647, %v1753
      %vm2201 = vcmp.eq.f32.partialorder %v2200, 8.507059e+37
      %v2202 = vand.u32 %v1753, 2147483648
      %v2203 = vor.u32 1.1754944e-38, %v2202
      %v2204 = vsel %vm2201, %v2203, %v2199
      %v2205 = vmul.f32 1.0, %v2204
      %v2206 = vrcp.pop %v1754
      %v2207 = vmul.f32 %v1754, %v2206
      %v2208 = vsub.f32 1.0, %v2207
      %v2209 = vmul.f32 %v2206, %v2208
      %v2210 = vadd.f32 %v2206, %v2209
      %vm2211 = vweird.f32 %v1754
      %vm2212 = vweird.f32 %v2206
      %vm2213 = vmor %vm2211, %vm2212
      %v2214 = vsel %vm2213, %v2206, %v2210
      %v2215 = vand.u32 2147483647, %v1754
      %vm2216 = vcmp.eq.f32.partialorder %v2215, 8.507059e+37
      %v2217 = vand.u32 %v1754, 2147483648
      %v2218 = vor.u32 1.1754944e-38, %v2217
      %v2219 = vsel %vm2216, %v2218, %v2214
      %v2220 = vmul.f32 1.0, %v2219
      %v2221 = vrcp.pop %v1755
      %v2222 = vmul.f32 %v1755, %v2221
      %v2223 = vsub.f32 1.0, %v2222
      %v2224 = vmul.f32 %v2221, %v2223
      %v2225 = vadd.f32 %v2221, %v2224
      %vm2226 = vweird.f32 %v1755
      %vm2227 = vweird.f32 %v2221
      %vm2228 = vmor %vm2226, %vm2227
      %v2229 = vsel %vm2228, %v2221, %v2225
      %v2230 = vand.u32 2147483647, %v1755
      %vm2231 = vcmp.eq.f32.partialorder %v2230, 8.507059e+37
      %v2232 = vand.u32 %v1755, 2147483648
      %v2233 = vor.u32 1.1754944e-38, %v2232
      %v2234 = vsel %vm2231, %v2233, %v2229
      %v2235 = vmul.f32 1.0, %v2234
      %v2236 = vmul.f32 %v1596, %v1770
      %v2237 = vmul.f32 %v1597, %v1785
      %v2238 = vmul.f32 %v1598, %v1800
      %v2239 = vmul.f32 %v1599, %v1815
      %v2240 = vmul.f32 %v1600, %v1830
      %v2241 = vmul.f32 %v1601, %v1845
      %v2242 = vmul.f32 %v1602, %v1860
      %v2243 = vmul.f32 %v1603, %v1875
      %v2244 = vmul.f32 %v1604, %v1890
      %v2245 = vmul.f32 %v1605, %v1905
      %v2246 = vmul.f32 %v1606, %v1920
      %v2247 = vmul.f32 %v1607, %v1935
      %v2248 = vmul.f32 %v1608, %v1950
      %v2249 = vmul.f32 %v1609, %v1965
      %v2250 = vmul.f32 %v1610, %v1980
      %v2251 = vmul.f32 %v1611, %v1995
      %v2252 = vmul.f32 %v1612, %v2010
      %v2253 = vmul.f32 %v1613, %v2025
      %v2254 = vmul.f32 %v1614, %v2040
      %v2255 = vmul.f32 %v1615, %v2055
      %v2256 = vmul.f32 %v1616, %v2070
      %v2257 = vmul.f32 %v1617, %v2085
      %v2258 = vmul.f32 %v1618, %v2100
      %v2259 = vmul.f32 %v1619, %v2115
      %v2260 = vmul.f32 %v1620, %v2130
      %v2261 = vmul.f32 %v1621, %v2145
      %v2262 = vmul.f32 %v1622, %v2160
      %v2263 = vmul.f32 %v1623, %v2175
      %v2264 = vmul.f32 %v1624, %v2190
      %v2265 = vmul.f32 %v1625, %v2205
      %v2266 = vmul.f32 %v1626, %v2220
      %v2267 = vmul.f32 %v1627, %v2235
      %vm2268 = vcmask 27648
      %2269 = vst.msk [vmem:[#allocation2] sm:$0xf] %vm2268, 0
      %2270 = vst.msk [vmem:[#allocation2 + $0x4] sm:$0xf] %vm2268, 0
      %2271 = vst.msk [vmem:[#allocation2 + $0x88] sm:$0xf] %vm2268, 0
      %2272 = vst.msk [vmem:[#allocation2 + $0x8c] sm:$0xf] %vm2268, 0
      %v2273 = vpack.c.bf16 %v2236, %v2236
      %v2274 = vpack.c.bf16 %v2237, %v2237
      %v2275 = vpack.c.bf16 %v2238, %v2238
      %v2276 = vpack.c.bf16 %v2239, %v2239
      %v2277 = vpack.c.bf16 %v2240, %v2240
      %v2278 = vpack.c.bf16 %v2241, %v2241
      %v2279 = vpack.c.bf16 %v2242, %v2242
      %v2280 = vpack.c.bf16 %v2243, %v2243
      %v2281 = vpack.c.bf16 %v2244, %v2244
      %v2282 = vpack.c.bf16 %v2245, %v2245
      %v2283 = vpack.c.bf16 %v2246, %v2246
      %v2284 = vpack.c.bf16 %v2247, %v2247
      %v2285 = vpack.c.bf16 %v2248, %v2248
      %v2286 = vpack.c.bf16 %v2249, %v2249
      %v2287 = vpack.c.bf16 %v2250, %v2250
      %v2288 = vpack.c.bf16 %v2251, %v2251
      %v2289 = vpack.c.bf16 %v2252, %v2252
      %v2290 = vpack.c.bf16 %v2253, %v2253
      %v2291 = vpack.c.bf16 %v2254, %v2254
      %v2292 = vpack.c.bf16 %v2255, %v2255
      %v2293 = vpack.c.bf16 %v2256, %v2256
      %v2294 = vpack.c.bf16 %v2257, %v2257
      %v2295 = vpack.c.bf16 %v2258, %v2258
      %v2296 = vpack.c.bf16 %v2259, %v2259
      %v2297 = vpack.c.bf16 %v2260, %v2260
      %v2298 = vpack.c.bf16 %v2261, %v2261
      %v2299 = vpack.c.bf16 %v2262, %v2262
      %v2300 = vpack.c.bf16 %v2263, %v2263
      %v2301 = vpack.c.bf16 %v2264, %v2264
      %v2302 = vpack.c.bf16 %v2265, %v2265
      %v2303 = vpack.c.bf16 %v2266, %v2266
      %v2304 = vpack.c.bf16 %v2267, %v2267
      %2305 = vst.msk [vmem:[#allocation2 + $0x8] sm:$0xf] %vm2268, %v2273
      %2306 = vst.msk [vmem:[#allocation2 + $0xc] sm:$0xf] %vm2268, %v2274
      %2307 = vst.msk [vmem:[#allocation2 + $0x10] sm:$0xf] %vm2268, %v2275
      %2308 = vst.msk [vmem:[#allocation2 + $0x14] sm:$0xf] %vm2268, %v2276
      %2309 = vst.msk [vmem:[#allocation2 + $0x18] sm:$0xf] %vm2268, %v2277
      %2310 = vst.msk [vmem:[#allocation2 + $0x1c] sm:$0xf] %vm2268, %v2278
      %2311 = vst.msk [vmem:[#allocation2 + $0x20] sm:$0xf] %vm2268, %v2279
      %2312 = vst.msk [vmem:[#allocation2 + $0x24] sm:$0xf] %vm2268, %v2280
      %2313 = vst.msk [vmem:[#allocation2 + $0x28] sm:$0xf] %vm2268, %v2281
      %2314 = vst.msk [vmem:[#allocation2 + $0x2c] sm:$0xf] %vm2268, %v2282
      %2315 = vst.msk [vmem:[#allocation2 + $0x30] sm:$0xf] %vm2268, %v2283
      %2316 = vst.msk [vmem:[#allocation2 + $0x34] sm:$0xf] %vm2268, %v2284
      %2317 = vst.msk [vmem:[#allocation2 + $0x38] sm:$0xf] %vm2268, %v2285
      %2318 = vst.msk [vmem:[#allocation2 + $0x3c] sm:$0xf] %vm2268, %v2286
      %2319 = vst.msk [vmem:[#allocation2 + $0x40] sm:$0xf] %vm2268, %v2287
      %2320 = vst.msk [vmem:[#allocation2 + $0x44] sm:$0xf] %vm2268, %v2288
      %2321 = vst.msk [vmem:[#allocation2 + $0x48] sm:$0xf] %vm2268, %v2289
      %2322 = vst.msk [vmem:[#allocation2 + $0x4c] sm:$0xf] %vm2268, %v2290
      %2323 = vst.msk [vmem:[#allocation2 + $0x50] sm:$0xf] %vm2268, %v2291
      %2324 = vst.msk [vmem:[#allocation2 + $0x54] sm:$0xf] %vm2268, %v2292
      %2325 = vst.msk [vmem:[#allocation2 + $0x58] sm:$0xf] %vm2268, %v2293
      %2326 = vst.msk [vmem:[#allocation2 + $0x5c] sm:$0xf] %vm2268, %v2294
      %2327 = vst.msk [vmem:[#allocation2 + $0x60] sm:$0xf] %vm2268, %v2295
      %2328 = vst.msk [vmem:[#allocation2 + $0x64] sm:$0xf] %vm2268, %v2296
      %2329 = vst.msk [vmem:[#allocation2 + $0x68] sm:$0xf] %vm2268, %v2297
      %2330 = vst.msk [vmem:[#allocation2 + $0x6c] sm:$0xf] %vm2268, %v2298
      %2331 = vst.msk [vmem:[#allocation2 + $0x70] sm:$0xf] %vm2268, %v2299
      %2332 = vst.msk [vmem:[#allocation2 + $0x74] sm:$0xf] %vm2268, %v2300
      %2333 = vst.msk [vmem:[#allocation2 + $0x78] sm:$0xf] %vm2268, %v2301
      %2334 = vst.msk [vmem:[#allocation2 + $0x7c] sm:$0xf] %vm2268, %v2302
      %2335 = vst.msk [vmem:[#allocation2 + $0x80] sm:$0xf] %vm2268, %v2303
      %2336 = vst.msk [vmem:[#allocation2 + $0x84] sm:$0xf] %vm2268, %v2304
      %v2337 = vld [vmem:[#allocation2] sm:$0xf]
      %v2338 = vld [vmem:[#allocation2 + $0x4] sm:$0xf]
      %v2339 = vld [vmem:[#allocation2 + $0x8] sm:$0xf]
      %v2340 = vld [vmem:[#allocation2 + $0xc] sm:$0xf]
      %v2341 = vld [vmem:[#allocation2 + $0x10] sm:$0xf]
      %v2342 = vld [vmem:[#allocation2 + $0x14] sm:$0xf]
      %v2343 = vld [vmem:[#allocation2 + $0x18] sm:$0xf]
      %v2344 = vld [vmem:[#allocation2 + $0x1c] sm:$0xf]
      %v2345 = vld [vmem:[#allocation2 + $0x20] sm:$0xf]
      %v2346 = vld [vmem:[#allocation2 + $0x24] sm:$0xf]
      %v2347 = vld [vmem:[#allocation2 + $0x28] sm:$0xf]
      %v2348 = vld [vmem:[#allocation2 + $0x2c] sm:$0xf]
      %v2349 = vld [vmem:[#allocation2 + $0x30] sm:$0xf]
      %v2350 = vld [vmem:[#allocation2 + $0x34] sm:$0xf]
      %v2351 = vld [vmem:[#allocation2 + $0x38] sm:$0xf]
      %v2352 = vld [vmem:[#allocation2 + $0x3c] sm:$0xf]
      %v2353 = vld [vmem:[#allocation2 + $0x40] sm:$0xf]
      %v2354 = vld [vmem:[#allocation2 + $0x44] sm:$0xf]
      %v2355 = vld [vmem:[#allocation2 + $0x48] sm:$0xf]
      %v2356 = vld [vmem:[#allocation2 + $0x4c] sm:$0xf]
      %v2357 = vld [vmem:[#allocation2 + $0x50] sm:$0xf]
      %v2358 = vld [vmem:[#allocation2 + $0x54] sm:$0xf]
      %v2359 = vld [vmem:[#allocation2 + $0x58] sm:$0xf]
      %v2360 = vld [vmem:[#allocation2 + $0x5c] sm:$0xf]
      %v2361 = vld [vmem:[#allocation2 + $0x60] sm:$0xf]
      %v2362 = vld [vmem:[#allocation2 + $0x64] sm:$0xf]
      %v2363 = vld [vmem:[#allocation2 + $0x68] sm:$0xf]
      %v2364 = vld [vmem:[#allocation2 + $0x6c] sm:$0xf]
      %v2365 = vld [vmem:[#allocation2 + $0x70] sm:$0xf]
      %v2366 = vld [vmem:[#allocation2 + $0x74] sm:$0xf]
      %v2367 = vld [vmem:[#allocation2 + $0x78] sm:$0xf]
      %v2368 = vld [vmem:[#allocation2 + $0x7c] sm:$0xf]
      %v2369 = vld [vmem:[%s2] sm:$0x3]
      %v2370 = vld [vmem:[#allocation2 + $0x80] sm:$0xf]
      %v2371 = vld [vmem:[#allocation2 + $0x84] sm:$0xf]
      %s2372 = scalar_lea.vmem %s2, 2
      %v2373 = vld [vmem:[%s2372] sm:$0x3]
      %v2406 = vunpack.c.l.b16 %v2339
      %v2407 = vunpack.c.l.b16 %v2340
      %v2408 = vunpack.c.l.b16 %v2341
      %v2409 = vunpack.c.l.b16 %v2342
      %v2410 = vunpack.c.l.b16 %v2343
      %v2411 = vunpack.c.l.b16 %v2344
      %v2412 = vunpack.c.l.b16 %v2345
      %v2413 = vunpack.c.l.b16 %v2346
      %v2414 = vunpack.c.l.b16 %v2347
      %v2415 = vunpack.c.l.b16 %v2348
      %v2416 = vunpack.c.l.b16 %v2349
      %v2417 = vunpack.c.l.b16 %v2350
      %v2418 = vunpack.c.l.b16 %v2351
      %v2419 = vunpack.c.l.b16 %v2352
      %v2420 = vunpack.c.l.b16 %v2353
      %v2421 = vunpack.c.l.b16 %v2354
      %v2422 = vunpack.c.l.b16 %v2355
      %v2423 = vunpack.c.l.b16 %v2356
      %v2424 = vunpack.c.l.b16 %v2357
      %v2425 = vunpack.c.l.b16 %v2358
      %v2426 = vunpack.c.l.b16 %v2359
      %v2427 = vunpack.c.l.b16 %v2360
      %v2428 = vunpack.c.l.b16 %v2361
      %v2429 = vunpack.c.l.b16 %v2362
      %v2430 = vunpack.c.l.b16 %v2363
      %v2431 = vunpack.c.l.b16 %v2364
      %v2432 = vunpack.c.l.b16 %v2365
      %v2433 = vunpack.c.l.b16 %v2366
      %v2434 = vunpack.c.l.b16 %v2367
      %v2435 = vunpack.c.l.b16 %v2368
      %v2436 = vunpack.c.l.b16 %v2370
      %v2437 = vunpack.c.l.b16 %v2371
      %v2438 = vpack.c.b16 %v2407, %v2406
      %v2439 = vpack.c.b16 %v2409, %v2408
      %v2440 = vpack.c.b16 %v2411, %v2410
      %v2441 = vpack.c.b16 %v2413, %v2412
      %v2442 = vpack.c.b16 %v2415, %v2414
      %v2443 = vpack.c.b16 %v2417, %v2416
      %v2444 = vpack.c.b16 %v2419, %v2418
      %v2445 = vpack.c.b16 %v2421, %v2420
      %v2446 = vpack.c.b16 %v2423, %v2422
      %v2447 = vpack.c.b16 %v2425, %v2424
      %v2448 = vpack.c.b16 %v2427, %v2426
      %v2449 = vpack.c.b16 %v2429, %v2428
      %v2450 = vpack.c.b16 %v2431, %v2430
      %v2451 = vpack.c.b16 %v2433, %v2432
      %v2452 = vpack.c.b16 %v2435, %v2434
      %v2453 = vpack.c.b16 %v2437, %v2436
      %v2455 = vsel %vm924, %v2438, 0
      %v2458 = vsel %vm924, %v2439, 0
      %v2461 = vsel %vm924, %v2440, 0
      %v2464 = vsel %vm924, %v2441, 0
      %v2467 = vsel %vm924, %v2442, 0
      %v2470 = vsel %vm924, %v2443, 0
      %v2473 = vsel %vm924, %v2444, 0
      %v2476 = vsel %vm924, %v2445, 0
      %v2479 = vsel %vm924, %v2446, 0
      %v2482 = vsel %vm924, %v2447, 0
      %v2485 = vsel %vm924, %v2448, 0
      %v2488 = vsel %vm924, %v2449, 0
      %v2491 = vsel %vm924, %v2450, 0
      %v2494 = vsel %vm924, %v2451, 0
      %v2497 = vsel %vm924, %v2452, 0
      %v2500 = vsel %vm924, %v2453, 0
      %v2503 = vsel %vm973, %v2373, 0
      %2505 = vmatpush.bf16.msra.mxu0 0
      %2506 = vmatpush.bf16.msra.mxu0 0
      %2507 = vmatpush.bf16.msra.mxu0 0
      %2508 = vmatpush.bf16.msra.mxu0 0
      %2509 = vmatpush.bf16.msra.mxu0 0
      %2510 = vmatpush.bf16.msra.mxu0 0
      %2511 = vmatpush.bf16.msra.mxu0 0
      %2512 = vmatpush.bf16.msra.mxu0 %v2503
      %2513 = vmatmul.bf16.gmra.mxu0 %v2455
      %v2514 = vpop.f32.mrf.mxu0
      %v2515 = vadd.f32 0.0, %v2514
      %v2516 = vpop.f32.mrf.mxu0
      %v2517 = vadd.f32 0.0, %v2516
      %2518 = vmatmul.bf16.gmra.mxu0 %v2458
      %v2519 = vpop.f32.mrf.mxu0
      %v2520 = vadd.f32 0.0, %v2519
      %v2521 = vpop.f32.mrf.mxu0
      %v2522 = vadd.f32 0.0, %v2521
      %2523 = vmatmul.bf16.gmra.mxu0 %v2461
      %v2524 = vpop.f32.mrf.mxu0
      %v2525 = vadd.f32 0.0, %v2524
      %v2526 = vpop.f32.mrf.mxu0
      %v2527 = vadd.f32 0.0, %v2526
      %2528 = vmatmul.bf16.gmra.mxu0 %v2464
      %v2529 = vpop.f32.mrf.mxu0
      %v2530 = vadd.f32 0.0, %v2529
      %v2531 = vpop.f32.mrf.mxu0
      %v2532 = vadd.f32 0.0, %v2531
      %2533 = vmatmul.bf16.gmra.mxu0 %v2467
      %v2534 = vpop.f32.mrf.mxu0
      %v2535 = vadd.f32 0.0, %v2534
      %v2536 = vpop.f32.mrf.mxu0
      %v2537 = vadd.f32 0.0, %v2536
      %2538 = vmatmul.bf16.gmra.mxu0 %v2470
      %v2539 = vpop.f32.mrf.mxu0
      %v2540 = vadd.f32 0.0, %v2539
      %v2541 = vpop.f32.mrf.mxu0
      %v2542 = vadd.f32 0.0, %v2541
      %2543 = vmatmul.bf16.gmra.mxu0 %v2473
      %v2544 = vpop.f32.mrf.mxu0
      %v2545 = vadd.f32 0.0, %v2544
      %v2546 = vpop.f32.mrf.mxu0
      %v2547 = vadd.f32 0.0, %v2546
      %2548 = vmatmul.bf16.gmra.mxu0 %v2476
      %v2549 = vpop.f32.mrf.mxu0
      %v2550 = vadd.f32 0.0, %v2549
      %v2551 = vpop.f32.mrf.mxu0
      %v2552 = vadd.f32 0.0, %v2551
      %2553 = vmatmul.bf16.gmra.mxu0 %v2479
      %v2554 = vpop.f32.mrf.mxu0
      %v2555 = vadd.f32 0.0, %v2554
      %v2556 = vpop.f32.mrf.mxu0
      %v2557 = vadd.f32 0.0, %v2556
      %2558 = vmatmul.bf16.gmra.mxu0 %v2482
      %v2559 = vpop.f32.mrf.mxu0
      %v2560 = vadd.f32 0.0, %v2559
      %v2561 = vpop.f32.mrf.mxu0
      %v2562 = vadd.f32 0.0, %v2561
      %2563 = vmatmul.bf16.gmra.mxu0 %v2485
      %v2564 = vpop.f32.mrf.mxu0
      %v2565 = vadd.f32 0.0, %v2564
      %v2566 = vpop.f32.mrf.mxu0
      %v2567 = vadd.f32 0.0, %v2566
      %2568 = vmatmul.bf16.gmra.mxu0 %v2488
      %v2569 = vpop.f32.mrf.mxu0
      %v2570 = vadd.f32 0.0, %v2569
      %v2571 = vpop.f32.mrf.mxu0
      %v2572 = vadd.f32 0.0, %v2571
      %2573 = vmatmul.bf16.gmra.mxu0 %v2491
      %v2574 = vpop.f32.mrf.mxu0
      %v2575 = vadd.f32 0.0, %v2574
      %v2576 = vpop.f32.mrf.mxu0
      %v2577 = vadd.f32 0.0, %v2576
      %2578 = vmatmul.bf16.gmra.mxu0 %v2494
      %v2579 = vpop.f32.mrf.mxu0
      %v2580 = vadd.f32 0.0, %v2579
      %v2581 = vpop.f32.mrf.mxu0
      %v2582 = vadd.f32 0.0, %v2581
      %2583 = vmatmul.bf16.gmra.mxu0 %v2497
      %v2584 = vpop.f32.mrf.mxu0
      %v2585 = vadd.f32 0.0, %v2584
      %v2586 = vpop.f32.mrf.mxu0
      %v2587 = vadd.f32 0.0, %v2586
      %2588 = vmatmul.bf16.gmra.mxu0 %v2500
      %v2589 = vpop.f32.mrf.mxu0
      %v2590 = vadd.f32 0.0, %v2589
      %v2591 = vpop.f32.mrf.mxu0
      %v2592 = vadd.f32 0.0, %v2591
      %2593 = vdwg.mxu0
      %v2596 = vunpack.c.l.b16 %v2337
      %v2597 = vunpack.c.l.b16 %v2338
      %v2598 = vpack.c.b16 %v2597, %v2596
      %v2600 = vsel %vm924, %v2598, 0
      %v2603 = vsel %vm973, %v2369, 0
      %2605 = vmatpush.bf16.msra.mxu0 0
      %2606 = vmatpush.bf16.msra.mxu0 0
      %2607 = vmatpush.bf16.msra.mxu0 0
      %2608 = vmatpush.bf16.msra.mxu0 0
      %2609 = vmatpush.bf16.msra.mxu0 0
      %2610 = vmatpush.bf16.msra.mxu0 0
      %2611 = vmatpush.bf16.msra.mxu0 0
      %2612 = vmatpush.bf16.msra.mxu0 %v2603
      %2613 = vmatmul.bf16.gmra.mxu0 %v2600
      %v2614 = vpop.f32.mrf.mxu0
      %v2615 = vadd.f32 %v2515, %v2614
      %v2616 = vpop.f32.mrf.mxu0
      %v2617 = vadd.f32 %v2517, %v2616
      %2618 = vmatmul.bf16.gmra.mxu0 %v2455
      %v2619 = vpop.f32.mrf.mxu0
      %v2620 = vadd.f32 %v2520, %v2619
      %v2621 = vpop.f32.mrf.mxu0
      %v2622 = vadd.f32 %v2522, %v2621
      %2623 = vmatmul.bf16.gmra.mxu0 %v2458
      %v2624 = vpop.f32.mrf.mxu0
      %v2625 = vadd.f32 %v2525, %v2624
      %v2626 = vpop.f32.mrf.mxu0
      %v2627 = vadd.f32 %v2527, %v2626
      %2628 = vmatmul.bf16.gmra.mxu0 %v2461
      %v2629 = vpop.f32.mrf.mxu0
      %v2630 = vadd.f32 %v2530, %v2629
      %v2631 = vpop.f32.mrf.mxu0
      %v2632 = vadd.f32 %v2532, %v2631
      %2633 = vmatmul.bf16.gmra.mxu0 %v2464
      %v2634 = vpop.f32.mrf.mxu0
      %v2635 = vadd.f32 %v2535, %v2634
      %v2636 = vpop.f32.mrf.mxu0
      %v2637 = vadd.f32 %v2537, %v2636
      %2638 = vmatmul.bf16.gmra.mxu0 %v2467
      %v2639 = vpop.f32.mrf.mxu0
      %v2640 = vadd.f32 %v2540, %v2639
      %v2641 = vpop.f32.mrf.mxu0
      %v2642 = vadd.f32 %v2542, %v2641
      %2643 = vmatmul.bf16.gmra.mxu0 %v2470
      %v2644 = vpop.f32.mrf.mxu0
      %v2645 = vadd.f32 %v2545, %v2644
      %v2646 = vpop.f32.mrf.mxu0
      %v2647 = vadd.f32 %v2547, %v2646
      %2648 = vmatmul.bf16.gmra.mxu0 %v2473
      %v2649 = vpop.f32.mrf.mxu0
      %v2650 = vadd.f32 %v2550, %v2649
      %v2651 = vpop.f32.mrf.mxu0
      %v2652 = vadd.f32 %v2552, %v2651
      %2653 = vmatmul.bf16.gmra.mxu0 %v2476
      %v2654 = vpop.f32.mrf.mxu0
      %v2655 = vadd.f32 %v2555, %v2654
      %v2656 = vpop.f32.mrf.mxu0
      %v2657 = vadd.f32 %v2557, %v2656
      %2658 = vmatmul.bf16.gmra.mxu0 %v2479
      %v2659 = vpop.f32.mrf.mxu0
      %v2660 = vadd.f32 %v2560, %v2659
      %v2661 = vpop.f32.mrf.mxu0
      %v2662 = vadd.f32 %v2562, %v2661
      %2663 = vmatmul.bf16.gmra.mxu0 %v2482
      %v2664 = vpop.f32.mrf.mxu0
      %v2665 = vadd.f32 %v2565, %v2664
      %v2666 = vpop.f32.mrf.mxu0
      %v2667 = vadd.f32 %v2567, %v2666
      %2668 = vmatmul.bf16.gmra.mxu0 %v2485
      %v2669 = vpop.f32.mrf.mxu0
      %v2670 = vadd.f32 %v2570, %v2669
      %v2671 = vpop.f32.mrf.mxu0
      %v2672 = vadd.f32 %v2572, %v2671
      %2673 = vmatmul.bf16.gmra.mxu0 %v2488
      %v2674 = vpop.f32.mrf.mxu0
      %v2675 = vadd.f32 %v2575, %v2674
      %v2676 = vpop.f32.mrf.mxu0
      %v2677 = vadd.f32 %v2577, %v2676
      %2678 = vmatmul.bf16.gmra.mxu0 %v2491
      %v2679 = vpop.f32.mrf.mxu0
      %v2680 = vadd.f32 %v2580, %v2679
      %v2681 = vpop.f32.mrf.mxu0
      %v2682 = vadd.f32 %v2582, %v2681
      %2683 = vmatmul.bf16.gmra.mxu0 %v2494
      %v2684 = vpop.f32.mrf.mxu0
      %v2685 = vadd.f32 %v2585, %v2684
      %v2686 = vpop.f32.mrf.mxu0
      %v2687 = vadd.f32 %v2587, %v2686
      %2688 = vmatmul.bf16.gmra.mxu0 %v2497
      %v2689 = vpop.f32.mrf.mxu0
      %v2690 = vadd.f32 %v2590, %v2689
      %v2691 = vpop.f32.mrf.mxu0
      %v2692 = vadd.f32 %v2592, %v2691
      %2693 = vdwg.mxu0
      %v2694 = vld [vmem:[#allocation2 + $0x10] sm:$0xf]
      %v2695 = vld [vmem:[#allocation2 + $0x14] sm:$0xf]
      %v2696 = vld [vmem:[#allocation2 + $0x18] sm:$0xf]
      %v2697 = vld [vmem:[#allocation2 + $0x1c] sm:$0xf]
      %v2698 = vld [vmem:[#allocation2 + $0x20] sm:$0xf]
      %v2699 = vld [vmem:[#allocation2 + $0x24] sm:$0xf]
      %v2700 = vld [vmem:[#allocation2 + $0x28] sm:$0xf]
      %v2701 = vld [vmem:[#allocation2 + $0x2c] sm:$0xf]
      %v2702 = vld [vmem:[#allocation2 + $0x30] sm:$0xf]
      %v2703 = vld [vmem:[#allocation2 + $0x34] sm:$0xf]
      %v2704 = vld [vmem:[#allocation2 + $0x38] sm:$0xf]
      %v2705 = vld [vmem:[#allocation2 + $0x3c] sm:$0xf]
      %v2706 = vld [vmem:[#allocation2 + $0x40] sm:$0xf]
      %v2707 = vld [vmem:[#allocation2 + $0x44] sm:$0xf]
      %v2708 = vld [vmem:[#allocation2 + $0x48] sm:$0xf]
      %v2709 = vld [vmem:[#allocation2 + $0x4c] sm:$0xf]
      %v2710 = vld [vmem:[#allocation2 + $0x50] sm:$0xf]
      %v2711 = vld [vmem:[#allocation2 + $0x54] sm:$0xf]
      %v2712 = vld [vmem:[#allocation2 + $0x58] sm:$0xf]
      %v2713 = vld [vmem:[#allocation2 + $0x5c] sm:$0xf]
      %v2714 = vld [vmem:[#allocation2 + $0x60] sm:$0xf]
      %v2715 = vld [vmem:[#allocation2 + $0x64] sm:$0xf]
      %v2716 = vld [vmem:[#allocation2 + $0x68] sm:$0xf]
      %v2717 = vld [vmem:[#allocation2 + $0x6c] sm:$0xf]
      %v2718 = vld [vmem:[#allocation2 + $0x70] sm:$0xf]
      %v2719 = vld [vmem:[#allocation2 + $0x74] sm:$0xf]
      %v2720 = vld [vmem:[#allocation2 + $0x78] sm:$0xf]
      %v2721 = vld [vmem:[#allocation2 + $0x7c] sm:$0xf]
      %v2722 = vld [vmem:[#allocation2 + $0x80] sm:$0xf]
      %v2723 = vld [vmem:[#allocation2 + $0x84] sm:$0xf]
      %v2724 = vld [vmem:[#allocation2 + $0x88] sm:$0xf]
      %v2725 = vld [vmem:[#allocation2 + $0x8c] sm:$0xf]
      %s2726 = scalar_lea.vmem %s2, 4
      %v2727 = vld [vmem:[%s2726] sm:$0x3]
      %v2760 = vunpack.c.l.b16 %v2694
      %v2761 = vunpack.c.l.b16 %v2695
      %v2762 = vunpack.c.l.b16 %v2696
      %v2763 = vunpack.c.l.b16 %v2697
      %v2764 = vunpack.c.l.b16 %v2698
      %v2765 = vunpack.c.l.b16 %v2699
      %v2766 = vunpack.c.l.b16 %v2700
      %v2767 = vunpack.c.l.b16 %v2701
      %v2768 = vunpack.c.l.b16 %v2702
      %v2769 = vunpack.c.l.b16 %v2703
      %v2770 = vunpack.c.l.b16 %v2704
      %v2771 = vunpack.c.l.b16 %v2705
      %v2772 = vunpack.c.l.b16 %v2706
      %v2773 = vunpack.c.l.b16 %v2707
      %v2774 = vunpack.c.l.b16 %v2708
      %v2775 = vunpack.c.l.b16 %v2709
      %v2776 = vunpack.c.l.b16 %v2710
      %v2777 = vunpack.c.l.b16 %v2711
      %v2778 = vunpack.c.l.b16 %v2712
      %v2779 = vunpack.c.l.b16 %v2713
      %v2780 = vunpack.c.l.b16 %v2714
      %v2781 = vunpack.c.l.b16 %v2715
      %v2782 = vunpack.c.l.b16 %v2716
      %v2783 = vunpack.c.l.b16 %v2717
      %v2784 = vunpack.c.l.b16 %v2718
      %v2785 = vunpack.c.l.b16 %v2719
      %v2786 = vunpack.c.l.b16 %v2720
      %v2787 = vunpack.c.l.b16 %v2721
      %v2788 = vunpack.c.l.b16 %v2722
      %v2789 = vunpack.c.l.b16 %v2723
      %v2790 = vunpack.c.l.b16 %v2724
      %v2791 = vunpack.c.l.b16 %v2725
      %v2792 = vpack.c.b16 %v2761, %v2760
      %v2793 = vpack.c.b16 %v2763, %v2762
      %v2794 = vpack.c.b16 %v2765, %v2764
      %v2795 = vpack.c.b16 %v2767, %v2766
      %v2796 = vpack.c.b16 %v2769, %v2768
      %v2797 = vpack.c.b16 %v2771, %v2770
      %v2798 = vpack.c.b16 %v2773, %v2772
      %v2799 = vpack.c.b16 %v2775, %v2774
      %v2800 = vpack.c.b16 %v2777, %v2776
      %v2801 = vpack.c.b16 %v2779, %v2778
      %v2802 = vpack.c.b16 %v2781, %v2780
      %v2803 = vpack.c.b16 %v2783, %v2782
      %v2804 = vpack.c.b16 %v2785, %v2784
      %v2805 = vpack.c.b16 %v2787, %v2786
      %v2806 = vpack.c.b16 %v2789, %v2788
      %v2807 = vpack.c.b16 %v2791, %v2790
      %v2809 = vsel %vm924, %v2792, 0
      %v2812 = vsel %vm924, %v2793, 0
      %v2815 = vsel %vm924, %v2794, 0
      %v2818 = vsel %vm924, %v2795, 0
      %v2821 = vsel %vm924, %v2796, 0
      %v2824 = vsel %vm924, %v2797, 0
      %v2827 = vsel %vm924, %v2798, 0
      %v2830 = vsel %vm924, %v2799, 0
      %v2833 = vsel %vm924, %v2800, 0
      %v2836 = vsel %vm924, %v2801, 0
      %v2839 = vsel %vm924, %v2802, 0
      %v2842 = vsel %vm924, %v2803, 0
      %v2845 = vsel %vm924, %v2804, 0
      %v2848 = vsel %vm924, %v2805, 0
      %v2851 = vsel %vm924, %v2806, 0
      %v2854 = vsel %vm924, %v2807, 0
      %v2857 = vsel %vm973, %v2727, 0
      %2859 = vmatpush.bf16.msra.mxu0 0
      %2860 = vmatpush.bf16.msra.mxu0 0
      %2861 = vmatpush.bf16.msra.mxu0 0
      %2862 = vmatpush.bf16.msra.mxu0 0
      %2863 = vmatpush.bf16.msra.mxu0 0
      %2864 = vmatpush.bf16.msra.mxu0 0
      %2865 = vmatpush.bf16.msra.mxu0 0
      %2866 = vmatpush.bf16.msra.mxu0 %v2857
      %2867 = vmatmul.bf16.gmra.mxu0 %v2809
      %v2868 = vpop.f32.mrf.mxu0
      %v2869 = vadd.f32 0.0, %v2868
      %v2870 = vpop.f32.mrf.mxu0
      %v2871 = vadd.f32 0.0, %v2870
      %2872 = vmatmul.bf16.gmra.mxu0 %v2812
      %v2873 = vpop.f32.mrf.mxu0
      %v2874 = vadd.f32 0.0, %v2873
      %v2875 = vpop.f32.mrf.mxu0
      %v2876 = vadd.f32 0.0, %v2875
      %2877 = vmatmul.bf16.gmra.mxu0 %v2815
      %v2878 = vpop.f32.mrf.mxu0
      %v2879 = vadd.f32 0.0, %v2878
      %v2880 = vpop.f32.mrf.mxu0
      %v2881 = vadd.f32 0.0, %v2880
      %2882 = vmatmul.bf16.gmra.mxu0 %v2818
      %v2883 = vpop.f32.mrf.mxu0
      %v2884 = vadd.f32 0.0, %v2883
      %v2885 = vpop.f32.mrf.mxu0
      %v2886 = vadd.f32 0.0, %v2885
      %2887 = vmatmul.bf16.gmra.mxu0 %v2821
      %v2888 = vpop.f32.mrf.mxu0
      %v2889 = vadd.f32 0.0, %v2888
      %v2890 = vpop.f32.mrf.mxu0
      %v2891 = vadd.f32 0.0, %v2890
      %2892 = vmatmul.bf16.gmra.mxu0 %v2824
      %v2893 = vpop.f32.mrf.mxu0
      %v2894 = vadd.f32 0.0, %v2893
      %v2895 = vpop.f32.mrf.mxu0
      %v2896 = vadd.f32 0.0, %v2895
      %2897 = vmatmul.bf16.gmra.mxu0 %v2827
      %v2898 = vpop.f32.mrf.mxu0
      %v2899 = vadd.f32 0.0, %v2898
      %v2900 = vpop.f32.mrf.mxu0
      %v2901 = vadd.f32 0.0, %v2900
      %2902 = vmatmul.bf16.gmra.mxu0 %v2830
      %v2903 = vpop.f32.mrf.mxu0
      %v2904 = vadd.f32 0.0, %v2903
      %v2905 = vpop.f32.mrf.mxu0
      %v2906 = vadd.f32 0.0, %v2905
      %2907 = vmatmul.bf16.gmra.mxu0 %v2833
      %v2908 = vpop.f32.mrf.mxu0
      %v2909 = vadd.f32 0.0, %v2908
      %v2910 = vpop.f32.mrf.mxu0
      %v2911 = vadd.f32 0.0, %v2910
      %2912 = vmatmul.bf16.gmra.mxu0 %v2836
      %v2913 = vpop.f32.mrf.mxu0
      %v2914 = vadd.f32 0.0, %v2913
      %v2915 = vpop.f32.mrf.mxu0
      %v2916 = vadd.f32 0.0, %v2915
      %2917 = vmatmul.bf16.gmra.mxu0 %v2839
      %v2918 = vpop.f32.mrf.mxu0
      %v2919 = vadd.f32 0.0, %v2918
      %v2920 = vpop.f32.mrf.mxu0
      %v2921 = vadd.f32 0.0, %v2920
      %2922 = vmatmul.bf16.gmra.mxu0 %v2842
      %v2923 = vpop.f32.mrf.mxu0
      %v2924 = vadd.f32 0.0, %v2923
      %v2925 = vpop.f32.mrf.mxu0
      %v2926 = vadd.f32 0.0, %v2925
      %2927 = vmatmul.bf16.gmra.mxu0 %v2845
      %v2928 = vpop.f32.mrf.mxu0
      %v2929 = vadd.f32 0.0, %v2928
      %v2930 = vpop.f32.mrf.mxu0
      %v2931 = vadd.f32 0.0, %v2930
      %2932 = vmatmul.bf16.gmra.mxu0 %v2848
      %v2933 = vpop.f32.mrf.mxu0
      %v2934 = vadd.f32 0.0, %v2933
      %v2935 = vpop.f32.mrf.mxu0
      %v2936 = vadd.f32 0.0, %v2935
      %2937 = vmatmul.bf16.gmra.mxu0 %v2851
      %v2938 = vpop.f32.mrf.mxu0
      %v2939 = vadd.f32 0.0, %v2938
      %v2940 = vpop.f32.mrf.mxu0
      %v2941 = vadd.f32 0.0, %v2940
      %2942 = vmatmul.bf16.gmra.mxu0 %v2854
      %v2943 = vpop.f32.mrf.mxu0
      %v2944 = vadd.f32 0.0, %v2943
      %v2945 = vpop.f32.mrf.mxu0
      %v2946 = vadd.f32 0.0, %v2945
      %2947 = vdwg.mxu0
      %v2948 = vadd.f32 %v2615, %v2869
      %v2949 = vadd.f32 %v2617, %v2871
      %v2950 = vadd.f32 %v2620, %v2874
      %v2951 = vadd.f32 %v2622, %v2876
      %v2952 = vadd.f32 %v2625, %v2879
      %v2953 = vadd.f32 %v2627, %v2881
      %v2954 = vadd.f32 %v2630, %v2884
      %v2955 = vadd.f32 %v2632, %v2886
      %v2956 = vadd.f32 %v2635, %v2889
      %v2957 = vadd.f32 %v2637, %v2891
      %v2958 = vadd.f32 %v2640, %v2894
      %v2959 = vadd.f32 %v2642, %v2896
      %v2960 = vadd.f32 %v2645, %v2899
      %v2961 = vadd.f32 %v2647, %v2901
      %v2962 = vadd.f32 %v2650, %v2904
      %v2963 = vadd.f32 %v2652, %v2906
      %v2964 = vadd.f32 %v2655, %v2909
      %v2965 = vadd.f32 %v2657, %v2911
      %v2966 = vadd.f32 %v2660, %v2914
      %v2967 = vadd.f32 %v2662, %v2916
      %v2968 = vadd.f32 %v2665, %v2919
      %v2969 = vadd.f32 %v2667, %v2921
      %v2970 = vadd.f32 %v2670, %v2924
      %v2971 = vadd.f32 %v2672, %v2926
      %v2972 = vadd.f32 %v2675, %v2929
      %v2973 = vadd.f32 %v2677, %v2931
      %v2974 = vadd.f32 %v2680, %v2934
      %v2975 = vadd.f32 %v2682, %v2936
      %v2976 = vadd.f32 %v2685, %v2939
      %v2977 = vadd.f32 %v2687, %v2941
      %v2978 = vadd.f32 %v2690, %v2944
      %v2979 = vadd.f32 %v2692, %v2946
      %v2980 = vld [vmem:[%s5] sm:$0x1]
      %v2982 = vperm.slane %v2980, 0
      %v2984 = vmul.f32 %v2948, %v2982
      %v2985 = vmul.f32 %v2949, %v2982
      %v2986 = vmul.f32 %v2950, %v2982
      %v2987 = vmul.f32 %v2951, %v2982
      %v2988 = vmul.f32 %v2952, %v2982
      %v2989 = vmul.f32 %v2953, %v2982
      %v2990 = vmul.f32 %v2954, %v2982
      %v2991 = vmul.f32 %v2955, %v2982
      %v2992 = vmul.f32 %v2956, %v2982
      %v2993 = vmul.f32 %v2957, %v2982
      %v2994 = vmul.f32 %v2958, %v2982
      %v2995 = vmul.f32 %v2959, %v2982
      %v2996 = vmul.f32 %v2960, %v2982
      %v2997 = vmul.f32 %v2961, %v2982
      %v2998 = vmul.f32 %v2962, %v2982
      %v2999 = vmul.f32 %v2963, %v2982
      %v3000 = vmul.f32 %v2964, %v2982
      %v3001 = vmul.f32 %v2965, %v2982
      %v3002 = vmul.f32 %v2966, %v2982
      %v3003 = vmul.f32 %v2967, %v2982
      %v3004 = vmul.f32 %v2968, %v2982
      %v3005 = vmul.f32 %v2969, %v2982
      %v3006 = vmul.f32 %v2970, %v2982
      %v3007 = vmul.f32 %v2971, %v2982
      %v3008 = vmul.f32 %v2972, %v2982
      %v3009 = vmul.f32 %v2973, %v2982
      %v3010 = vmul.f32 %v2974, %v2982
      %v3011 = vmul.f32 %v2975, %v2982
      %v3012 = vmul.f32 %v2976, %v2982
      %v3013 = vmul.f32 %v2977, %v2982
      %v3014 = vmul.f32 %v2978, %v2982
      %v3015 = vmul.f32 %v2979, %v2982
      %v3016 = vld [vmem:[%s6] sm:$0x1]
      %v3018 = vperm.slane %v3016, 0
      %v3020 = vadd.f32 %v2984, %v3018
      %v3021 = vadd.f32 %v2985, %v3018
      %v3022 = vadd.f32 %v2986, %v3018
      %v3023 = vadd.f32 %v2987, %v3018
      %v3024 = vadd.f32 %v2988, %v3018
      %v3025 = vadd.f32 %v2989, %v3018
      %v3026 = vadd.f32 %v2990, %v3018
      %v3027 = vadd.f32 %v2991, %v3018
      %v3028 = vadd.f32 %v2992, %v3018
      %v3029 = vadd.f32 %v2993, %v3018
      %v3030 = vadd.f32 %v2994, %v3018
      %v3031 = vadd.f32 %v2995, %v3018
      %v3032 = vadd.f32 %v2996, %v3018
      %v3033 = vadd.f32 %v2997, %v3018
      %v3034 = vadd.f32 %v2998, %v3018
      %v3035 = vadd.f32 %v2999, %v3018
      %v3036 = vadd.f32 %v3000, %v3018
      %v3037 = vadd.f32 %v3001, %v3018
      %v3038 = vadd.f32 %v3002, %v3018
      %v3039 = vadd.f32 %v3003, %v3018
      %v3040 = vadd.f32 %v3004, %v3018
      %v3041 = vadd.f32 %v3005, %v3018
      %v3042 = vadd.f32 %v3006, %v3018
      %v3043 = vadd.f32 %v3007, %v3018
      %v3044 = vadd.f32 %v3008, %v3018
      %v3045 = vadd.f32 %v3009, %v3018
      %v3046 = vadd.f32 %v3010, %v3018
      %v3047 = vadd.f32 %v3011, %v3018
      %v3048 = vadd.f32 %v3012, %v3018
      %v3049 = vadd.f32 %v3013, %v3018
      %v3050 = vadd.f32 %v3014, %v3018
      %v3051 = vadd.f32 %v3015, %v3018
      %v3052 = vxor.u32 %v3020, 2147483648
      %v3053 = vxor.u32 %v3021, 2147483648
      %v3054 = vxor.u32 %v3022, 2147483648
      %v3055 = vxor.u32 %v3023, 2147483648
      %v3056 = vxor.u32 %v3024, 2147483648
      %v3057 = vxor.u32 %v3025, 2147483648
      %v3058 = vxor.u32 %v3026, 2147483648
      %v3059 = vxor.u32 %v3027, 2147483648
      %v3060 = vxor.u32 %v3028, 2147483648
      %v3061 = vxor.u32 %v3029, 2147483648
      %v3062 = vxor.u32 %v3030, 2147483648
      %v3063 = vxor.u32 %v3031, 2147483648
      %v3064 = vxor.u32 %v3032, 2147483648
      %v3065 = vxor.u32 %v3033, 2147483648
      %v3066 = vxor.u32 %v3034, 2147483648
      %v3067 = vxor.u32 %v3035, 2147483648
      %v3068 = vxor.u32 %v3036, 2147483648
      %v3069 = vxor.u32 %v3037, 2147483648
      %v3070 = vxor.u32 %v3038, 2147483648
      %v3071 = vxor.u32 %v3039, 2147483648
      %v3072 = vxor.u32 %v3040, 2147483648
      %v3073 = vxor.u32 %v3041, 2147483648
      %v3074 = vxor.u32 %v3042, 2147483648
      %v3075 = vxor.u32 %v3043, 2147483648
      %v3076 = vxor.u32 %v3044, 2147483648
      %v3077 = vxor.u32 %v3045, 2147483648
      %v3078 = vxor.u32 %v3046, 2147483648
      %v3079 = vxor.u32 %v3047, 2147483648
      %v3080 = vxor.u32 %v3048, 2147483648
      %v3081 = vxor.u32 %v3049, 2147483648
      %v3082 = vxor.u32 %v3050, 2147483648
      %v3083 = vxor.u32 %v3051, 2147483648
      %v3084 = vmul.f32 %v3052, 1.442695
      %v3085 = vpow.pop %v3084
      %v3086 = vmul.f32 %v3053, 1.442695
      %v3087 = vpow.pop %v3086
      %v3088 = vmul.f32 %v3054, 1.442695
      %v3089 = vpow.pop %v3088
      %v3090 = vmul.f32 %v3055, 1.442695
      %v3091 = vpow.pop %v3090
      %v3092 = vmul.f32 %v3056, 1.442695
      %v3093 = vpow.pop %v3092
      %v3094 = vmul.f32 %v3057, 1.442695
      %v3095 = vpow.pop %v3094
      %v3096 = vmul.f32 %v3058, 1.442695
      %v3097 = vpow.pop %v3096
      %v3098 = vmul.f32 %v3059, 1.442695
      %v3099 = vpow.pop %v3098
      %v3100 = vmul.f32 %v3060, 1.442695
      %v3101 = vpow.pop %v3100
      %v3102 = vmul.f32 %v3061, 1.442695
      %v3103 = vpow.pop %v3102
      %v3104 = vmul.f32 %v3062, 1.442695
      %v3105 = vpow.pop %v3104
      %v3106 = vmul.f32 %v3063, 1.442695
      %v3107 = vpow.pop %v3106
      %v3108 = vmul.f32 %v3064, 1.442695
      %v3109 = vpow.pop %v3108
      %v3110 = vmul.f32 %v3065, 1.442695
      %v3111 = vpow.pop %v3110
      %v3112 = vmul.f32 %v3066, 1.442695
      %v3113 = vpow.pop %v3112
      %v3114 = vmul.f32 %v3067, 1.442695
      %v3115 = vpow.pop %v3114
      %v3116 = vmul.f32 %v3068, 1.442695
      %v3117 = vpow.pop %v3116
      %v3118 = vmul.f32 %v3069, 1.442695
      %v3119 = vpow.pop %v3118
      %v3120 = vmul.f32 %v3070, 1.442695
      %v3121 = vpow.pop %v3120
      %v3122 = vmul.f32 %v3071, 1.442695
      %v3123 = vpow.pop %v3122
      %v3124 = vmul.f32 %v3072, 1.442695
      %v3125 = vpow.pop %v3124
      %v3126 = vmul.f32 %v3073, 1.442695
      %v3127 = vpow.pop %v3126
      %v3128 = vmul.f32 %v3074, 1.442695
      %v3129 = vpow.pop %v3128
      %v3130 = vmul.f32 %v3075, 1.442695
      %v3131 = vpow.pop %v3130
      %v3132 = vmul.f32 %v3076, 1.442695
      %v3133 = vpow.pop %v3132
      %v3134 = vmul.f32 %v3077, 1.442695
      %v3135 = vpow.pop %v3134
      %v3136 = vmul.f32 %v3078, 1.442695
      %v3137 = vpow.pop %v3136
      %v3138 = vmul.f32 %v3079, 1.442695
      %v3139 = vpow.pop %v3138
      %v3140 = vmul.f32 %v3080, 1.442695
      %v3141 = vpow.pop %v3140
      %v3142 = vmul.f32 %v3081, 1.442695
      %v3143 = vpow.pop %v3142
      %v3144 = vmul.f32 %v3082, 1.442695
      %v3145 = vpow.pop %v3144
      %v3146 = vmul.f32 %v3083, 1.442695
      %v3147 = vpow.pop %v3146
      %v3148 = vadd.f32 %v3085, 1.0
      %v3149 = vadd.f32 %v3087, 1.0
      %v3150 = vadd.f32 %v3089, 1.0
      %v3151 = vadd.f32 %v3091, 1.0
      %v3152 = vadd.f32 %v3093, 1.0
      %v3153 = vadd.f32 %v3095, 1.0
      %v3154 = vadd.f32 %v3097, 1.0
      %v3155 = vadd.f32 %v3099, 1.0
      %v3156 = vadd.f32 %v3101, 1.0
      %v3157 = vadd.f32 %v3103, 1.0
      %v3158 = vadd.f32 %v3105, 1.0
      %v3159 = vadd.f32 %v3107, 1.0
      %v3160 = vadd.f32 %v3109, 1.0
      %v3161 = vadd.f32 %v3111, 1.0
      %v3162 = vadd.f32 %v3113, 1.0
      %v3163 = vadd.f32 %v3115, 1.0
      %v3164 = vadd.f32 %v3117, 1.0
      %v3165 = vadd.f32 %v3119, 1.0
      %v3166 = vadd.f32 %v3121, 1.0
      %v3167 = vadd.f32 %v3123, 1.0
      %v3168 = vadd.f32 %v3125, 1.0
      %v3169 = vadd.f32 %v3127, 1.0
      %v3170 = vadd.f32 %v3129, 1.0
      %v3171 = vadd.f32 %v3131, 1.0
      %v3172 = vadd.f32 %v3133, 1.0
      %v3173 = vadd.f32 %v3135, 1.0
      %v3174 = vadd.f32 %v3137, 1.0
      %v3175 = vadd.f32 %v3139, 1.0
      %v3176 = vadd.f32 %v3141, 1.0
      %v3177 = vadd.f32 %v3143, 1.0
      %v3178 = vadd.f32 %v3145, 1.0
      %v3179 = vadd.f32 %v3147, 1.0
      %v3180 = vrcp.pop %v3148
      %v3181 = vmul.f32 %v3148, %v3180
      %v3182 = vsub.f32 1.0, %v3181
      %v3183 = vmul.f32 %v3180, %v3182
      %v3184 = vadd.f32 %v3180, %v3183
      %vm3185 = vweird.f32 %v3148
      %vm3186 = vweird.f32 %v3180
      %vm3187 = vmor %vm3185, %vm3186
      %v3188 = vsel %vm3187, %v3180, %v3184
      %v3189 = vand.u32 2147483647, %v3148
      %vm3190 = vcmp.eq.f32.partialorder %v3189, 8.507059e+37
      %v3191 = vand.u32 %v3148, 2147483648
      %v3192 = vor.u32 1.1754944e-38, %v3191
      %v3193 = vsel %vm3190, %v3192, %v3188
      %v3194 = vmul.f32 1.0, %v3193
      %v3195 = vrcp.pop %v3149
      %v3196 = vmul.f32 %v3149, %v3195
      %v3197 = vsub.f32 1.0, %v3196
      %v3198 = vmul.f32 %v3195, %v3197
      %v3199 = vadd.f32 %v3195, %v3198
      %vm3200 = vweird.f32 %v3149
      %vm3201 = vweird.f32 %v3195
      %vm3202 = vmor %vm3200, %vm3201
      %v3203 = vsel %vm3202, %v3195, %v3199
      %v3204 = vand.u32 2147483647, %v3149
      %vm3205 = vcmp.eq.f32.partialorder %v3204, 8.507059e+37
      %v3206 = vand.u32 %v3149, 2147483648
      %v3207 = vor.u32 1.1754944e-38, %v3206
      %v3208 = vsel %vm3205, %v3207, %v3203
      %v3209 = vmul.f32 1.0, %v3208
      %v3210 = vrcp.pop %v3150
      %v3211 = vmul.f32 %v3150, %v3210
      %v3212 = vsub.f32 1.0, %v3211
      %v3213 = vmul.f32 %v3210, %v3212
      %v3214 = vadd.f32 %v3210, %v3213
      %vm3215 = vweird.f32 %v3150
      %vm3216 = vweird.f32 %v3210
      %vm3217 = vmor %vm3215, %vm3216
      %v3218 = vsel %vm3217, %v3210, %v3214
      %v3219 = vand.u32 2147483647, %v3150
      %vm3220 = vcmp.eq.f32.partialorder %v3219, 8.507059e+37
      %v3221 = vand.u32 %v3150, 2147483648
      %v3222 = vor.u32 1.1754944e-38, %v3221
      %v3223 = vsel %vm3220, %v3222, %v3218
      %v3224 = vmul.f32 1.0, %v3223
      %v3225 = vrcp.pop %v3151
      %v3226 = vmul.f32 %v3151, %v3225
      %v3227 = vsub.f32 1.0, %v3226
      %v3228 = vmul.f32 %v3225, %v3227
      %v3229 = vadd.f32 %v3225, %v3228
      %vm3230 = vweird.f32 %v3151
      %vm3231 = vweird.f32 %v3225
      %vm3232 = vmor %vm3230, %vm3231
      %v3233 = vsel %vm3232, %v3225, %v3229
      %v3234 = vand.u32 2147483647, %v3151
      %vm3235 = vcmp.eq.f32.partialorder %v3234, 8.507059e+37
      %v3236 = vand.u32 %v3151, 2147483648
      %v3237 = vor.u32 1.1754944e-38, %v3236
      %v3238 = vsel %vm3235, %v3237, %v3233
      %v3239 = vmul.f32 1.0, %v3238
      %v3240 = vrcp.pop %v3152
      %v3241 = vmul.f32 %v3152, %v3240
      %v3242 = vsub.f32 1.0, %v3241
      %v3243 = vmul.f32 %v3240, %v3242
      %v3244 = vadd.f32 %v3240, %v3243
      %vm3245 = vweird.f32 %v3152
      %vm3246 = vweird.f32 %v3240
      %vm3247 = vmor %vm3245, %vm3246
      %v3248 = vsel %vm3247, %v3240, %v3244
      %v3249 = vand.u32 2147483647, %v3152
      %vm3250 = vcmp.eq.f32.partialorder %v3249, 8.507059e+37
      %v3251 = vand.u32 %v3152, 2147483648
      %v3252 = vor.u32 1.1754944e-38, %v3251
      %v3253 = vsel %vm3250, %v3252, %v3248
      %v3254 = vmul.f32 1.0, %v3253
      %v3255 = vrcp.pop %v3153
      %v3256 = vmul.f32 %v3153, %v3255
      %v3257 = vsub.f32 1.0, %v3256
      %v3258 = vmul.f32 %v3255, %v3257
      %v3259 = vadd.f32 %v3255, %v3258
      %vm3260 = vweird.f32 %v3153
      %vm3261 = vweird.f32 %v3255
      %vm3262 = vmor %vm3260, %vm3261
      %v3263 = vsel %vm3262, %v3255, %v3259
      %v3264 = vand.u32 2147483647, %v3153
      %vm3265 = vcmp.eq.f32.partialorder %v3264, 8.507059e+37
      %v3266 = vand.u32 %v3153, 2147483648
      %v3267 = vor.u32 1.1754944e-38, %v3266
      %v3268 = vsel %vm3265, %v3267, %v3263
      %v3269 = vmul.f32 1.0, %v3268
      %v3270 = vrcp.pop %v3154
      %v3271 = vmul.f32 %v3154, %v3270
      %v3272 = vsub.f32 1.0, %v3271
      %v3273 = vmul.f32 %v3270, %v3272
      %v3274 = vadd.f32 %v3270, %v3273
      %vm3275 = vweird.f32 %v3154
      %vm3276 = vweird.f32 %v3270
      %vm3277 = vmor %vm3275, %vm3276
      %v3278 = vsel %vm3277, %v3270, %v3274
      %v3279 = vand.u32 2147483647, %v3154
      %vm3280 = vcmp.eq.f32.partialorder %v3279, 8.507059e+37
      %v3281 = vand.u32 %v3154, 2147483648
      %v3282 = vor.u32 1.1754944e-38, %v3281
      %v3283 = vsel %vm3280, %v3282, %v3278
      %v3284 = vmul.f32 1.0, %v3283
      %v3285 = vrcp.pop %v3155
      %v3286 = vmul.f32 %v3155, %v3285
      %v3287 = vsub.f32 1.0, %v3286
      %v3288 = vmul.f32 %v3285, %v3287
      %v3289 = vadd.f32 %v3285, %v3288
      %vm3290 = vweird.f32 %v3155
      %vm3291 = vweird.f32 %v3285
      %vm3292 = vmor %vm3290, %vm3291
      %v3293 = vsel %vm3292, %v3285, %v3289
      %v3294 = vand.u32 2147483647, %v3155
      %vm3295 = vcmp.eq.f32.partialorder %v3294, 8.507059e+37
      %v3296 = vand.u32 %v3155, 2147483648
      %v3297 = vor.u32 1.1754944e-38, %v3296
      %v3298 = vsel %vm3295, %v3297, %v3293
      %v3299 = vmul.f32 1.0, %v3298
      %v3300 = vrcp.pop %v3156
      %v3301 = vmul.f32 %v3156, %v3300
      %v3302 = vsub.f32 1.0, %v3301
      %v3303 = vmul.f32 %v3300, %v3302
      %v3304 = vadd.f32 %v3300, %v3303
      %vm3305 = vweird.f32 %v3156
      %vm3306 = vweird.f32 %v3300
      %vm3307 = vmor %vm3305, %vm3306
      %v3308 = vsel %vm3307, %v3300, %v3304
      %v3309 = vand.u32 2147483647, %v3156
      %vm3310 = vcmp.eq.f32.partialorder %v3309, 8.507059e+37
      %v3311 = vand.u32 %v3156, 2147483648
      %v3312 = vor.u32 1.1754944e-38, %v3311
      %v3313 = vsel %vm3310, %v3312, %v3308
      %v3314 = vmul.f32 1.0, %v3313
      %v3315 = vrcp.pop %v3157
      %v3316 = vmul.f32 %v3157, %v3315
      %v3317 = vsub.f32 1.0, %v3316
      %v3318 = vmul.f32 %v3315, %v3317
      %v3319 = vadd.f32 %v3315, %v3318
      %vm3320 = vweird.f32 %v3157
      %vm3321 = vweird.f32 %v3315
      %vm3322 = vmor %vm3320, %vm3321
      %v3323 = vsel %vm3322, %v3315, %v3319
      %v3324 = vand.u32 2147483647, %v3157
      %vm3325 = vcmp.eq.f32.partialorder %v3324, 8.507059e+37
      %v3326 = vand.u32 %v3157, 2147483648
      %v3327 = vor.u32 1.1754944e-38, %v3326
      %v3328 = vsel %vm3325, %v3327, %v3323
      %v3329 = vmul.f32 1.0, %v3328
      %v3330 = vrcp.pop %v3158
      %v3331 = vmul.f32 %v3158, %v3330
      %v3332 = vsub.f32 1.0, %v3331
      %v3333 = vmul.f32 %v3330, %v3332
      %v3334 = vadd.f32 %v3330, %v3333
      %vm3335 = vweird.f32 %v3158
      %vm3336 = vweird.f32 %v3330
      %vm3337 = vmor %vm3335, %vm3336
      %v3338 = vsel %vm3337, %v3330, %v3334
      %v3339 = vand.u32 2147483647, %v3158
      %vm3340 = vcmp.eq.f32.partialorder %v3339, 8.507059e+37
      %v3341 = vand.u32 %v3158, 2147483648
      %v3342 = vor.u32 1.1754944e-38, %v3341
      %v3343 = vsel %vm3340, %v3342, %v3338
      %v3344 = vmul.f32 1.0, %v3343
      %v3345 = vrcp.pop %v3159
      %v3346 = vmul.f32 %v3159, %v3345
      %v3347 = vsub.f32 1.0, %v3346
      %v3348 = vmul.f32 %v3345, %v3347
      %v3349 = vadd.f32 %v3345, %v3348
      %vm3350 = vweird.f32 %v3159
      %vm3351 = vweird.f32 %v3345
      %vm3352 = vmor %vm3350, %vm3351
      %v3353 = vsel %vm3352, %v3345, %v3349
      %v3354 = vand.u32 2147483647, %v3159
      %vm3355 = vcmp.eq.f32.partialorder %v3354, 8.507059e+37
      %v3356 = vand.u32 %v3159, 2147483648
      %v3357 = vor.u32 1.1754944e-38, %v3356
      %v3358 = vsel %vm3355, %v3357, %v3353
      %v3359 = vmul.f32 1.0, %v3358
      %v3360 = vrcp.pop %v3160
      %v3361 = vmul.f32 %v3160, %v3360
      %v3362 = vsub.f32 1.0, %v3361
      %v3363 = vmul.f32 %v3360, %v3362
      %v3364 = vadd.f32 %v3360, %v3363
      %vm3365 = vweird.f32 %v3160
      %vm3366 = vweird.f32 %v3360
      %vm3367 = vmor %vm3365, %vm3366
      %v3368 = vsel %vm3367, %v3360, %v3364
      %v3369 = vand.u32 2147483647, %v3160
      %vm3370 = vcmp.eq.f32.partialorder %v3369, 8.507059e+37
      %v3371 = vand.u32 %v3160, 2147483648
      %v3372 = vor.u32 1.1754944e-38, %v3371
      %v3373 = vsel %vm3370, %v3372, %v3368
      %v3374 = vmul.f32 1.0, %v3373
      %v3375 = vrcp.pop %v3161
      %v3376 = vmul.f32 %v3161, %v3375
      %v3377 = vsub.f32 1.0, %v3376
      %v3378 = vmul.f32 %v3375, %v3377
      %v3379 = vadd.f32 %v3375, %v3378
      %vm3380 = vweird.f32 %v3161
      %vm3381 = vweird.f32 %v3375
      %vm3382 = vmor %vm3380, %vm3381
      %v3383 = vsel %vm3382, %v3375, %v3379
      %v3384 = vand.u32 2147483647, %v3161
      %vm3385 = vcmp.eq.f32.partialorder %v3384, 8.507059e+37
      %v3386 = vand.u32 %v3161, 2147483648
      %v3387 = vor.u32 1.1754944e-38, %v3386
      %v3388 = vsel %vm3385, %v3387, %v3383
      %v3389 = vmul.f32 1.0, %v3388
      %v3390 = vrcp.pop %v3162
      %v3391 = vmul.f32 %v3162, %v3390
      %v3392 = vsub.f32 1.0, %v3391
      %v3393 = vmul.f32 %v3390, %v3392
      %v3394 = vadd.f32 %v3390, %v3393
      %vm3395 = vweird.f32 %v3162
      %vm3396 = vweird.f32 %v3390
      %vm3397 = vmor %vm3395, %vm3396
      %v3398 = vsel %vm3397, %v3390, %v3394
      %v3399 = vand.u32 2147483647, %v3162
      %vm3400 = vcmp.eq.f32.partialorder %v3399, 8.507059e+37
      %v3401 = vand.u32 %v3162, 2147483648
      %v3402 = vor.u32 1.1754944e-38, %v3401
      %v3403 = vsel %vm3400, %v3402, %v3398
      %v3404 = vmul.f32 1.0, %v3403
      %v3405 = vrcp.pop %v3163
      %v3406 = vmul.f32 %v3163, %v3405
      %v3407 = vsub.f32 1.0, %v3406
      %v3408 = vmul.f32 %v3405, %v3407
      %v3409 = vadd.f32 %v3405, %v3408
      %vm3410 = vweird.f32 %v3163
      %vm3411 = vweird.f32 %v3405
      %vm3412 = vmor %vm3410, %vm3411
      %v3413 = vsel %vm3412, %v3405, %v3409
      %v3414 = vand.u32 2147483647, %v3163
      %vm3415 = vcmp.eq.f32.partialorder %v3414, 8.507059e+37
      %v3416 = vand.u32 %v3163, 2147483648
      %v3417 = vor.u32 1.1754944e-38, %v3416
      %v3418 = vsel %vm3415, %v3417, %v3413
      %v3419 = vmul.f32 1.0, %v3418
      %v3420 = vrcp.pop %v3164
      %v3421 = vmul.f32 %v3164, %v3420
      %v3422 = vsub.f32 1.0, %v3421
      %v3423 = vmul.f32 %v3420, %v3422
      %v3424 = vadd.f32 %v3420, %v3423
      %vm3425 = vweird.f32 %v3164
      %vm3426 = vweird.f32 %v3420
      %vm3427 = vmor %vm3425, %vm3426
      %v3428 = vsel %vm3427, %v3420, %v3424
      %v3429 = vand.u32 2147483647, %v3164
      %vm3430 = vcmp.eq.f32.partialorder %v3429, 8.507059e+37
      %v3431 = vand.u32 %v3164, 2147483648
      %v3432 = vor.u32 1.1754944e-38, %v3431
      %v3433 = vsel %vm3430, %v3432, %v3428
      %v3434 = vmul.f32 1.0, %v3433
      %v3435 = vrcp.pop %v3165
      %v3436 = vmul.f32 %v3165, %v3435
      %v3437 = vsub.f32 1.0, %v3436
      %v3438 = vmul.f32 %v3435, %v3437
      %v3439 = vadd.f32 %v3435, %v3438
      %vm3440 = vweird.f32 %v3165
      %vm3441 = vweird.f32 %v3435
      %vm3442 = vmor %vm3440, %vm3441
      %v3443 = vsel %vm3442, %v3435, %v3439
      %v3444 = vand.u32 2147483647, %v3165
      %vm3445 = vcmp.eq.f32.partialorder %v3444, 8.507059e+37
      %v3446 = vand.u32 %v3165, 2147483648
      %v3447 = vor.u32 1.1754944e-38, %v3446
      %v3448 = vsel %vm3445, %v3447, %v3443
      %v3449 = vmul.f32 1.0, %v3448
      %v3450 = vrcp.pop %v3166
      %v3451 = vmul.f32 %v3166, %v3450
      %v3452 = vsub.f32 1.0, %v3451
      %v3453 = vmul.f32 %v3450, %v3452
      %v3454 = vadd.f32 %v3450, %v3453
      %vm3455 = vweird.f32 %v3166
      %vm3456 = vweird.f32 %v3450
      %vm3457 = vmor %vm3455, %vm3456
      %v3458 = vsel %vm3457, %v3450, %v3454
      %v3459 = vand.u32 2147483647, %v3166
      %vm3460 = vcmp.eq.f32.partialorder %v3459, 8.507059e+37
      %v3461 = vand.u32 %v3166, 2147483648
      %v3462 = vor.u32 1.1754944e-38, %v3461
      %v3463 = vsel %vm3460, %v3462, %v3458
      %v3464 = vmul.f32 1.0, %v3463
      %v3465 = vrcp.pop %v3167
      %v3466 = vmul.f32 %v3167, %v3465
      %v3467 = vsub.f32 1.0, %v3466
      %v3468 = vmul.f32 %v3465, %v3467
      %v3469 = vadd.f32 %v3465, %v3468
      %vm3470 = vweird.f32 %v3167
      %vm3471 = vweird.f32 %v3465
      %vm3472 = vmor %vm3470, %vm3471
      %v3473 = vsel %vm3472, %v3465, %v3469
      %v3474 = vand.u32 2147483647, %v3167
      %vm3475 = vcmp.eq.f32.partialorder %v3474, 8.507059e+37
      %v3476 = vand.u32 %v3167, 2147483648
      %v3477 = vor.u32 1.1754944e-38, %v3476
      %v3478 = vsel %vm3475, %v3477, %v3473
      %v3479 = vmul.f32 1.0, %v3478
      %v3480 = vrcp.pop %v3168
      %v3481 = vmul.f32 %v3168, %v3480
      %v3482 = vsub.f32 1.0, %v3481
      %v3483 = vmul.f32 %v3480, %v3482
      %v3484 = vadd.f32 %v3480, %v3483
      %vm3485 = vweird.f32 %v3168
      %vm3486 = vweird.f32 %v3480
      %vm3487 = vmor %vm3485, %vm3486
      %v3488 = vsel %vm3487, %v3480, %v3484
      %v3489 = vand.u32 2147483647, %v3168
      %vm3490 = vcmp.eq.f32.partialorder %v3489, 8.507059e+37
      %v3491 = vand.u32 %v3168, 2147483648
      %v3492 = vor.u32 1.1754944e-38, %v3491
      %v3493 = vsel %vm3490, %v3492, %v3488
      %v3494 = vmul.f32 1.0, %v3493
      %v3495 = vrcp.pop %v3169
      %v3496 = vmul.f32 %v3169, %v3495
      %v3497 = vsub.f32 1.0, %v3496
      %v3498 = vmul.f32 %v3495, %v3497
      %v3499 = vadd.f32 %v3495, %v3498
      %vm3500 = vweird.f32 %v3169
      %vm3501 = vweird.f32 %v3495
      %vm3502 = vmor %vm3500, %vm3501
      %v3503 = vsel %vm3502, %v3495, %v3499
      %v3504 = vand.u32 2147483647, %v3169
      %vm3505 = vcmp.eq.f32.partialorder %v3504, 8.507059e+37
      %v3506 = vand.u32 %v3169, 2147483648
      %v3507 = vor.u32 1.1754944e-38, %v3506
      %v3508 = vsel %vm3505, %v3507, %v3503
      %v3509 = vmul.f32 1.0, %v3508
      %v3510 = vrcp.pop %v3170
      %v3511 = vmul.f32 %v3170, %v3510
      %v3512 = vsub.f32 1.0, %v3511
      %v3513 = vmul.f32 %v3510, %v3512
      %v3514 = vadd.f32 %v3510, %v3513
      %vm3515 = vweird.f32 %v3170
      %vm3516 = vweird.f32 %v3510
      %vm3517 = vmor %vm3515, %vm3516
      %v3518 = vsel %vm3517, %v3510, %v3514
      %v3519 = vand.u32 2147483647, %v3170
      %vm3520 = vcmp.eq.f32.partialorder %v3519, 8.507059e+37
      %v3521 = vand.u32 %v3170, 2147483648
      %v3522 = vor.u32 1.1754944e-38, %v3521
      %v3523 = vsel %vm3520, %v3522, %v3518
      %v3524 = vmul.f32 1.0, %v3523
      %v3525 = vrcp.pop %v3171
      %v3526 = vmul.f32 %v3171, %v3525
      %v3527 = vsub.f32 1.0, %v3526
      %v3528 = vmul.f32 %v3525, %v3527
      %v3529 = vadd.f32 %v3525, %v3528
      %vm3530 = vweird.f32 %v3171
      %vm3531 = vweird.f32 %v3525
      %vm3532 = vmor %vm3530, %vm3531
      %v3533 = vsel %vm3532, %v3525, %v3529
      %v3534 = vand.u32 2147483647, %v3171
      %vm3535 = vcmp.eq.f32.partialorder %v3534, 8.507059e+37
      %v3536 = vand.u32 %v3171, 2147483648
      %v3537 = vor.u32 1.1754944e-38, %v3536
      %v3538 = vsel %vm3535, %v3537, %v3533
      %v3539 = vmul.f32 1.0, %v3538
      %v3540 = vrcp.pop %v3172
      %v3541 = vmul.f32 %v3172, %v3540
      %v3542 = vsub.f32 1.0, %v3541
      %v3543 = vmul.f32 %v3540, %v3542
      %v3544 = vadd.f32 %v3540, %v3543
      %vm3545 = vweird.f32 %v3172
      %vm3546 = vweird.f32 %v3540
      %vm3547 = vmor %vm3545, %vm3546
      %v3548 = vsel %vm3547, %v3540, %v3544
      %v3549 = vand.u32 2147483647, %v3172
      %vm3550 = vcmp.eq.f32.partialorder %v3549, 8.507059e+37
      %v3551 = vand.u32 %v3172, 2147483648
      %v3552 = vor.u32 1.1754944e-38, %v3551
      %v3553 = vsel %vm3550, %v3552, %v3548
      %v3554 = vmul.f32 1.0, %v3553
      %v3555 = vrcp.pop %v3173
      %v3556 = vmul.f32 %v3173, %v3555
      %v3557 = vsub.f32 1.0, %v3556
      %v3558 = vmul.f32 %v3555, %v3557
      %v3559 = vadd.f32 %v3555, %v3558
      %vm3560 = vweird.f32 %v3173
      %vm3561 = vweird.f32 %v3555
      %vm3562 = vmor %vm3560, %vm3561
      %v3563 = vsel %vm3562, %v3555, %v3559
      %v3564 = vand.u32 2147483647, %v3173
      %vm3565 = vcmp.eq.f32.partialorder %v3564, 8.507059e+37
      %v3566 = vand.u32 %v3173, 2147483648
      %v3567 = vor.u32 1.1754944e-38, %v3566
      %v3568 = vsel %vm3565, %v3567, %v3563
      %v3569 = vmul.f32 1.0, %v3568
      %v3570 = vrcp.pop %v3174
      %v3571 = vmul.f32 %v3174, %v3570
      %v3572 = vsub.f32 1.0, %v3571
      %v3573 = vmul.f32 %v3570, %v3572
      %v3574 = vadd.f32 %v3570, %v3573
      %vm3575 = vweird.f32 %v3174
      %vm3576 = vweird.f32 %v3570
      %vm3577 = vmor %vm3575, %vm3576
      %v3578 = vsel %vm3577, %v3570, %v3574
      %v3579 = vand.u32 2147483647, %v3174
      %vm3580 = vcmp.eq.f32.partialorder %v3579, 8.507059e+37
      %v3581 = vand.u32 %v3174, 2147483648
      %v3582 = vor.u32 1.1754944e-38, %v3581
      %v3583 = vsel %vm3580, %v3582, %v3578
      %v3584 = vmul.f32 1.0, %v3583
      %v3585 = vrcp.pop %v3175
      %v3586 = vmul.f32 %v3175, %v3585
      %v3587 = vsub.f32 1.0, %v3586
      %v3588 = vmul.f32 %v3585, %v3587
      %v3589 = vadd.f32 %v3585, %v3588
      %vm3590 = vweird.f32 %v3175
      %vm3591 = vweird.f32 %v3585
      %vm3592 = vmor %vm3590, %vm3591
      %v3593 = vsel %vm3592, %v3585, %v3589
      %v3594 = vand.u32 2147483647, %v3175
      %vm3595 = vcmp.eq.f32.partialorder %v3594, 8.507059e+37
      %v3596 = vand.u32 %v3175, 2147483648
      %v3597 = vor.u32 1.1754944e-38, %v3596
      %v3598 = vsel %vm3595, %v3597, %v3593
      %v3599 = vmul.f32 1.0, %v3598
      %v3600 = vrcp.pop %v3176
      %v3601 = vmul.f32 %v3176, %v3600
      %v3602 = vsub.f32 1.0, %v3601
      %v3603 = vmul.f32 %v3600, %v3602
      %v3604 = vadd.f32 %v3600, %v3603
      %vm3605 = vweird.f32 %v3176
      %vm3606 = vweird.f32 %v3600
      %vm3607 = vmor %vm3605, %vm3606
      %v3608 = vsel %vm3607, %v3600, %v3604
      %v3609 = vand.u32 2147483647, %v3176
      %vm3610 = vcmp.eq.f32.partialorder %v3609, 8.507059e+37
      %v3611 = vand.u32 %v3176, 2147483648
      %v3612 = vor.u32 1.1754944e-38, %v3611
      %v3613 = vsel %vm3610, %v3612, %v3608
      %v3614 = vmul.f32 1.0, %v3613
      %v3615 = vrcp.pop %v3177
      %v3616 = vmul.f32 %v3177, %v3615
      %v3617 = vsub.f32 1.0, %v3616
      %v3618 = vmul.f32 %v3615, %v3617
      %v3619 = vadd.f32 %v3615, %v3618
      %vm3620 = vweird.f32 %v3177
      %vm3621 = vweird.f32 %v3615
      %vm3622 = vmor %vm3620, %vm3621
      %v3623 = vsel %vm3622, %v3615, %v3619
      %v3624 = vand.u32 2147483647, %v3177
      %vm3625 = vcmp.eq.f32.partialorder %v3624, 8.507059e+37
      %v3626 = vand.u32 %v3177, 2147483648
      %v3627 = vor.u32 1.1754944e-38, %v3626
      %v3628 = vsel %vm3625, %v3627, %v3623
      %v3629 = vmul.f32 1.0, %v3628
      %v3630 = vrcp.pop %v3178
      %v3631 = vmul.f32 %v3178, %v3630
      %v3632 = vsub.f32 1.0, %v3631
      %v3633 = vmul.f32 %v3630, %v3632
      %v3634 = vadd.f32 %v3630, %v3633
      %vm3635 = vweird.f32 %v3178
      %vm3636 = vweird.f32 %v3630
      %vm3637 = vmor %vm3635, %vm3636
      %v3638 = vsel %vm3637, %v3630, %v3634
      %v3639 = vand.u32 2147483647, %v3178
      %vm3640 = vcmp.eq.f32.partialorder %v3639, 8.507059e+37
      %v3641 = vand.u32 %v3178, 2147483648
      %v3642 = vor.u32 1.1754944e-38, %v3641
      %v3643 = vsel %vm3640, %v3642, %v3638
      %v3644 = vmul.f32 1.0, %v3643
      %v3645 = vrcp.pop %v3179
      %v3646 = vmul.f32 %v3179, %v3645
      %v3647 = vsub.f32 1.0, %v3646
      %v3648 = vmul.f32 %v3645, %v3647
      %v3649 = vadd.f32 %v3645, %v3648
      %vm3650 = vweird.f32 %v3179
      %vm3651 = vweird.f32 %v3645
      %vm3652 = vmor %vm3650, %vm3651
      %v3653 = vsel %vm3652, %v3645, %v3649
      %v3654 = vand.u32 2147483647, %v3179
      %vm3655 = vcmp.eq.f32.partialorder %v3654, 8.507059e+37
      %v3656 = vand.u32 %v3179, 2147483648
      %v3657 = vor.u32 1.1754944e-38, %v3656
      %v3658 = vsel %vm3655, %v3657, %v3653
      %v3659 = vmul.f32 1.0, %v3658
      %v3660 = vmul.f32 %v3020, %v3194
      %v3661 = vmul.f32 %v3021, %v3209
      %v3662 = vmul.f32 %v3022, %v3224
      %v3663 = vmul.f32 %v3023, %v3239
      %v3664 = vmul.f32 %v3024, %v3254
      %v3665 = vmul.f32 %v3025, %v3269
      %v3666 = vmul.f32 %v3026, %v3284
      %v3667 = vmul.f32 %v3027, %v3299
      %v3668 = vmul.f32 %v3028, %v3314
      %v3669 = vmul.f32 %v3029, %v3329
      %v3670 = vmul.f32 %v3030, %v3344
      %v3671 = vmul.f32 %v3031, %v3359
      %v3672 = vmul.f32 %v3032, %v3374
      %v3673 = vmul.f32 %v3033, %v3389
      %v3674 = vmul.f32 %v3034, %v3404
      %v3675 = vmul.f32 %v3035, %v3419
      %v3676 = vmul.f32 %v3036, %v3434
      %v3677 = vmul.f32 %v3037, %v3449
      %v3678 = vmul.f32 %v3038, %v3464
      %v3679 = vmul.f32 %v3039, %v3479
      %v3680 = vmul.f32 %v3040, %v3494
      %v3681 = vmul.f32 %v3041, %v3509
      %v3682 = vmul.f32 %v3042, %v3524
      %v3683 = vmul.f32 %v3043, %v3539
      %v3684 = vmul.f32 %v3044, %v3554
      %v3685 = vmul.f32 %v3045, %v3569
      %v3686 = vmul.f32 %v3046, %v3584
      %v3687 = vmul.f32 %v3047, %v3599
      %v3688 = vmul.f32 %v3048, %v3614
      %v3689 = vmul.f32 %v3049, %v3629
      %v3690 = vmul.f32 %v3050, %v3644
      %v3691 = vmul.f32 %v3051, %v3659
      %3692 = vst.msk [vmem:[%s278] sm:$0xff] %vm924, %v3660
      %3693 = vst.msk [vmem:[%s278 + $0x8] sm:$0xff] %vm924, %v3661
      %3694 = vst.msk [vmem:[%s278 + $0x10] sm:$0xff] %vm924, %v3662
      %3695 = vst.msk [vmem:[%s278 + $0x18] sm:$0xff] %vm924, %v3663
      %3696 = vst.msk [vmem:[%s278 + $0x20] sm:$0xff] %vm924, %v3664
      %3697 = vst.msk [vmem:[%s278 + $0x28] sm:$0xff] %vm924, %v3665
      %3698 = vst.msk [vmem:[%s278 + $0x30] sm:$0xff] %vm924, %v3666
      %3699 = vst.msk [vmem:[%s278 + $0x38] sm:$0xff] %vm924, %v3667
      %3700 = vst.msk [vmem:[%s278 + $0x40] sm:$0xff] %vm924, %v3668
      %3701 = vst.msk [vmem:[%s278 + $0x48] sm:$0xff] %vm924, %v3669
      %3702 = vst.msk [vmem:[%s278 + $0x50] sm:$0xff] %vm924, %v3670
      %3703 = vst.msk [vmem:[%s278 + $0x58] sm:$0xff] %vm924, %v3671
      %3704 = vst.msk [vmem:[%s278 + $0x60] sm:$0xff] %vm924, %v3672
      %3705 = vst.msk [vmem:[%s278 + $0x68] sm:$0xff] %vm924, %v3673
      %3706 = vst.msk [vmem:[%s278 + $0x70] sm:$0xff] %vm924, %v3674
      %3707 = vst.msk [vmem:[%s278 + $0x78] sm:$0xff] %vm924, %v3675
      %3708 = vst.msk [vmem:[%s278 + $0x80] sm:$0xff] %vm924, %v3676
      %3709 = vst.msk [vmem:[%s278 + $0x88] sm:$0xff] %vm924, %v3677
      %3710 = vst.msk [vmem:[%s278 + $0x90] sm:$0xff] %vm924, %v3678
      %3711 = vst.msk [vmem:[%s278 + $0x98] sm:$0xff] %vm924, %v3679
      %3712 = vst.msk [vmem:[%s278 + $0xa0] sm:$0xff] %vm924, %v3680
      %3713 = vst.msk [vmem:[%s278 + $0xa8] sm:$0xff] %vm924, %v3681
      %3714 = vst.msk [vmem:[%s278 + $0xb0] sm:$0xff] %vm924, %v3682
      %3715 = vst.msk [vmem:[%s278 + $0xb8] sm:$0xff] %vm924, %v3683
      %3716 = vst.msk [vmem:[%s278 + $0xc0] sm:$0xff] %vm924, %v3684
      %3717 = vst.msk [vmem:[%s278 + $0xc8] sm:$0xff] %vm924, %v3685
      %3718 = vst.msk [vmem:[%s278 + $0xd0] sm:$0xff] %vm924, %v3686
      %3719 = vst.msk [vmem:[%s278 + $0xd8] sm:$0xff] %vm924, %v3687
      %3720 = vst.msk [vmem:[%s278 + $0xe0] sm:$0xff] %vm924, %v3688
      %3721 = vst.msk [vmem:[%s278 + $0xe8] sm:$0xff] %vm924, %v3689
      %3722 = vst.msk [vmem:[%s278 + $0xf0] sm:$0xff] %vm924, %v3690
      %3723 = vst.msk [vmem:[%s278 + $0xf8] sm:$0xff] %vm924, %v3691
      %p3724 = scmp.lt.s32.totalorder %s18, 1
      %s3725 = scalar_select %p3724, %s18, 1
      %s3726 = smul.addr %s3725, 32
      %s3727 = smul.addr %s3726, 8
      %s3728 = scalar_lea.vmem %s7, %s3727
      // Predicated region
      $region49: #{crossconv_forward.1} parent=47 // pred_check
        %p3729 = pneg %p188
      $region50: #{crossconv_forward.1} parent=47 // pred_check_branch
        %3731 = sbr.rel (%p3729) target = $region52
      $region51: #{crossconv_forward.1} parent=47 // pred_region
        _
      $region52: #{crossconv_forward.1} parent=47 // pred_fallthru
        _
    $region48: #{crossconv_forward.1} parent=5 // pred_fallthru
      _
    %p3732 = scmp.le.s32.totalorder 2, %s13
    // Predicated region
    $region53: #{crossconv_forward.1} parent=5 // pred_check
      %p3733 = pneg %p3732
    $region54: #{crossconv_forward.1} parent=5 // pred_check_branch
      %3735 = sbr.rel (%p3733) target = $region56
    $region55: #{crossconv_forward.1} parent=5 // pred_region
      %s3736 = ssub.s32 %s13, 2
      // Predicated region
      $region57: #{crossconv_forward.1} parent=55 // pred_check
        %p3737 = pneg %p194
      $region58: #{crossconv_forward.1} parent=55 // pred_check_branch
        %3739 = sbr.rel (%p3737) target = $region60
      $region59: #{crossconv_forward.1} parent=55 // pred_region
        %p3740 = scmp.lt.s32.totalorder %s19, 1
        %s3741 = scalar_select %p3740, %s19, 1
        %s3742 = smul.addr %s3741, 32
        %s3743 = smul.addr %s3742, 8
        %s3744 = scalar_lea.vmem %s7, %s3743
      $region60: #{crossconv_forward.1} parent=55 // pred_fallthru
        _
    $region56: #{crossconv_forward.1} parent=5 // pred_fallthru
      _
  $region6: #{crossconv_forward.1} parent=0 // loop_footer
    %s17 = sadd.s32 1, %s13
  $region7: #{crossconv_forward.1} parent=0 // loop_footer_branch
    %12 = sbr.rel target = $region3
  $region8: #{crossconv_forward.1} parent=0 // loop_exit
    _

</llo_original>
